<compile_context>
chip_gen: v5e
topology: v5e:2x2
jax: 0.10.0
libtpu: 0.0.40
codegen_flags: <defaults>
</compile_context>

<pallas_src>
import math

import jax
import jax.numpy as jnp
from jax.experimental import pallas as pl
from jax.experimental.pallas import tpu as pltpu  # noqa: F401  (TPU backend assumed)

# ----------------------------- configuration ------------------------------
N_LAYERS = 2        # N
HEADS = 4           # heads
VOCAB = 50          # vocab_size
D_MODEL = 32        # d_model
D_FF = 64           # feed-forward hidden size
MAX_LEN = 200       # max_len
EPS = 1e-6
D_K = D_MODEL // HEADS


# ----------------------------- pos embedding ------------------------------
def make_pos_embed(max_len: int, d_model: int) -> jnp.ndarray:
    """Matches the PyTorch loop exactly (sin uses 2*i, cos uses 2*(i+1))."""
    pos = jnp.arange(max_len, dtype=jnp.float32)[:, None]            # [L, 1]
    i_even = jnp.arange(0, d_model, 2, dtype=jnp.float32)[None, :]   # even indices
    sin_part = jnp.sin(pos / jnp.power(10000.0, (2.0 * i_even) / d_model))
    cos_part = jnp.cos(pos / jnp.power(10000.0, (2.0 * (i_even + 1.0)) / d_model))
    pe = jnp.zeros((max_len, d_model), jnp.float32)
    pe = pe.at[:, 0::2].set(sin_part)
    pe = pe.at[:, 1::2].set(cos_part)
    return pe


# --------------------------- in-kernel helpers -----------------------------
def _norm(x, alpha, bias):
    """PyTorch Norm: alpha * (x - mean) / (std_unbiased + eps) + bias.
    alpha / bias are [1, D]; divide goes to the EUP via approx reciprocal."""
    d = x.shape[-1]
    mean = jnp.mean(x, axis=-1, keepdims=True)
    var = jnp.sum((x - mean) ** 2, axis=-1, keepdims=True) * (1.0 / (d - 1))
    inv = pl.reciprocal(jnp.sqrt(var) + EPS, approx=True)
    return alpha * (x - mean) * inv + bias


def _attention(q, k, v, add_bias, batch, s_q, s_kv):
    """q: [B*Sq, D]; k, v: [B*Skv, D]; add_bias: [B, Sq or 1, Skv] additive mask
    (-1e9 at masked positions, 0 elsewhere; computed once per forward pass)."""
    inv_sqrt_dk = 1.0 / math.sqrt(D_K)
    batch_out = []
    for b in range(batch):                              # static (B is tiny)
        qb = q[b * s_q:(b + 1) * s_q]
        kb = k[b * s_kv:(b + 1) * s_kv]
        vb = v[b * s_kv:(b + 1) * s_kv]
        bias_b = add_bias[b]                            # [Sq or 1, Skv]
        head_out = []
        for h in range(HEADS):                          # static
            lo = h * D_K
            qh = qb[:, lo:lo + D_K]
            kh = kb[:, lo:lo + D_K]
            vh = vb[:, lo:lo + D_K]
            # q @ k^T without an explicit transpose (contract last dims of both).
            s = jax.lax.dot_general(qh, kh, (((1,), (1,)), ((), ())),
                                    preferred_element_type=jnp.float32)
            s = s * inv_sqrt_dk + bias_b
            m = jnp.max(s, axis=-1, keepdims=True)
            e = jnp.exp(s - m)
            p = e * pl.reciprocal(jnp.sum(e, axis=-1, keepdims=True), approx=True)
            head_out.append(jnp.dot(p, vh, preferred_element_type=jnp.float32))
        batch_out.append(jnp.concatenate(head_out, axis=-1))     # [Sq, D]
    return jnp.concatenate(batch_out, axis=0)                    # [B*Sq, D]


# --------------------------------- kernel -----------------------------------
def decoder_fused_kernel(emb_ref, pos_ref, enc_ref, trg_mask_ref, src_mask_ref,
                         norm_ab_ref,
                         w_qkv_s_ref, b_qkv_s_ref, w_o_s_ref, b_o_s_ref,
                         w_q_c_ref, b_q_c_ref, w_kv_c_ref, b_kv_c_ref,
                         w_o_c_ref, b_o_c_ref,
                         ff_w1_ref, ff_b1_ref, ff_w2_ref, ff_b2_ref,
                         final_ab_ref, out_ref):
    B, S, _ = trg_mask_ref.shape
    Ssrc = src_mask_ref.shape[2]
    D = emb_ref.shape[1]

    # --- embed scale + positional encoding (dropout = identity) ---
    pos = pos_ref[...]                                            # [S, D]
    x = emb_ref[...] * math.sqrt(D_MODEL) + jnp.concatenate([pos] * B, axis=0)

    enc = enc_ref[...]                                            # [B*Ssrc, D]

    # --- additive attention biases: computed once, reused by every layer / head ---
    trg_bias = jnp.where(trg_mask_ref[...] == 0.0, -1e9, 0.0)     # [B, S, S]
    src_bias = jnp.where(src_mask_ref[...] == 0.0, -1e9, 0.0)     # [B, 1, Ssrc]

    for l in range(N_LAYERS):              # static unroll; weights stay in VMEM
        na = norm_ab_ref[l]                # [6, D] -> a1,b1,a2,b2,a3,b3

        # ---- self attention (pre-norm, residual) ----
        x2 = _norm(x, na[0:1], na[1:2])
        qkv = jnp.dot(x2, w_qkv_s_ref[l],
                      preferred_element_type=jnp.float32) + b_qkv_s_ref[l]
        q, k, v = qkv[:, 0:D], qkv[:, D:2 * D], qkv[:, 2 * D:3 * D]
        ctx = _attention(q, k, v, trg_bias, B, S, S)
        x = x + jnp.dot(ctx, w_o_s_ref[l],
                        preferred_element_type=jnp.float32) + b_o_s_ref[l]

        # ---- cross attention ----
        x2 = _norm(x, na[2:3], na[3:4])
        qc = jnp.dot(x2, w_q_c_ref[l],
                     preferred_element_type=jnp.float32) + b_q_c_ref[l]
        kv = jnp.dot(enc, w_kv_c_ref[l],
                     preferred_element_type=jnp.float32) + b_kv_c_ref[l]
        kc, vc = kv[:, 0:D], kv[:, D:2 * D]
        ctx = _attention(qc, kc, vc, src_bias, B, S, Ssrc)
        x = x + jnp.dot(ctx, w_o_c_ref[l],
                        preferred_element_type=jnp.float32) + b_o_c_ref[l]

        # ---- feed forward (ReLU) ----
        x2 = _norm(x, na[4:5], na[5:6])
        h = jnp.maximum(jnp.dot(x2, ff_w1_ref[l],
                                preferred_element_type=jnp.float32) + ff_b1_ref[l], 0.0)
        x = x + jnp.dot(h, ff_w2_ref[l],
                        preferred_element_type=jnp.float32) + ff_b2_ref[l]

    # --- final Norm; single store of the whole [B*S, D] result ---
    fab = final_ab_ref[...]
    out_ref[...] = _norm(x, fab[0:1], fab[1:2])


# -------------------------------- wrapper -----------------------------------
def decoder_forward(params, trg, encoder_outputs, src_mask, trg_mask):
    B, S = trg.shape
    Ssrc = encoder_outputs.shape[1]
    # Embedding lookup stays as plain-JAX glue (tiny gather; everything after it
    # runs inside the single fused kernel).
    emb = jnp.take(params["embed"], trg.reshape(-1), axis=0)       # [B*S, D]
    enc_flat = encoder_outputs.reshape(B * Ssrc, D_MODEL)

    out_flat = pl.pallas_call(
        decoder_fused_kernel,
        out_shape=jax.ShapeDtypeStruct((B * S, D_MODEL), jnp.float32),
        # no grid / specs: every operand is a single whole-array VMEM block
    )(emb.astype(jnp.float32),
      params["pos_table"][:S],
      enc_flat.astype(jnp.float32),
      trg_mask.astype(jnp.float32),
      src_mask.astype(jnp.float32),
      params["norm_ab"],
      params["w_qkv_self"], params["b_qkv_self"],
      params["w_o_self"], params["b_o_self"],
      params["w_q_cross"], params["b_q_cross"],
      params["w_kv_cross"], params["b_kv_cross"],
      params["w_o_cross"], params["b_o_cross"],
      params["ff_w1"], params["ff_b1"],
      params["ff_w2"], params["ff_b2"],
      params["final_norm_ab"])
    return out_flat.reshape(B, S, D_MODEL)


# ------------------------------ param init ----------------------------------
def init_params(key):
    keys = jax.random.split(key, 15)

    def rnd(k, shape, scale):
        return (jax.random.normal(k, shape) * scale).astype(jnp.float32)

    norm_unit = jnp.stack(
        [jnp.ones(D_MODEL, jnp.float32), jnp.zeros(D_MODEL, jnp.float32)] * 3)  # [6, D]

    return dict(
        embed=rnd(keys[0], (VOCAB, D_MODEL), 0.1),
        pos_table=make_pos_embed(MAX_LEN, D_MODEL),
        # norm params per layer: [alpha1, bias1, alpha2, bias2, alpha3, bias3]
        norm_ab=jnp.tile(norm_unit[None], (N_LAYERS, 1, 1)),
        # self-attn Q/K/V fused as (in, 3*out); cross-attn K/V fused as (in, 2*out)
        w_qkv_self=rnd(keys[1], (N_LAYERS, D_MODEL, 3 * D_MODEL), 0.05),
        b_qkv_self=rnd(keys[2], (N_LAYERS, 1, 3 * D_MODEL), 0.01),
        w_o_self=rnd(keys[3], (N_LAYERS, D_MODEL, D_MODEL), 0.05),
        b_o_self=rnd(keys[4], (N_LAYERS, 1, D_MODEL), 0.01),
        w_q_cross=rnd(keys[5], (N_LAYERS, D_MODEL, D_MODEL), 0.05),
        b_q_cross=rnd(keys[6], (N_LAYERS, 1, D_MODEL), 0.01),
        w_kv_cross=rnd(keys[7], (N_LAYERS, D_MODEL, 2 * D_MODEL), 0.05),
        b_kv_cross=rnd(keys[8], (N_LAYERS, 1, 2 * D_MODEL), 0.01),
        w_o_cross=rnd(keys[9], (N_LAYERS, D_MODEL, D_MODEL), 0.05),
        b_o_cross=rnd(keys[10], (N_LAYERS, 1, D_MODEL), 0.01),
        ff_w1=rnd(keys[11], (N_LAYERS, D_MODEL, D_FF), 0.05),
        ff_b1=rnd(keys[12], (N_LAYERS, 1, D_FF), 0.01),
        ff_w2=rnd(keys[13], (N_LAYERS, D_FF, D_MODEL), 0.05),
        ff_b2=rnd(keys[14], (N_LAYERS, 1, D_MODEL), 0.01),
        final_norm_ab=jnp.stack([jnp.ones(D_MODEL, jnp.float32),
                                 jnp.zeros(D_MODEL, jnp.float32)]),
    )


# --------------------------------- main --------------------------------------
if __name__ == "__main__":
    B, S_TRG, S_SRC = 2, 8, 8
    key = jax.random.PRNGKey(0)
    k_trg, k_enc, k_param = jax.random.split(key, 3)

    trg = jax.random.randint(k_trg, (B, S_TRG), 0, VOCAB)                 # token ids
    encoder_outputs = jax.random.normal(k_enc, (B, S_SRC, D_MODEL), jnp.float32)
    src_mask = jnp.ones((B, 1, S_SRC), jnp.float32)                       # all visible
    trg_mask = jnp.broadcast_to(
        jnp.tril(jnp.ones((S_TRG, S_TRG), jnp.float32))[None], (B, S_TRG, S_TRG)
    )                                                                     # causal mask

    params = init_params(k_param)
    out = decoder_forward(params, trg, encoder_outputs, src_mask, trg_mask)
    out = jax.block_until_ready(out)
    assert out.shape == (B, S_TRG, D_MODEL)
    print("KERNEL_OK")
</pallas_src>

<mosaic_0001>
module attributes {stable_mosaic.version = 11 : i64} {
  func.func @decoder_fused_kernel(%arg0: memref<16x32xf32, #tpu.memory_space<vmem>>, %arg1: memref<8x32xf32, #tpu.memory_space<vmem>>, %arg2: memref<16x32xf32, #tpu.memory_space<vmem>>, %arg3: memref<2x8x8xf32, #tpu.memory_space<vmem>>, %arg4: memref<2x1x8xf32, #tpu.memory_space<vmem>>, %arg5: memref<2x6x32xf32, #tpu.memory_space<vmem>>, %arg6: memref<2x32x96xf32, #tpu.memory_space<vmem>>, %arg7: memref<2x1x96xf32, #tpu.memory_space<vmem>>, %arg8: memref<2x32x32xf32, #tpu.memory_space<vmem>>, %arg9: memref<2x1x32xf32, #tpu.memory_space<vmem>>, %arg10: memref<2x32x32xf32, #tpu.memory_space<vmem>>, %arg11: memref<2x1x32xf32, #tpu.memory_space<vmem>>, %arg12: memref<2x32x64xf32, #tpu.memory_space<vmem>>, %arg13: memref<2x1x64xf32, #tpu.memory_space<vmem>>, %arg14: memref<2x32x32xf32, #tpu.memory_space<vmem>>, %arg15: memref<2x1x32xf32, #tpu.memory_space<vmem>>, %arg16: memref<2x32x64xf32, #tpu.memory_space<vmem>>, %arg17: memref<2x1x64xf32, #tpu.memory_space<vmem>>, %arg18: memref<2x64x32xf32, #tpu.memory_space<vmem>>, %arg19: memref<2x1x32xf32, #tpu.memory_space<vmem>>, %arg20: memref<2x32xf32, #tpu.memory_space<vmem>>, %arg21: memref<16x32xf32, #tpu.memory_space<vmem>>) attributes {dimension_semantics = [], scalar_prefetch = 0 : i64, scratch_operands = 0 : i64, tpu.core_type = #tpu.core_type<tc>} {
    %c0 = arith.constant 0 : index
    %c0_0 = arith.constant 0 : index
    %0 = vector.load %arg1[%c0, %c0_0] : memref<8x32xf32, #tpu.memory_space<vmem>>, vector<8x32xf32>
    %c0_1 = arith.constant 0 : index
    %c0_2 = arith.constant 0 : index
    %1 = vector.load %arg0[%c0_1, %c0_2] : memref<16x32xf32, #tpu.memory_space<vmem>>, vector<16x32xf32>
    %cst = arith.constant 5.65685415 : f32
    %2 = vector.broadcast %cst : f32 to vector<16x32xf32>
    %3 = arith.mulf %1, %2 : vector<16x32xf32>
    %4 = tpu.concatenate %0, %0 in 0 : vector<8x32xf32>, vector<8x32xf32> -> vector<16x32xf32>
    %5 = arith.addf %3, %4 : vector<16x32xf32>
    %c0_3 = arith.constant 0 : index
    %c0_4 = arith.constant 0 : index
    %6 = vector.load %arg2[%c0_3, %c0_4] : memref<16x32xf32, #tpu.memory_space<vmem>>, vector<16x32xf32>
    %c0_5 = arith.constant 0 : index
    %c0_6 = arith.constant 0 : index
    %c0_7 = arith.constant 0 : index
    %7 = vector.load %arg3[%c0_5, %c0_6, %c0_7] : memref<2x8x8xf32, #tpu.memory_space<vmem>>, vector<2x8x8xf32>
    %cst_8 = arith.constant 0.000000e+00 : f32
    %8 = vector.broadcast %cst_8 : f32 to vector<2x8x8xf32>
    %9 = arith.cmpf oeq, %7, %8 : vector<2x8x8xf32>
    %cst_9 = arith.constant -1.000000e+09 : f32
    %cst_10 = arith.constant 0.000000e+00 : f32
    %10 = vector.broadcast %cst_9 : f32 to vector<2x8x8xf32>
    %11 = vector.broadcast %cst_10 : f32 to vector<2x8x8xf32>
    %12 = arith.select %9, %10, %11 : vector<2x8x8xi1>, vector<2x8x8xf32>
    %c0_11 = arith.constant 0 : index
    %c0_12 = arith.constant 0 : index
    %c0_13 = arith.constant 0 : index
    %13 = vector.load %arg4[%c0_11, %c0_12, %c0_13] : memref<2x1x8xf32, #tpu.memory_space<vmem>>, vector<2x1x8xf32>
    %cst_14 = arith.constant 0.000000e+00 : f32
    %14 = vector.broadcast %cst_14 : f32 to vector<2x1x8xf32>
    %15 = arith.cmpf oeq, %13, %14 : vector<2x1x8xf32>
    %cst_15 = arith.constant -1.000000e+09 : f32
    %cst_16 = arith.constant 0.000000e+00 : f32
    %16 = vector.broadcast %cst_15 : f32 to vector<2x1x8xf32>
    %17 = vector.broadcast %cst_16 : f32 to vector<2x1x8xf32>
    %18 = arith.select %15, %16, %17 : vector<2x1x8xi1>, vector<2x1x8xf32>
    %c0_17 = arith.constant 0 : index
    %c0_18 = arith.constant 0 : index
    %c0_19 = arith.constant 0 : index
    %19 = vector.load %arg5[%c0_17, %c0_18, %c0_19] : memref<2x6x32xf32, #tpu.memory_space<vmem>>, vector<1x6x32xf32>
    %20 = vector.shape_cast %19 : vector<1x6x32xf32> to vector<6x32xf32>
    %21 = vector.extract_strided_slice %20 {offsets = [0, 0], sizes = [1, 32], strides = [1, 1]} : vector<6x32xf32> to vector<1x32xf32>
    %22 = vector.extract_strided_slice %20 {offsets = [1, 0], sizes = [1, 32], strides = [1, 1]} : vector<6x32xf32> to vector<1x32xf32>
    %cst_20 = arith.constant dense<0.000000e+00> : vector<16xf32>
    %23 = vector.multi_reduction <add>, %5, %cst_20 [1] : vector<16x32xf32> to vector<16xf32>
    %24 = vector.shape_cast %23 : vector<16xf32> to vector<16x1xf32>
    %cst_21 = arith.constant 3.200000e+01 : f32
    %25 = vector.broadcast %cst_21 : f32 to vector<16x1xf32>
    %26 = arith.divf %24, %25 : vector<16x1xf32>
    %27 = vector.broadcast %26 : vector<16x1xf32> to vector<16x32xf32>
    %28 = arith.subf %5, %27 : vector<16x32xf32>
    %29 = arith.mulf %28, %28 : vector<16x32xf32>
    %cst_22 = arith.constant dense<0.000000e+00> : vector<16xf32>
    %30 = vector.multi_reduction <add>, %29, %cst_22 [1] : vector<16x32xf32> to vector<16xf32>
    %31 = vector.shape_cast %30 : vector<16xf32> to vector<16x1xf32>
    %cst_23 = arith.constant 0.0322580636 : f32
    %32 = vector.broadcast %cst_23 : f32 to vector<16x1xf32>
    %33 = arith.mulf %31, %32 : vector<16x1xf32>
    %34 = math.sqrt %33 : vector<16x1xf32>
    %cst_24 = arith.constant 9.99999997E-7 : f32
    %35 = vector.broadcast %cst_24 : f32 to vector<16x1xf32>
    %36 = arith.addf %34, %35 : vector<16x1xf32>
    %37 = tpu.reciprocal %36 {approx = true} : vector<16x1xf32> -> vector<16x1xf32>
    %38 = vector.broadcast %26 : vector<16x1xf32> to vector<16x32xf32>
    %39 = arith.subf %5, %38 : vector<16x32xf32>
    %40 = vector.broadcast %21 : vector<1x32xf32> to vector<16x32xf32>
    %41 = arith.mulf %40, %39 : vector<16x32xf32>
    %42 = vector.broadcast %37 : vector<16x1xf32> to vector<16x32xf32>
    %43 = arith.mulf %41, %42 : vector<16x32xf32>
    %44 = vector.broadcast %22 : vector<1x32xf32> to vector<16x32xf32>
    %45 = arith.addf %43, %44 : vector<16x32xf32>
    %c0_25 = arith.constant 0 : index
    %c0_26 = arith.constant 0 : index
    %c0_27 = arith.constant 0 : index
    %46 = vector.load %arg6[%c0_25, %c0_26, %c0_27] : memref<2x32x96xf32, #tpu.memory_space<vmem>>, vector<1x32x96xf32>
    %47 = vector.shape_cast %46 : vector<1x32x96xf32> to vector<32x96xf32>
    %cst_28 = arith.constant dense<0.000000e+00> : vector<16x96xf32>
    %48 = tpu.matmul %45, %47, %cst_28 {dimension_numbers = #tpu.dot_dimension_numbers<[1], [0], [0], [1], [0, 0, 1, 1], [], []>} : vector<16x32xf32>, vector<32x96xf32>, vector<16x96xf32> -> vector<16x96xf32>
    %c0_29 = arith.constant 0 : index
    %c0_30 = arith.constant 0 : index
    %c0_31 = arith.constant 0 : index
    %49 = vector.load %arg7[%c0_29, %c0_30, %c0_31] : memref<2x1x96xf32, #tpu.memory_space<vmem>>, vector<1x1x96xf32>
    %50 = vector.shape_cast %49 : vector<1x1x96xf32> to vector<1x96xf32>
    %51 = vector.broadcast %50 : vector<1x96xf32> to vector<16x96xf32>
    %52 = arith.addf %48, %51 : vector<16x96xf32>
    %53 = vector.extract_strided_slice %52 {offsets = [0, 0], sizes = [16, 32], strides = [1, 1]} : vector<16x96xf32> to vector<16x32xf32>
    %54 = vector.extract_strided_slice %52 {offsets = [0, 32], sizes = [16, 32], strides = [1, 1]} : vector<16x96xf32> to vector<16x32xf32>
    %55 = vector.extract_strided_slice %52 {offsets = [0, 64], sizes = [16, 32], strides = [1, 1]} : vector<16x96xf32> to vector<16x32xf32>
    %56 = vector.extract_strided_slice %53 {offsets = [0, 0], sizes = [8, 32], strides = [1, 1]} : vector<16x32xf32> to vector<8x32xf32>
    %57 = vector.extract_strided_slice %54 {offsets = [0, 0], sizes = [8, 32], strides = [1, 1]} : vector<16x32xf32> to vector<8x32xf32>
    %58 = vector.extract_strided_slice %55 {offsets = [0, 0], sizes = [8, 32], strides = [1, 1]} : vector<16x32xf32> to vector<8x32xf32>
    %59 = vector.extract_strided_slice %12 {offsets = [0, 0, 0], sizes = [1, 8, 8], strides = [1, 1, 1]} : vector<2x8x8xf32> to vector<1x8x8xf32>
    %60 = vector.shape_cast %59 : vector<1x8x8xf32> to vector<8x8xf32>
    %61 = vector.extract_strided_slice %56 {offsets = [0, 0], sizes = [8, 8], strides = [1, 1]} : vector<8x32xf32> to vector<8x8xf32>
    %62 = vector.extract_strided_slice %57 {offsets = [0, 0], sizes = [8, 8], strides = [1, 1]} : vector<8x32xf32> to vector<8x8xf32>
    %63 = vector.extract_strided_slice %58 {offsets = [0, 0], sizes = [8, 8], strides = [1, 1]} : vector<8x32xf32> to vector<8x8xf32>
    %cst_32 = arith.constant dense<0.000000e+00> : vector<8x8xf32>
    %64 = tpu.matmul %61, %62, %cst_32 {dimension_numbers = #tpu.dot_dimension_numbers<[1], [1], [0], [0], [0, 0, 1, 0], [], []>} : vector<8x8xf32>, vector<8x8xf32>, vector<8x8xf32> -> vector<8x8xf32>
    %cst_33 = arith.constant 0.353553385 : f32
    %65 = vector.broadcast %cst_33 : f32 to vector<8x8xf32>
    %66 = arith.mulf %64, %65 : vector<8x8xf32>
    %67 = arith.addf %66, %60 : vector<8x8xf32>
    %cst_34 = arith.constant dense<0xFF800000> : vector<8xf32>
    %68 = vector.multi_reduction <maximumf>, %67, %cst_34 [1] : vector<8x8xf32> to vector<8xf32>
    %69 = vector.shape_cast %68 : vector<8xf32> to vector<8x1xf32>
    %70 = vector.broadcast %69 : vector<8x1xf32> to vector<8x8xf32>
    %71 = arith.subf %67, %70 : vector<8x8xf32>
    %72 = math.exp %71 : vector<8x8xf32>
    %cst_35 = arith.constant dense<0.000000e+00> : vector<8xf32>
    %73 = vector.multi_reduction <add>, %72, %cst_35 [1] : vector<8x8xf32> to vector<8xf32>
    %74 = vector.shape_cast %73 : vector<8xf32> to vector<8x1xf32>
    %75 = tpu.reciprocal %74 {approx = true} : vector<8x1xf32> -> vector<8x1xf32>
    %76 = vector.broadcast %75 : vector<8x1xf32> to vector<8x8xf32>
    %77 = arith.mulf %72, %76 : vector<8x8xf32>
    %cst_36 = arith.constant dense<0.000000e+00> : vector<8x8xf32>
    %78 = tpu.matmul %77, %63, %cst_36 {dimension_numbers = #tpu.dot_dimension_numbers<[1], [0], [0], [1], [0, 0, 1, 1], [], []>} : vector<8x8xf32>, vector<8x8xf32>, vector<8x8xf32> -> vector<8x8xf32>
    %79 = vector.extract_strided_slice %56 {offsets = [0, 8], sizes = [8, 8], strides = [1, 1]} : vector<8x32xf32> to vector<8x8xf32>
    %80 = vector.extract_strided_slice %57 {offsets = [0, 8], sizes = [8, 8], strides = [1, 1]} : vector<8x32xf32> to vector<8x8xf32>
    %81 = vector.extract_strided_slice %58 {offsets = [0, 8], sizes = [8, 8], strides = [1, 1]} : vector<8x32xf32> to vector<8x8xf32>
    %cst_37 = arith.constant dense<0.000000e+00> : vector<8x8xf32>
    %82 = tpu.matmul %79, %80, %cst_37 {dimension_numbers = #tpu.dot_dimension_numbers<[1], [1], [0], [0], [0, 0, 1, 0], [], []>} : vector<8x8xf32>, vector<8x8xf32>, vector<8x8xf32> -> vector<8x8xf32>
    %cst_38 = arith.constant 0.353553385 : f32
    %83 = vector.broadcast %cst_38 : f32 to vector<8x8xf32>
    %84 = arith.mulf %82, %83 : vector<8x8xf32>
    %85 = arith.addf %84, %60 : vector<8x8xf32>
    %cst_39 = arith.constant dense<0xFF800000> : vector<8xf32>
    %86 = vector.multi_reduction <maximumf>, %85, %cst_39 [1] : vector<8x8xf32> to vector<8xf32>
    %87 = vector.shape_cast %86 : vector<8xf32> to vector<8x1xf32>
    %88 = vector.broadcast %87 : vector<8x1xf32> to vector<8x8xf32>
    %89 = arith.subf %85, %88 : vector<8x8xf32>
    %90 = math.exp %89 : vector<8x8xf32>
    %cst_40 = arith.constant dense<0.000000e+00> : vector<8xf32>
    %91 = vector.multi_reduction <add>, %90, %cst_40 [1] : vector<8x8xf32> to vector<8xf32>
    %92 = vector.shape_cast %91 : vector<8xf32> to vector<8x1xf32>
    %93 = tpu.reciprocal %92 {approx = true} : vector<8x1xf32> -> vector<8x1xf32>
    %94 = vector.broadcast %93 : vector<8x1xf32> to vector<8x8xf32>
    %95 = arith.mulf %90, %94 : vector<8x8xf32>
    %cst_41 = arith.constant dense<0.000000e+00> : vector<8x8xf32>
    %96 = tpu.matmul %95, %81, %cst_41 {dimension_numbers = #tpu.dot_dimension_numbers<[1], [0], [0], [1], [0, 0, 1, 1], [], []>} : vector<8x8xf32>, vector<8x8xf32>, vector<8x8xf32> -> vector<8x8xf32>
    %97 = vector.extract_strided_slice %56 {offsets = [0, 16], sizes = [8, 8], strides = [1, 1]} : vector<8x32xf32> to vector<8x8xf32>
    %98 = vector.extract_strided_slice %57 {offsets = [0, 16], sizes = [8, 8], strides = [1, 1]} : vector<8x32xf32> to vector<8x8xf32>
    %99 = vector.extract_strided_slice %58 {offsets = [0, 16], sizes = [8, 8], strides = [1, 1]} : vector<8x32xf32> to vector<8x8xf32>
    %cst_42 = arith.constant dense<0.000000e+00> : vector<8x8xf32>
    %100 = tpu.matmul %97, %98, %cst_42 {dimension_numbers = #tpu.dot_dimension_numbers<[1], [1], [0], [0], [0, 0, 1, 0], [], []>} : vector<8x8xf32>, vector<8x8xf32>, vector<8x8xf32> -> vector<8x8xf32>
    %cst_43 = arith.constant 0.353553385 : f32
    %101 = vector.broadcast %cst_43 : f32 to vector<8x8xf32>
    %102 = arith.mulf %100, %101 : vector<8x8xf32>
    %103 = arith.addf %102, %60 : vector<8x8xf32>
    %cst_44 = arith.constant dense<0xFF800000> : vector<8xf32>
    %104 = vector.multi_reduction <maximumf>, %103, %cst_44 [1] : vector<8x8xf32> to vector<8xf32>
    %105 = vector.shape_cast %104 : vector<8xf32> to vector<8x1xf32>
    %106 = vector.broadcast %105 : vector<8x1xf32> to vector<8x8xf32>
    %107 = arith.subf %103, %106 : vector<8x8xf32>
    %108 = math.exp %107 : vector<8x8xf32>
    %cst_45 = arith.constant dense<0.000000e+00> : vector<8xf32>
    %109 = vector.multi_reduction <add>, %108, %cst_45 [1] : vector<8x8xf32> to vector<8xf32>
    %110 = vector.shape_cast %109 : vector<8xf32> to vector<8x1xf32>
    %111 = tpu.reciprocal %110 {approx = true} : vector<8x1xf32> -> vector<8x1xf32>
    %112 = vector.broadcast %111 : vector<8x1xf32> to vector<8x8xf32>
    %113 = arith.mulf %108, %112 : vector<8x8xf32>
    %cst_46 = arith.constant dense<0.000000e+00> : vector<8x8xf32>
    %114 = tpu.matmul %113, %99, %cst_46 {dimension_numbers = #tpu.dot_dimension_numbers<[1], [0], [0], [1], [0, 0, 1, 1], [], []>} : vector<8x8xf32>, vector<8x8xf32>, vector<8x8xf32> -> vector<8x8xf32>
    %115 = vector.extract_strided_slice %56 {offsets = [0, 24], sizes = [8, 8], strides = [1, 1]} : vector<8x32xf32> to vector<8x8xf32>
    %116 = vector.extract_strided_slice %57 {offsets = [0, 24], sizes = [8, 8], strides = [1, 1]} : vector<8x32xf32> to vector<8x8xf32>
    %117 = vector.extract_strided_slice %58 {offsets = [0, 24], sizes = [8, 8], strides = [1, 1]} : vector<8x32xf32> to vector<8x8xf32>
    %cst_47 = arith.constant dense<0.000000e+00> : vector<8x8xf32>
    %118 = tpu.matmul %115, %116, %cst_47 {dimension_numbers = #tpu.dot_dimension_numbers<[1], [1], [0], [0], [0, 0, 1, 0], [], []>} : vector<8x8xf32>, vector<8x8xf32>, vector<8x8xf32> -> vector<8x8xf32>
    %cst_48 = arith.constant 0.353553385 : f32
    %119 = vector.broadcast %cst_48 : f32 to vector<8x8xf32>
    %120 = arith.mulf %118, %119 : vector<8x8xf32>
    %121 = arith.addf %120, %60 : vector<8x8xf32>
    %cst_49 = arith.constant dense<0xFF800000> : vector<8xf32>
    %122 = vector.multi_reduction <maximumf>, %121, %cst_49 [1] : vector<8x8xf32> to vector<8xf32>
    %123 = vector.shape_cast %122 : vector<8xf32> to vector<8x1xf32>
    %124 = vector.broadcast %123 : vector<8x1xf32> to vector<8x8xf32>
    %125 = arith.subf %121, %124 : vector<8x8xf32>
    %126 = math.exp %125 : vector<8x8xf32>
    %cst_50 = arith.constant dense<0.000000e+00> : vector<8xf32>
    %127 = vector.multi_reduction <add>, %126, %cst_50 [1] : vector<8x8xf32> to vector<8xf32>
    %128 = vector.shape_cast %127 : vector<8xf32> to vector<8x1xf32>
    %129 = tpu.reciprocal %128 {approx = true} : vector<8x1xf32> -> vector<8x1xf32>
    %130 = vector.broadcast %129 : vector<8x1xf32> to vector<8x8xf32>
    %131 = arith.mulf %126, %130 : vector<8x8xf32>
    %cst_51 = arith.constant dense<0.000000e+00> : vector<8x8xf32>
    %132 = tpu.matmul %131, %117, %cst_51 {dimension_numbers = #tpu.dot_dimension_numbers<[1], [0], [0], [1], [0, 0, 1, 1], [], []>} : vector<8x8xf32>, vector<8x8xf32>, vector<8x8xf32> -> vector<8x8xf32>
    %133 = tpu.concatenate %78, %96, %114, %132 in 1 : vector<8x8xf32>, vector<8x8xf32>, vector<8x8xf32>, vector<8x8xf32> -> vector<8x32xf32>
    %134 = vector.extract_strided_slice %53 {offsets = [8, 0], sizes = [8, 32], strides = [1, 1]} : vector<16x32xf32> to vector<8x32xf32>
    %135 = vector.extract_strided_slice %54 {offsets = [8, 0], sizes = [8, 32], strides = [1, 1]} : vector<16x32xf32> to vector<8x32xf32>
    %136 = vector.extract_strided_slice %55 {offsets = [8, 0], sizes = [8, 32], strides = [1, 1]} : vector<16x32xf32> to vector<8x32xf32>
    %137 = vector.extract_strided_slice %12 {offsets = [1, 0, 0], sizes = [1, 8, 8], strides = [1, 1, 1]} : vector<2x8x8xf32> to vector<1x8x8xf32>
    %138 = vector.shape_cast %137 : vector<1x8x8xf32> to vector<8x8xf32>
    %139 = vector.extract_strided_slice %134 {offsets = [0, 0], sizes = [8, 8], strides = [1, 1]} : vector<8x32xf32> to vector<8x8xf32>
    %140 = vector.extract_strided_slice %135 {offsets = [0, 0], sizes = [8, 8], strides = [1, 1]} : vector<8x32xf32> to vector<8x8xf32>
    %141 = vector.extract_strided_slice %136 {offsets = [0, 0], sizes = [8, 8], strides = [1, 1]} : vector<8x32xf32> to vector<8x8xf32>
    %cst_52 = arith.constant dense<0.000000e+00> : vector<8x8xf32>
    %142 = tpu.matmul %139, %140, %cst_52 {dimension_numbers = #tpu.dot_dimension_numbers<[1], [1], [0], [0], [0, 0, 1, 0], [], []>} : vector<8x8xf32>, vector<8x8xf32>, vector<8x8xf32> -> vector<8x8xf32>
    %cst_53 = arith.constant 0.353553385 : f32
    %143 = vector.broadcast %cst_53 : f32 to vector<8x8xf32>
    %144 = arith.mulf %142, %143 : vector<8x8xf32>
    %145 = arith.addf %144, %138 : vector<8x8xf32>
    %cst_54 = arith.constant dense<0xFF800000> : vector<8xf32>
    %146 = vector.multi_reduction <maximumf>, %145, %cst_54 [1] : vector<8x8xf32> to vector<8xf32>
    %147 = vector.shape_cast %146 : vector<8xf32> to vector<8x1xf32>
    %148 = vector.broadcast %147 : vector<8x1xf32> to vector<8x8xf32>
    %149 = arith.subf %145, %148 : vector<8x8xf32>
    %150 = math.exp %149 : vector<8x8xf32>
    %cst_55 = arith.constant dense<0.000000e+00> : vector<8xf32>
    %151 = vector.multi_reduction <add>, %150, %cst_55 [1] : vector<8x8xf32> to vector<8xf32>
    %152 = vector.shape_cast %151 : vector<8xf32> to vector<8x1xf32>
    %153 = tpu.reciprocal %152 {approx = true} : vector<8x1xf32> -> vector<8x1xf32>
    %154 = vector.broadcast %153 : vector<8x1xf32> to vector<8x8xf32>
    %155 = arith.mulf %150, %154 : vector<8x8xf32>
    %cst_56 = arith.constant dense<0.000000e+00> : vector<8x8xf32>
    %156 = tpu.matmul %155, %141, %cst_56 {dimension_numbers = #tpu.dot_dimension_numbers<[1], [0], [0], [1], [0, 0, 1, 1], [], []>} : vector<8x8xf32>, vector<8x8xf32>, vector<8x8xf32> -> vector<8x8xf32>
    %157 = vector.extract_strided_slice %134 {offsets = [0, 8], sizes = [8, 8], strides = [1, 1]} : vector<8x32xf32> to vector<8x8xf32>
    %158 = vector.extract_strided_slice %135 {offsets = [0, 8], sizes = [8, 8], strides = [1, 1]} : vector<8x32xf32> to vector<8x8xf32>
    %159 = vector.extract_strided_slice %136 {offsets = [0, 8], sizes = [8, 8], strides = [1, 1]} : vector<8x32xf32> to vector<8x8xf32>
    %cst_57 = arith.constant dense<0.000000e+00> : vector<8x8xf32>
    %160 = tpu.matmul %157, %158, %cst_57 {dimension_numbers = #tpu.dot_dimension_numbers<[1], [1], [0], [0], [0, 0, 1, 0], [], []>} : vector<8x8xf32>, vector<8x8xf32>, vector<8x8xf32> -> vector<8x8xf32>
    %cst_58 = arith.constant 0.353553385 : f32
    %161 = vector.broadcast %cst_58 : f32 to vector<8x8xf32>
    %162 = arith.mulf %160, %161 : vector<8x8xf32>
    %163 = arith.addf %162, %138 : vector<8x8xf32>
    %cst_59 = arith.constant dense<0xFF800000> : vector<8xf32>
    %164 = vector.multi_reduction <maximumf>, %163, %cst_59 [1] : vector<8x8xf32> to vector<8xf32>
    %165 = vector.shape_cast %164 : vector<8xf32> to vector<8x1xf32>
    %166 = vector.broadcast %165 : vector<8x1xf32> to vector<8x8xf32>
    %167 = arith.subf %163, %166 : vector<8x8xf32>
    %168 = math.exp %167 : vector<8x8xf32>
    %cst_60 = arith.constant dense<0.000000e+00> : vector<8xf32>
    %169 = vector.multi_reduction <add>, %168, %cst_60 [1] : vector<8x8xf32> to vector<8xf32>
    %170 = vector.shape_cast %169 : vector<8xf32> to vector<8x1xf32>
    %171 = tpu.reciprocal %170 {approx = true} : vector<8x1xf32> -> vector<8x1xf32>
    %172 = vector.broadcast %171 : vector<8x1xf32> to vector<8x8xf32>
    %173 = arith.mulf %168, %172 : vector<8x8xf32>
    %cst_61 = arith.constant dense<0.000000e+00> : vector<8x8xf32>
    %174 = tpu.matmul %173, %159, %cst_61 {dimension_numbers = #tpu.dot_dimension_numbers<[1], [0], [0], [1], [0, 0, 1, 1], [], []>} : vector<8x8xf32>, vector<8x8xf32>, vector<8x8xf32> -> vector<8x8xf32>
    %175 = vector.extract_strided_slice %134 {offsets = [0, 16], sizes = [8, 8], strides = [1, 1]} : vector<8x32xf32> to vector<8x8xf32>
    %176 = vector.extract_strided_slice %135 {offsets = [0, 16], sizes = [8, 8], strides = [1, 1]} : vector<8x32xf32> to vector<8x8xf32>
    %177 = vector.extract_strided_slice %136 {offsets = [0, 16], sizes = [8, 8], strides = [1, 1]} : vector<8x32xf32> to vector<8x8xf32>
    %cst_62 = arith.constant dense<0.000000e+00> : vector<8x8xf32>
    %178 = tpu.matmul %175, %176, %cst_62 {dimension_numbers = #tpu.dot_dimension_numbers<[1], [1], [0], [0], [0, 0, 1, 0], [], []>} : vector<8x8xf32>, vector<8x8xf32>, vector<8x8xf32> -> vector<8x8xf32>
    %cst_63 = arith.constant 0.353553385 : f32
    %179 = vector.broadcast %cst_63 : f32 to vector<8x8xf32>
    %180 = arith.mulf %178, %179 : vector<8x8xf32>
    %181 = arith.addf %180, %138 : vector<8x8xf32>
    %cst_64 = arith.constant dense<0xFF800000> : vector<8xf32>
    %182 = vector.multi_reduction <maximumf>, %181, %cst_64 [1] : vector<8x8xf32> to vector<8xf32>
    %183 = vector.shape_cast %182 : vector<8xf32> to vector<8x1xf32>
    %184 = vector.broadcast %183 : vector<8x1xf32> to vector<8x8xf32>
    %185 = arith.subf %181, %184 : vector<8x8xf32>
    %186 = math.exp %185 : vector<8x8xf32>
    %cst_65 = arith.constant dense<0.000000e+00> : vector<8xf32>
    %187 = vector.multi_reduction <add>, %186, %cst_65 [1] : vector<8x8xf32> to vector<8xf32>
    %188 = vector.shape_cast %187 : vector<8xf32> to vector<8x1xf32>
    %189 = tpu.reciprocal %188 {approx = true} : vector<8x1xf32> -> vector<8x1xf32>
    %190 = vector.broadcast %189 : vector<8x1xf32> to vector<8x8xf32>
    %191 = arith.mulf %186, %190 : vector<8x8xf32>
    %cst_66 = arith.constant dense<0.000000e+00> : vector<8x8xf32>
    %192 = tpu.matmul %191, %177, %cst_66 {dimension_numbers = #tpu.dot_dimension_numbers<[1], [0], [0], [1], [0, 0, 1, 1], [], []>} : vector<8x8xf32>, vector<8x8xf32>, vector<8x8xf32> -> vector<8x8xf32>
    %193 = vector.extract_strided_slice %134 {offsets = [0, 24], sizes = [8, 8], strides = [1, 1]} : vector<8x32xf32> to vector<8x8xf32>
    %194 = vector.extract_strided_slice %135 {offsets = [0, 24], sizes = [8, 8], strides = [1, 1]} : vector<8x32xf32> to vector<8x8xf32>
    %195 = vector.extract_strided_slice %136 {offsets = [0, 24], sizes = [8, 8], strides = [1, 1]} : vector<8x32xf32> to vector<8x8xf32>
    %cst_67 = arith.constant dense<0.000000e+00> : vector<8x8xf32>
    %196 = tpu.matmul %193, %194, %cst_67 {dimension_numbers = #tpu.dot_dimension_numbers<[1], [1], [0], [0], [0, 0, 1, 0], [], []>} : vector<8x8xf32>, vector<8x8xf32>, vector<8x8xf32> -> vector<8x8xf32>
    %cst_68 = arith.constant 0.353553385 : f32
    %197 = vector.broadcast %cst_68 : f32 to vector<8x8xf32>
    %198 = arith.mulf %196, %197 : vector<8x8xf32>
    %199 = arith.addf %198, %138 : vector<8x8xf32>
    %cst_69 = arith.constant dense<0xFF800000> : vector<8xf32>
    %200 = vector.multi_reduction <maximumf>, %199, %cst_69 [1] : vector<8x8xf32> to vector<8xf32>
    %201 = vector.shape_cast %200 : vector<8xf32> to vector<8x1xf32>
    %202 = vector.broadcast %201 : vector<8x1xf32> to vector<8x8xf32>
    %203 = arith.subf %199, %202 : vector<8x8xf32>
    %204 = math.exp %203 : vector<8x8xf32>
    %cst_70 = arith.constant dense<0.000000e+00> : vector<8xf32>
    %205 = vector.multi_reduction <add>, %204, %cst_70 [1] : vector<8x8xf32> to vector<8xf32>
    %206 = vector.shape_cast %205 : vector<8xf32> to vector<8x1xf32>
    %207 = tpu.reciprocal %206 {approx = true} : vector<8x1xf32> -> vector<8x1xf32>
    %208 = vector.broadcast %207 : vector<8x1xf32> to vector<8x8xf32>
    %209 = arith.mulf %204, %208 : vector<8x8xf32>
    %cst_71 = arith.constant dense<0.000000e+00> : vector<8x8xf32>
    %210 = tpu.matmul %209, %195, %cst_71 {dimension_numbers = #tpu.dot_dimension_numbers<[1], [0], [0], [1], [0, 0, 1, 1], [], []>} : vector<8x8xf32>, vector<8x8xf32>, vector<8x8xf32> -> vector<8x8xf32>
    %211 = tpu.concatenate %156, %174, %192, %210 in 1 : vector<8x8xf32>, vector<8x8xf32>, vector<8x8xf32>, vector<8x8xf32> -> vector<8x32xf32>
    %212 = tpu.concatenate %133, %211 in 0 : vector<8x32xf32>, vector<8x32xf32> -> vector<16x32xf32>
    %c0_72 = arith.constant 0 : index
    %c0_73 = arith.constant 0 : index
    %c0_74 = arith.constant 0 : index
    %213 = vector.load %arg8[%c0_72, %c0_73, %c0_74] : memref<2x32x32xf32, #tpu.memory_space<vmem>>, vector<1x32x32xf32>
    %214 = vector.shape_cast %213 : vector<1x32x32xf32> to vector<32x32xf32>
    %cst_75 = arith.constant dense<0.000000e+00> : vector<16x32xf32>
    %215 = tpu.matmul %212, %214, %cst_75 {dimension_numbers = #tpu.dot_dimension_numbers<[1], [0], [0], [1], [0, 0, 1, 1], [], []>} : vector<16x32xf32>, vector<32x32xf32>, vector<16x32xf32> -> vector<16x32xf32>
    %216 = arith.addf %5, %215 : vector<16x32xf32>
    %c0_76 = arith.constant 0 : index
    %c0_77 = arith.constant 0 : index
    %c0_78 = arith.constant 0 : index
    %217 = vector.load %arg9[%c0_76, %c0_77, %c0_78] : memref<2x1x32xf32, #tpu.memory_space<vmem>>, vector<1x1x32xf32>
    %218 = vector.shape_cast %217 : vector<1x1x32xf32> to vector<1x32xf32>
    %219 = vector.broadcast %218 : vector<1x32xf32> to vector<16x32xf32>
    %220 = arith.addf %216, %219 : vector<16x32xf32>
    %221 = vector.extract_strided_slice %20 {offsets = [2, 0], sizes = [1, 32], strides = [1, 1]} : vector<6x32xf32> to vector<1x32xf32>
    %222 = vector.extract_strided_slice %20 {offsets = [3, 0], sizes = [1, 32], strides = [1, 1]} : vector<6x32xf32> to vector<1x32xf32>
    %cst_79 = arith.constant dense<0.000000e+00> : vector<16xf32>
    %223 = vector.multi_reduction <add>, %220, %cst_79 [1] : vector<16x32xf32> to vector<16xf32>
    %224 = vector.shape_cast %223 : vector<16xf32> to vector<16x1xf32>
    %cst_80 = arith.constant 3.200000e+01 : f32
    %225 = vector.broadcast %cst_80 : f32 to vector<16x1xf32>
    %226 = arith.divf %224, %225 : vector<16x1xf32>
    %227 = vector.broadcast %226 : vector<16x1xf32> to vector<16x32xf32>
    %228 = arith.subf %220, %227 : vector<16x32xf32>
    %229 = arith.mulf %228, %228 : vector<16x32xf32>
    %cst_81 = arith.constant dense<0.000000e+00> : vector<16xf32>
    %230 = vector.multi_reduction <add>, %229, %cst_81 [1] : vector<16x32xf32> to vector<16xf32>
    %231 = vector.shape_cast %230 : vector<16xf32> to vector<16x1xf32>
    %cst_82 = arith.constant 0.0322580636 : f32
    %232 = vector.broadcast %cst_82 : f32 to vector<16x1xf32>
    %233 = arith.mulf %231, %232 : vector<16x1xf32>
    %234 = math.sqrt %233 : vector<16x1xf32>
    %cst_83 = arith.constant 9.99999997E-7 : f32
    %235 = vector.broadcast %cst_83 : f32 to vector<16x1xf32>
    %236 = arith.addf %234, %235 : vector<16x1xf32>
    %237 = tpu.reciprocal %236 {approx = true} : vector<16x1xf32> -> vector<16x1xf32>
    %238 = vector.broadcast %226 : vector<16x1xf32> to vector<16x32xf32>
    %239 = arith.subf %220, %238 : vector<16x32xf32>
    %240 = vector.broadcast %221 : vector<1x32xf32> to vector<16x32xf32>
    %241 = arith.mulf %240, %239 : vector<16x32xf32>
    %242 = vector.broadcast %237 : vector<16x1xf32> to vector<16x32xf32>
    %243 = arith.mulf %241, %242 : vector<16x32xf32>
    %244 = vector.broadcast %222 : vector<1x32xf32> to vector<16x32xf32>
    %245 = arith.addf %243, %244 : vector<16x32xf32>
    %c0_84 = arith.constant 0 : index
    %c0_85 = arith.constant 0 : index
    %c0_86 = arith.constant 0 : index
    %246 = vector.load %arg10[%c0_84, %c0_85, %c0_86] : memref<2x32x32xf32, #tpu.memory_space<vmem>>, vector<1x32x32xf32>
    %247 = vector.shape_cast %246 : vector<1x32x32xf32> to vector<32x32xf32>
    %cst_87 = arith.constant dense<0.000000e+00> : vector<16x32xf32>
    %248 = tpu.matmul %245, %247, %cst_87 {dimension_numbers = #tpu.dot_dimension_numbers<[1], [0], [0], [1], [0, 0, 1, 1], [], []>} : vector<16x32xf32>, vector<32x32xf32>, vector<16x32xf32> -> vector<16x32xf32>
    %c0_88 = arith.constant 0 : index
    %c0_89 = arith.constant 0 : index
    %c0_90 = arith.constant 0 : index
    %249 = vector.load %arg11[%c0_88, %c0_89, %c0_90] : memref<2x1x32xf32, #tpu.memory_space<vmem>>, vector<1x1x32xf32>
    %250 = vector.shape_cast %249 : vector<1x1x32xf32> to vector<1x32xf32>
    %251 = vector.broadcast %250 : vector<1x32xf32> to vector<16x32xf32>
    %252 = arith.addf %248, %251 : vector<16x32xf32>
    %c0_91 = arith.constant 0 : index
    %c0_92 = arith.constant 0 : index
    %c0_93 = arith.constant 0 : index
    %253 = vector.load %arg12[%c0_91, %c0_92, %c0_93] : memref<2x32x64xf32, #tpu.memory_space<vmem>>, vector<1x32x64xf32>
    %254 = vector.shape_cast %253 : vector<1x32x64xf32> to vector<32x64xf32>
    %cst_94 = arith.constant dense<0.000000e+00> : vector<16x64xf32>
    %255 = tpu.matmul %6, %254, %cst_94 {dimension_numbers = #tpu.dot_dimension_numbers<[1], [0], [0], [1], [0, 0, 1, 1], [], []>} : vector<16x32xf32>, vector<32x64xf32>, vector<16x64xf32> -> vector<16x64xf32>
    %c0_95 = arith.constant 0 : index
    %c0_96 = arith.constant 0 : index
    %c0_97 = arith.constant 0 : index
    %256 = vector.load %arg13[%c0_95, %c0_96, %c0_97] : memref<2x1x64xf32, #tpu.memory_space<vmem>>, vector<1x1x64xf32>
    %257 = vector.shape_cast %256 : vector<1x1x64xf32> to vector<1x64xf32>
    %258 = vector.broadcast %257 : vector<1x64xf32> to vector<16x64xf32>
    %259 = arith.addf %255, %258 : vector<16x64xf32>
    %260 = vector.extract_strided_slice %259 {offsets = [0, 0], sizes = [16, 32], strides = [1, 1]} : vector<16x64xf32> to vector<16x32xf32>
    %261 = vector.extract_strided_slice %259 {offsets = [0, 32], sizes = [16, 32], strides = [1, 1]} : vector<16x64xf32> to vector<16x32xf32>
    %262 = vector.extract_strided_slice %252 {offsets = [0, 0], sizes = [8, 32], strides = [1, 1]} : vector<16x32xf32> to vector<8x32xf32>
    %263 = vector.extract_strided_slice %260 {offsets = [0, 0], sizes = [8, 32], strides = [1, 1]} : vector<16x32xf32> to vector<8x32xf32>
    %264 = vector.extract_strided_slice %261 {offsets = [0, 0], sizes = [8, 32], strides = [1, 1]} : vector<16x32xf32> to vector<8x32xf32>
    %265 = vector.extract_strided_slice %18 {offsets = [0, 0, 0], sizes = [1, 1, 8], strides = [1, 1, 1]} : vector<2x1x8xf32> to vector<1x1x8xf32>
    %266 = vector.shape_cast %265 : vector<1x1x8xf32> to vector<1x8xf32>
    %267 = vector.extract_strided_slice %262 {offsets = [0, 0], sizes = [8, 8], strides = [1, 1]} : vector<8x32xf32> to vector<8x8xf32>
    %268 = vector.extract_strided_slice %263 {offsets = [0, 0], sizes = [8, 8], strides = [1, 1]} : vector<8x32xf32> to vector<8x8xf32>
    %269 = vector.extract_strided_slice %264 {offsets = [0, 0], sizes = [8, 8], strides = [1, 1]} : vector<8x32xf32> to vector<8x8xf32>
    %cst_98 = arith.constant dense<0.000000e+00> : vector<8x8xf32>
    %270 = tpu.matmul %267, %268, %cst_98 {dimension_numbers = #tpu.dot_dimension_numbers<[1], [1], [0], [0], [0, 0, 1, 0], [], []>} : vector<8x8xf32>, vector<8x8xf32>, vector<8x8xf32> -> vector<8x8xf32>
    %cst_99 = arith.constant 0.353553385 : f32
    %271 = vector.broadcast %cst_99 : f32 to vector<8x8xf32>
    %272 = arith.mulf %270, %271 : vector<8x8xf32>
    %273 = vector.broadcast %266 : vector<1x8xf32> to vector<8x8xf32>
    %274 = arith.addf %272, %273 : vector<8x8xf32>
    %cst_100 = arith.constant dense<0xFF800000> : vector<8xf32>
    %275 = vector.multi_reduction <maximumf>, %274, %cst_100 [1] : vector<8x8xf32> to vector<8xf32>
    %276 = vector.shape_cast %275 : vector<8xf32> to vector<8x1xf32>
    %277 = vector.broadcast %276 : vector<8x1xf32> to vector<8x8xf32>
    %278 = arith.subf %274, %277 : vector<8x8xf32>
    %279 = math.exp %278 : vector<8x8xf32>
    %cst_101 = arith.constant dense<0.000000e+00> : vector<8xf32>
    %280 = vector.multi_reduction <add>, %279, %cst_101 [1] : vector<8x8xf32> to vector<8xf32>
    %281 = vector.shape_cast %280 : vector<8xf32> to vector<8x1xf32>
    %282 = tpu.reciprocal %281 {approx = true} : vector<8x1xf32> -> vector<8x1xf32>
    %283 = vector.broadcast %282 : vector<8x1xf32> to vector<8x8xf32>
    %284 = arith.mulf %279, %283 : vector<8x8xf32>
    %cst_102 = arith.constant dense<0.000000e+00> : vector<8x8xf32>
    %285 = tpu.matmul %284, %269, %cst_102 {dimension_numbers = #tpu.dot_dimension_numbers<[1], [0], [0], [1], [0, 0, 1, 1], [], []>} : vector<8x8xf32>, vector<8x8xf32>, vector<8x8xf32> -> vector<8x8xf32>
    %286 = vector.extract_strided_slice %262 {offsets = [0, 8], sizes = [8, 8], strides = [1, 1]} : vector<8x32xf32> to vector<8x8xf32>
    %287 = vector.extract_strided_slice %263 {offsets = [0, 8], sizes = [8, 8], strides = [1, 1]} : vector<8x32xf32> to vector<8x8xf32>
    %288 = vector.extract_strided_slice %264 {offsets = [0, 8], sizes = [8, 8], strides = [1, 1]} : vector<8x32xf32> to vector<8x8xf32>
    %cst_103 = arith.constant dense<0.000000e+00> : vector<8x8xf32>
    %289 = tpu.matmul %286, %287, %cst_103 {dimension_numbers = #tpu.dot_dimension_numbers<[1], [1], [0], [0], [0, 0, 1, 0], [], []>} : vector<8x8xf32>, vector<8x8xf32>, vector<8x8xf32> -> vector<8x8xf32>
    %cst_104 = arith.constant 0.353553385 : f32
    %290 = vector.broadcast %cst_104 : f32 to vector<8x8xf32>
    %291 = arith.mulf %289, %290 : vector<8x8xf32>
    %292 = vector.broadcast %266 : vector<1x8xf32> to vector<8x8xf32>
    %293 = arith.addf %291, %292 : vector<8x8xf32>
    %cst_105 = arith.constant dense<0xFF800000> : vector<8xf32>
    %294 = vector.multi_reduction <maximumf>, %293, %cst_105 [1] : vector<8x8xf32> to vector<8xf32>
    %295 = vector.shape_cast %294 : vector<8xf32> to vector<8x1xf32>
    %296 = vector.broadcast %295 : vector<8x1xf32> to vector<8x8xf32>
    %297 = arith.subf %293, %296 : vector<8x8xf32>
    %298 = math.exp %297 : vector<8x8xf32>
    %cst_106 = arith.constant dense<0.000000e+00> : vector<8xf32>
    %299 = vector.multi_reduction <add>, %298, %cst_106 [1] : vector<8x8xf32> to vector<8xf32>
    %300 = vector.shape_cast %299 : vector<8xf32> to vector<8x1xf32>
    %301 = tpu.reciprocal %300 {approx = true} : vector<8x1xf32> -> vector<8x1xf32>
    %302 = vector.broadcast %301 : vector<8x1xf32> to vector<8x8xf32>
    %303 = arith.mulf %298, %302 : vector<8x8xf32>
    %cst_107 = arith.constant dense<0.000000e+00> : vector<8x8xf32>
    %304 = tpu.matmul %303, %288, %cst_107 {dimension_numbers = #tpu.dot_dimension_numbers<[1], [0], [0], [1], [0, 0, 1, 1], [], []>} : vector<8x8xf32>, vector<8x8xf32>, vector<8x8xf32> -> vector<8x8xf32>
    %305 = vector.extract_strided_slice %262 {offsets = [0, 16], sizes = [8, 8], strides = [1, 1]} : vector<8x32xf32> to vector<8x8xf32>
    %306 = vector.extract_strided_slice %263 {offsets = [0, 16], sizes = [8, 8], strides = [1, 1]} : vector<8x32xf32> to vector<8x8xf32>
    %307 = vector.extract_strided_slice %264 {offsets = [0, 16], sizes = [8, 8], strides = [1, 1]} : vector<8x32xf32> to vector<8x8xf32>
    %cst_108 = arith.constant dense<0.000000e+00> : vector<8x8xf32>
    %308 = tpu.matmul %305, %306, %cst_108 {dimension_numbers = #tpu.dot_dimension_numbers<[1], [1], [0], [0], [0, 0, 1, 0], [], []>} : vector<8x8xf32>, vector<8x8xf32>, vector<8x8xf32> -> vector<8x8xf32>
    %cst_109 = arith.constant 0.353553385 : f32
    %309 = vector.broadcast %cst_109 : f32 to vector<8x8xf32>
    %310 = arith.mulf %308, %309 : vector<8x8xf32>
    %311 = vector.broadcast %266 : vector<1x8xf32> to vector<8x8xf32>
    %312 = arith.addf %310, %311 : vector<8x8xf32>
    %cst_110 = arith.constant dense<0xFF800000> : vector<8xf32>
    %313 = vector.multi_reduction <maximumf>, %312, %cst_110 [1] : vector<8x8xf32> to vector<8xf32>
    %314 = vector.shape_cast %313 : vector<8xf32> to vector<8x1xf32>
    %315 = vector.broadcast %314 : vector<8x1xf32> to vector<8x8xf32>
    %316 = arith.subf %312, %315 : vector<8x8xf32>
    %317 = math.exp %316 : vector<8x8xf32>
    %cst_111 = arith.constant dense<0.000000e+00> : vector<8xf32>
    %318 = vector.multi_reduction <add>, %317, %cst_111 [1] : vector<8x8xf32> to vector<8xf32>
    %319 = vector.shape_cast %318 : vector<8xf32> to vector<8x1xf32>
    %320 = tpu.reciprocal %319 {approx = true} : vector<8x1xf32> -> vector<8x1xf32>
    %321 = vector.broadcast %320 : vector<8x1xf32> to vector<8x8xf32>
    %322 = arith.mulf %317, %321 : vector<8x8xf32>
    %cst_112 = arith.constant dense<0.000000e+00> : vector<8x8xf32>
    %323 = tpu.matmul %322, %307, %cst_112 {dimension_numbers = #tpu.dot_dimension_numbers<[1], [0], [0], [1], [0, 0, 1, 1], [], []>} : vector<8x8xf32>, vector<8x8xf32>, vector<8x8xf32> -> vector<8x8xf32>
    %324 = vector.extract_strided_slice %262 {offsets = [0, 24], sizes = [8, 8], strides = [1, 1]} : vector<8x32xf32> to vector<8x8xf32>
    %325 = vector.extract_strided_slice %263 {offsets = [0, 24], sizes = [8, 8], strides = [1, 1]} : vector<8x32xf32> to vector<8x8xf32>
    %326 = vector.extract_strided_slice %264 {offsets = [0, 24], sizes = [8, 8], strides = [1, 1]} : vector<8x32xf32> to vector<8x8xf32>
    %cst_113 = arith.constant dense<0.000000e+00> : vector<8x8xf32>
    %327 = tpu.matmul %324, %325, %cst_113 {dimension_numbers = #tpu.dot_dimension_numbers<[1], [1], [0], [0], [0, 0, 1, 0], [], []>} : vector<8x8xf32>, vector<8x8xf32>, vector<8x8xf32> -> vector<8x8xf32>
    %cst_114 = arith.constant 0.353553385 : f32
    %328 = vector.broadcast %cst_114 : f32 to vector<8x8xf32>
    %329 = arith.mulf %327, %328 : vector<8x8xf32>
    %330 = vector.broadcast %266 : vector<1x8xf32> to vector<8x8xf32>
    %331 = arith.addf %329, %330 : vector<8x8xf32>
    %cst_115 = arith.constant dense<0xFF800000> : vector<8xf32>
    %332 = vector.multi_reduction <maximumf>, %331, %cst_115 [1] : vector<8x8xf32> to vector<8xf32>
    %333 = vector.shape_cast %332 : vector<8xf32> to vector<8x1xf32>
    %334 = vector.broadcast %333 : vector<8x1xf32> to vector<8x8xf32>
    %335 = arith.subf %331, %334 : vector<8x8xf32>
    %336 = math.exp %335 : vector<8x8xf32>
    %cst_116 = arith.constant dense<0.000000e+00> : vector<8xf32>
    %337 = vector.multi_reduction <add>, %336, %cst_116 [1] : vector<8x8xf32> to vector<8xf32>
    %338 = vector.shape_cast %337 : vector<8xf32> to vector<8x1xf32>
    %339 = tpu.reciprocal %338 {approx = true} : vector<8x1xf32> -> vector<8x1xf32>
    %340 = vector.broadcast %339 : vector<8x1xf32> to vector<8x8xf32>
    %341 = arith.mulf %336, %340 : vector<8x8xf32>
    %cst_117 = arith.constant dense<0.000000e+00> : vector<8x8xf32>
    %342 = tpu.matmul %341, %326, %cst_117 {dimension_numbers = #tpu.dot_dimension_numbers<[1], [0], [0], [1], [0, 0, 1, 1], [], []>} : vector<8x8xf32>, vector<8x8xf32>, vector<8x8xf32> -> vector<8x8xf32>
    %343 = tpu.concatenate %285, %304, %323, %342 in 1 : vector<8x8xf32>, vector<8x8xf32>, vector<8x8xf32>, vector<8x8xf32> -> vector<8x32xf32>
    %344 = vector.extract_strided_slice %252 {offsets = [8, 0], sizes = [8, 32], strides = [1, 1]} : vector<16x32xf32> to vector<8x32xf32>
    %345 = vector.extract_strided_slice %260 {offsets = [8, 0], sizes = [8, 32], strides = [1, 1]} : vector<16x32xf32> to vector<8x32xf32>
    %346 = vector.extract_strided_slice %261 {offsets = [8, 0], sizes = [8, 32], strides = [1, 1]} : vector<16x32xf32> to vector<8x32xf32>
    %347 = vector.extract_strided_slice %18 {offsets = [1, 0, 0], sizes = [1, 1, 8], strides = [1, 1, 1]} : vector<2x1x8xf32> to vector<1x1x8xf32>
    %348 = vector.shape_cast %347 : vector<1x1x8xf32> to vector<1x8xf32>
    %349 = vector.extract_strided_slice %344 {offsets = [0, 0], sizes = [8, 8], strides = [1, 1]} : vector<8x32xf32> to vector<8x8xf32>
    %350 = vector.extract_strided_slice %345 {offsets = [0, 0], sizes = [8, 8], strides = [1, 1]} : vector<8x32xf32> to vector<8x8xf32>
    %351 = vector.extract_strided_slice %346 {offsets = [0, 0], sizes = [8, 8], strides = [1, 1]} : vector<8x32xf32> to vector<8x8xf32>
    %cst_118 = arith.constant dense<0.000000e+00> : vector<8x8xf32>
    %352 = tpu.matmul %349, %350, %cst_118 {dimension_numbers = #tpu.dot_dimension_numbers<[1], [1], [0], [0], [0, 0, 1, 0], [], []>} : vector<8x8xf32>, vector<8x8xf32>, vector<8x8xf32> -> vector<8x8xf32>
    %cst_119 = arith.constant 0.353553385 : f32
    %353 = vector.broadcast %cst_119 : f32 to vector<8x8xf32>
    %354 = arith.mulf %352, %353 : vector<8x8xf32>
    %355 = vector.broadcast %348 : vector<1x8xf32> to vector<8x8xf32>
    %356 = arith.addf %354, %355 : vector<8x8xf32>
    %cst_120 = arith.constant dense<0xFF800000> : vector<8xf32>
    %357 = vector.multi_reduction <maximumf>, %356, %cst_120 [1] : vector<8x8xf32> to vector<8xf32>
    %358 = vector.shape_cast %357 : vector<8xf32> to vector<8x1xf32>
    %359 = vector.broadcast %358 : vector<8x1xf32> to vector<8x8xf32>
    %360 = arith.subf %356, %359 : vector<8x8xf32>
    %361 = math.exp %360 : vector<8x8xf32>
    %cst_121 = arith.constant dense<0.000000e+00> : vector<8xf32>
    %362 = vector.multi_reduction <add>, %361, %cst_121 [1] : vector<8x8xf32> to vector<8xf32>
    %363 = vector.shape_cast %362 : vector<8xf32> to vector<8x1xf32>
    %364 = tpu.reciprocal %363 {approx = true} : vector<8x1xf32> -> vector<8x1xf32>
    %365 = vector.broadcast %364 : vector<8x1xf32> to vector<8x8xf32>
    %366 = arith.mulf %361, %365 : vector<8x8xf32>
    %cst_122 = arith.constant dense<0.000000e+00> : vector<8x8xf32>
    %367 = tpu.matmul %366, %351, %cst_122 {dimension_numbers = #tpu.dot_dimension_numbers<[1], [0], [0], [1], [0, 0, 1, 1], [], []>} : vector<8x8xf32>, vector<8x8xf32>, vector<8x8xf32> -> vector<8x8xf32>
    %368 = vector.extract_strided_slice %344 {offsets = [0, 8], sizes = [8, 8], strides = [1, 1]} : vector<8x32xf32> to vector<8x8xf32>
    %369 = vector.extract_strided_slice %345 {offsets = [0, 8], sizes = [8, 8], strides = [1, 1]} : vector<8x32xf32> to vector<8x8xf32>
    %370 = vector.extract_strided_slice %346 {offsets = [0, 8], sizes = [8, 8], strides = [1, 1]} : vector<8x32xf32> to vector<8x8xf32>
    %cst_123 = arith.constant dense<0.000000e+00> : vector<8x8xf32>
    %371 = tpu.matmul %368, %369, %cst_123 {dimension_numbers = #tpu.dot_dimension_numbers<[1], [1], [0], [0], [0, 0, 1, 0], [], []>} : vector<8x8xf32>, vector<8x8xf32>, vector<8x8xf32> -> vector<8x8xf32>
    %cst_124 = arith.constant 0.353553385 : f32
    %372 = vector.broadcast %cst_124 : f32 to vector<8x8xf32>
    %373 = arith.mulf %371, %372 : vector<8x8xf32>
    %374 = vector.broadcast %348 : vector<1x8xf32> to vector<8x8xf32>
    %375 = arith.addf %373, %374 : vector<8x8xf32>
    %cst_125 = arith.constant dense<0xFF800000> : vector<8xf32>
    %376 = vector.multi_reduction <maximumf>, %375, %cst_125 [1] : vector<8x8xf32> to vector<8xf32>
    %377 = vector.shape_cast %376 : vector<8xf32> to vector<8x1xf32>
    %378 = vector.broadcast %377 : vector<8x1xf32> to vector<8x8xf32>
    %379 = arith.subf %375, %378 : vector<8x8xf32>
    %380 = math.exp %379 : vector<8x8xf32>
    %cst_126 = arith.constant dense<0.000000e+00> : vector<8xf32>
    %381 = vector.multi_reduction <add>, %380, %cst_126 [1] : vector<8x8xf32> to vector<8xf32>
    %382 = vector.shape_cast %381 : vector<8xf32> to vector<8x1xf32>
    %383 = tpu.reciprocal %382 {approx = true} : vector<8x1xf32> -> vector<8x1xf32>
    %384 = vector.broadcast %383 : vector<8x1xf32> to vector<8x8xf32>
    %385 = arith.mulf %380, %384 : vector<8x8xf32>
    %cst_127 = arith.constant dense<0.000000e+00> : vector<8x8xf32>
    %386 = tpu.matmul %385, %370, %cst_127 {dimension_numbers = #tpu.dot_dimension_numbers<[1], [0], [0], [1], [0, 0, 1, 1], [], []>} : vector<8x8xf32>, vector<8x8xf32>, vector<8x8xf32> -> vector<8x8xf32>
    %387 = vector.extract_strided_slice %344 {offsets = [0, 16], sizes = [8, 8], strides = [1, 1]} : vector<8x32xf32> to vector<8x8xf32>
    %388 = vector.extract_strided_slice %345 {offsets = [0, 16], sizes = [8, 8], strides = [1, 1]} : vector<8x32xf32> to vector<8x8xf32>
    %389 = vector.extract_strided_slice %346 {offsets = [0, 16], sizes = [8, 8], strides = [1, 1]} : vector<8x32xf32> to vector<8x8xf32>
    %cst_128 = arith.constant dense<0.000000e+00> : vector<8x8xf32>
    %390 = tpu.matmul %387, %388, %cst_128 {dimension_numbers = #tpu.dot_dimension_numbers<[1], [1], [0], [0], [0, 0, 1, 0], [], []>} : vector<8x8xf32>, vector<8x8xf32>, vector<8x8xf32> -> vector<8x8xf32>
    %cst_129 = arith.constant 0.353553385 : f32
    %391 = vector.broadcast %cst_129 : f32 to vector<8x8xf32>
    %392 = arith.mulf %390, %391 : vector<8x8xf32>
    %393 = vector.broadcast %348 : vector<1x8xf32> to vector<8x8xf32>
    %394 = arith.addf %392, %393 : vector<8x8xf32>
    %cst_130 = arith.constant dense<0xFF800000> : vector<8xf32>
    %395 = vector.multi_reduction <maximumf>, %394, %cst_130 [1] : vector<8x8xf32> to vector<8xf32>
    %396 = vector.shape_cast %395 : vector<8xf32> to vector<8x1xf32>
    %397 = vector.broadcast %396 : vector<8x1xf32> to vector<8x8xf32>
    %398 = arith.subf %394, %397 : vector<8x8xf32>
    %399 = math.exp %398 : vector<8x8xf32>
    %cst_131 = arith.constant dense<0.000000e+00> : vector<8xf32>
    %400 = vector.multi_reduction <add>, %399, %cst_131 [1] : vector<8x8xf32> to vector<8xf32>
    %401 = vector.shape_cast %400 : vector<8xf32> to vector<8x1xf32>
    %402 = tpu.reciprocal %401 {approx = true} : vector<8x1xf32> -> vector<8x1xf32>
    %403 = vector.broadcast %402 : vector<8x1xf32> to vector<8x8xf32>
    %404 = arith.mulf %399, %403 : vector<8x8xf32>
    %cst_132 = arith.constant dense<0.000000e+00> : vector<8x8xf32>
    %405 = tpu.matmul %404, %389, %cst_132 {dimension_numbers = #tpu.dot_dimension_numbers<[1], [0], [0], [1], [0, 0, 1, 1], [], []>} : vector<8x8xf32>, vector<8x8xf32>, vector<8x8xf32> -> vector<8x8xf32>
    %406 = vector.extract_strided_slice %344 {offsets = [0, 24], sizes = [8, 8], strides = [1, 1]} : vector<8x32xf32> to vector<8x8xf32>
    %407 = vector.extract_strided_slice %345 {offsets = [0, 24], sizes = [8, 8], strides = [1, 1]} : vector<8x32xf32> to vector<8x8xf32>
    %408 = vector.extract_strided_slice %346 {offsets = [0, 24], sizes = [8, 8], strides = [1, 1]} : vector<8x32xf32> to vector<8x8xf32>
    %cst_133 = arith.constant dense<0.000000e+00> : vector<8x8xf32>
    %409 = tpu.matmul %406, %407, %cst_133 {dimension_numbers = #tpu.dot_dimension_numbers<[1], [1], [0], [0], [0, 0, 1, 0], [], []>} : vector<8x8xf32>, vector<8x8xf32>, vector<8x8xf32> -> vector<8x8xf32>
    %cst_134 = arith.constant 0.353553385 : f32
    %410 = vector.broadcast %cst_134 : f32 to vector<8x8xf32>
    %411 = arith.mulf %409, %410 : vector<8x8xf32>
    %412 = vector.broadcast %348 : vector<1x8xf32> to vector<8x8xf32>
    %413 = arith.addf %411, %412 : vector<8x8xf32>
    %cst_135 = arith.constant dense<0xFF800000> : vector<8xf32>
    %414 = vector.multi_reduction <maximumf>, %413, %cst_135 [1] : vector<8x8xf32> to vector<8xf32>
    %415 = vector.shape_cast %414 : vector<8xf32> to vector<8x1xf32>
    %416 = vector.broadcast %415 : vector<8x1xf32> to vector<8x8xf32>
    %417 = arith.subf %413, %416 : vector<8x8xf32>
    %418 = math.exp %417 : vector<8x8xf32>
    %cst_136 = arith.constant dense<0.000000e+00> : vector<8xf32>
    %419 = vector.multi_reduction <add>, %418, %cst_136 [1] : vector<8x8xf32> to vector<8xf32>
    %420 = vector.shape_cast %419 : vector<8xf32> to vector<8x1xf32>
    %421 = tpu.reciprocal %420 {approx = true} : vector<8x1xf32> -> vector<8x1xf32>
    %422 = vector.broadcast %421 : vector<8x1xf32> to vector<8x8xf32>
    %423 = arith.mulf %418, %422 : vector<8x8xf32>
    %cst_137 = arith.constant dense<0.000000e+00> : vector<8x8xf32>
    %424 = tpu.matmul %423, %408, %cst_137 {dimension_numbers = #tpu.dot_dimension_numbers<[1], [0], [0], [1], [0, 0, 1, 1], [], []>} : vector<8x8xf32>, vector<8x8xf32>, vector<8x8xf32> -> vector<8x8xf32>
    %425 = tpu.concatenate %367, %386, %405, %424 in 1 : vector<8x8xf32>, vector<8x8xf32>, vector<8x8xf32>, vector<8x8xf32> -> vector<8x32xf32>
    %426 = tpu.concatenate %343, %425 in 0 : vector<8x32xf32>, vector<8x32xf32> -> vector<16x32xf32>
    %c0_138 = arith.constant 0 : index
    %c0_139 = arith.constant 0 : index
    %c0_140 = arith.constant 0 : index
    %427 = vector.load %arg14[%c0_138, %c0_139, %c0_140] : memref<2x32x32xf32, #tpu.memory_space<vmem>>, vector<1x32x32xf32>
    %428 = vector.shape_cast %427 : vector<1x32x32xf32> to vector<32x32xf32>
    %cst_141 = arith.constant dense<0.000000e+00> : vector<16x32xf32>
    %429 = tpu.matmul %426, %428, %cst_141 {dimension_numbers = #tpu.dot_dimension_numbers<[1], [0], [0], [1], [0, 0, 1, 1], [], []>} : vector<16x32xf32>, vector<32x32xf32>, vector<16x32xf32> -> vector<16x32xf32>
    %430 = arith.addf %220, %429 : vector<16x32xf32>
    %c0_142 = arith.constant 0 : index
    %c0_143 = arith.constant 0 : index
    %c0_144 = arith.constant 0 : index
    %431 = vector.load %arg15[%c0_142, %c0_143, %c0_144] : memref<2x1x32xf32, #tpu.memory_space<vmem>>, vector<1x1x32xf32>
    %432 = vector.shape_cast %431 : vector<1x1x32xf32> to vector<1x32xf32>
    %433 = vector.broadcast %432 : vector<1x32xf32> to vector<16x32xf32>
    %434 = arith.addf %430, %433 : vector<16x32xf32>
    %435 = vector.extract_strided_slice %20 {offsets = [4, 0], sizes = [1, 32], strides = [1, 1]} : vector<6x32xf32> to vector<1x32xf32>
    %436 = vector.extract_strided_slice %20 {offsets = [5, 0], sizes = [1, 32], strides = [1, 1]} : vector<6x32xf32> to vector<1x32xf32>
    %cst_145 = arith.constant dense<0.000000e+00> : vector<16xf32>
    %437 = vector.multi_reduction <add>, %434, %cst_145 [1] : vector<16x32xf32> to vector<16xf32>
    %438 = vector.shape_cast %437 : vector<16xf32> to vector<16x1xf32>
    %cst_146 = arith.constant 3.200000e+01 : f32
    %439 = vector.broadcast %cst_146 : f32 to vector<16x1xf32>
    %440 = arith.divf %438, %439 : vector<16x1xf32>
    %441 = vector.broadcast %440 : vector<16x1xf32> to vector<16x32xf32>
    %442 = arith.subf %434, %441 : vector<16x32xf32>
    %443 = arith.mulf %442, %442 : vector<16x32xf32>
    %cst_147 = arith.constant dense<0.000000e+00> : vector<16xf32>
    %444 = vector.multi_reduction <add>, %443, %cst_147 [1] : vector<16x32xf32> to vector<16xf32>
    %445 = vector.shape_cast %444 : vector<16xf32> to vector<16x1xf32>
    %cst_148 = arith.constant 0.0322580636 : f32
    %446 = vector.broadcast %cst_148 : f32 to vector<16x1xf32>
    %447 = arith.mulf %445, %446 : vector<16x1xf32>
    %448 = math.sqrt %447 : vector<16x1xf32>
    %cst_149 = arith.constant 9.99999997E-7 : f32
    %449 = vector.broadcast %cst_149 : f32 to vector<16x1xf32>
    %450 = arith.addf %448, %449 : vector<16x1xf32>
    %451 = tpu.reciprocal %450 {approx = true} : vector<16x1xf32> -> vector<16x1xf32>
    %452 = vector.broadcast %440 : vector<16x1xf32> to vector<16x32xf32>
    %453 = arith.subf %434, %452 : vector<16x32xf32>
    %454 = vector.broadcast %435 : vector<1x32xf32> to vector<16x32xf32>
    %455 = arith.mulf %454, %453 : vector<16x32xf32>
    %456 = vector.broadcast %451 : vector<16x1xf32> to vector<16x32xf32>
    %457 = arith.mulf %455, %456 : vector<16x32xf32>
    %458 = vector.broadcast %436 : vector<1x32xf32> to vector<16x32xf32>
    %459 = arith.addf %457, %458 : vector<16x32xf32>
    %c0_150 = arith.constant 0 : index
    %c0_151 = arith.constant 0 : index
    %c0_152 = arith.constant 0 : index
    %460 = vector.load %arg16[%c0_150, %c0_151, %c0_152] : memref<2x32x64xf32, #tpu.memory_space<vmem>>, vector<1x32x64xf32>
    %461 = vector.shape_cast %460 : vector<1x32x64xf32> to vector<32x64xf32>
    %cst_153 = arith.constant dense<0.000000e+00> : vector<16x64xf32>
    %462 = tpu.matmul %459, %461, %cst_153 {dimension_numbers = #tpu.dot_dimension_numbers<[1], [0], [0], [1], [0, 0, 1, 1], [], []>} : vector<16x32xf32>, vector<32x64xf32>, vector<16x64xf32> -> vector<16x64xf32>
    %c0_154 = arith.constant 0 : index
    %c0_155 = arith.constant 0 : index
    %c0_156 = arith.constant 0 : index
    %463 = vector.load %arg17[%c0_154, %c0_155, %c0_156] : memref<2x1x64xf32, #tpu.memory_space<vmem>>, vector<1x1x64xf32>
    %464 = vector.shape_cast %463 : vector<1x1x64xf32> to vector<1x64xf32>
    %465 = vector.broadcast %464 : vector<1x64xf32> to vector<16x64xf32>
    %466 = arith.addf %462, %465 : vector<16x64xf32>
    %cst_157 = arith.constant 0.000000e+00 : f32
    %467 = vector.broadcast %cst_157 : f32 to vector<16x64xf32>
    %468 = arith.maximumf %466, %467 : vector<16x64xf32>
    %c0_158 = arith.constant 0 : index
    %c0_159 = arith.constant 0 : index
    %c0_160 = arith.constant 0 : index
    %469 = vector.load %arg18[%c0_158, %c0_159, %c0_160] : memref<2x64x32xf32, #tpu.memory_space<vmem>>, vector<1x64x32xf32>
    %470 = vector.shape_cast %469 : vector<1x64x32xf32> to vector<64x32xf32>
    %cst_161 = arith.constant dense<0.000000e+00> : vector<16x32xf32>
    %471 = tpu.matmul %468, %470, %cst_161 {dimension_numbers = #tpu.dot_dimension_numbers<[1], [0], [0], [1], [0, 0, 1, 1], [], []>} : vector<16x64xf32>, vector<64x32xf32>, vector<16x32xf32> -> vector<16x32xf32>
    %472 = arith.addf %434, %471 : vector<16x32xf32>
    %c0_162 = arith.constant 0 : index
    %c0_163 = arith.constant 0 : index
    %c0_164 = arith.constant 0 : index
    %473 = vector.load %arg19[%c0_162, %c0_163, %c0_164] : memref<2x1x32xf32, #tpu.memory_space<vmem>>, vector<1x1x32xf32>
    %474 = vector.shape_cast %473 : vector<1x1x32xf32> to vector<1x32xf32>
    %475 = vector.broadcast %474 : vector<1x32xf32> to vector<16x32xf32>
    %476 = arith.addf %472, %475 : vector<16x32xf32>
    %c1 = arith.constant 1 : index
    %c0_165 = arith.constant 0 : index
    %c0_166 = arith.constant 0 : index
    %477 = vector.load %arg5[%c1, %c0_165, %c0_166] : memref<2x6x32xf32, #tpu.memory_space<vmem>>, vector<1x6x32xf32>
    %478 = vector.shape_cast %477 : vector<1x6x32xf32> to vector<6x32xf32>
    %479 = vector.extract_strided_slice %478 {offsets = [0, 0], sizes = [1, 32], strides = [1, 1]} : vector<6x32xf32> to vector<1x32xf32>
    %480 = vector.extract_strided_slice %478 {offsets = [1, 0], sizes = [1, 32], strides = [1, 1]} : vector<6x32xf32> to vector<1x32xf32>
    %cst_167 = arith.constant dense<0.000000e+00> : vector<16xf32>
    %481 = vector.multi_reduction <add>, %476, %cst_167 [1] : vector<16x32xf32> to vector<16xf32>
    %482 = vector.shape_cast %481 : vector<16xf32> to vector<16x1xf32>
    %cst_168 = arith.constant 3.200000e+01 : f32
    %483 = vector.broadcast %cst_168 : f32 to vector<16x1xf32>
    %484 = arith.divf %482, %483 : vector<16x1xf32>
    %485 = vector.broadcast %484 : vector<16x1xf32> to vector<16x32xf32>
    %486 = arith.subf %476, %485 : vector<16x32xf32>
    %487 = arith.mulf %486, %486 : vector<16x32xf32>
    %cst_169 = arith.constant dense<0.000000e+00> : vector<16xf32>
    %488 = vector.multi_reduction <add>, %487, %cst_169 [1] : vector<16x32xf32> to vector<16xf32>
    %489 = vector.shape_cast %488 : vector<16xf32> to vector<16x1xf32>
    %cst_170 = arith.constant 0.0322580636 : f32
    %490 = vector.broadcast %cst_170 : f32 to vector<16x1xf32>
    %491 = arith.mulf %489, %490 : vector<16x1xf32>
    %492 = math.sqrt %491 : vector<16x1xf32>
    %cst_171 = arith.constant 9.99999997E-7 : f32
    %493 = vector.broadcast %cst_171 : f32 to vector<16x1xf32>
    %494 = arith.addf %492, %493 : vector<16x1xf32>
    %495 = tpu.reciprocal %494 {approx = true} : vector<16x1xf32> -> vector<16x1xf32>
    %496 = vector.broadcast %484 : vector<16x1xf32> to vector<16x32xf32>
    %497 = arith.subf %476, %496 : vector<16x32xf32>
    %498 = vector.broadcast %479 : vector<1x32xf32> to vector<16x32xf32>
    %499 = arith.mulf %498, %497 : vector<16x32xf32>
    %500 = vector.broadcast %495 : vector<16x1xf32> to vector<16x32xf32>
    %501 = arith.mulf %499, %500 : vector<16x32xf32>
    %502 = vector.broadcast %480 : vector<1x32xf32> to vector<16x32xf32>
    %503 = arith.addf %501, %502 : vector<16x32xf32>
    %c1_172 = arith.constant 1 : index
    %c0_173 = arith.constant 0 : index
    %c0_174 = arith.constant 0 : index
    %504 = vector.load %arg6[%c1_172, %c0_173, %c0_174] : memref<2x32x96xf32, #tpu.memory_space<vmem>>, vector<1x32x96xf32>
    %505 = vector.shape_cast %504 : vector<1x32x96xf32> to vector<32x96xf32>
    %cst_175 = arith.constant dense<0.000000e+00> : vector<16x96xf32>
    %506 = tpu.matmul %503, %505, %cst_175 {dimension_numbers = #tpu.dot_dimension_numbers<[1], [0], [0], [1], [0, 0, 1, 1], [], []>} : vector<16x32xf32>, vector<32x96xf32>, vector<16x96xf32> -> vector<16x96xf32>
    %c1_176 = arith.constant 1 : index
    %c0_177 = arith.constant 0 : index
    %c0_178 = arith.constant 0 : index
    %507 = vector.load %arg7[%c1_176, %c0_177, %c0_178] : memref<2x1x96xf32, #tpu.memory_space<vmem>>, vector<1x1x96xf32>
    %508 = vector.shape_cast %507 : vector<1x1x96xf32> to vector<1x96xf32>
    %509 = vector.broadcast %508 : vector<1x96xf32> to vector<16x96xf32>
    %510 = arith.addf %506, %509 : vector<16x96xf32>
    %511 = vector.extract_strided_slice %510 {offsets = [0, 0], sizes = [16, 32], strides = [1, 1]} : vector<16x96xf32> to vector<16x32xf32>
    %512 = vector.extract_strided_slice %510 {offsets = [0, 32], sizes = [16, 32], strides = [1, 1]} : vector<16x96xf32> to vector<16x32xf32>
    %513 = vector.extract_strided_slice %510 {offsets = [0, 64], sizes = [16, 32], strides = [1, 1]} : vector<16x96xf32> to vector<16x32xf32>
    %514 = vector.extract_strided_slice %511 {offsets = [0, 0], sizes = [8, 32], strides = [1, 1]} : vector<16x32xf32> to vector<8x32xf32>
    %515 = vector.extract_strided_slice %512 {offsets = [0, 0], sizes = [8, 32], strides = [1, 1]} : vector<16x32xf32> to vector<8x32xf32>
    %516 = vector.extract_strided_slice %513 {offsets = [0, 0], sizes = [8, 32], strides = [1, 1]} : vector<16x32xf32> to vector<8x32xf32>
    %517 = vector.extract_strided_slice %12 {offsets = [0, 0, 0], sizes = [1, 8, 8], strides = [1, 1, 1]} : vector<2x8x8xf32> to vector<1x8x8xf32>
    %518 = vector.shape_cast %517 : vector<1x8x8xf32> to vector<8x8xf32>
    %519 = vector.extract_strided_slice %514 {offsets = [0, 0], sizes = [8, 8], strides = [1, 1]} : vector<8x32xf32> to vector<8x8xf32>
    %520 = vector.extract_strided_slice %515 {offsets = [0, 0], sizes = [8, 8], strides = [1, 1]} : vector<8x32xf32> to vector<8x8xf32>
    %521 = vector.extract_strided_slice %516 {offsets = [0, 0], sizes = [8, 8], strides = [1, 1]} : vector<8x32xf32> to vector<8x8xf32>
    %cst_179 = arith.constant dense<0.000000e+00> : vector<8x8xf32>
    %522 = tpu.matmul %519, %520, %cst_179 {dimension_numbers = #tpu.dot_dimension_numbers<[1], [1], [0], [0], [0, 0, 1, 0], [], []>} : vector<8x8xf32>, vector<8x8xf32>, vector<8x8xf32> -> vector<8x8xf32>
    %cst_180 = arith.constant 0.353553385 : f32
    %523 = vector.broadcast %cst_180 : f32 to vector<8x8xf32>
    %524 = arith.mulf %522, %523 : vector<8x8xf32>
    %525 = arith.addf %524, %518 : vector<8x8xf32>
    %cst_181 = arith.constant dense<0xFF800000> : vector<8xf32>
    %526 = vector.multi_reduction <maximumf>, %525, %cst_181 [1] : vector<8x8xf32> to vector<8xf32>
    %527 = vector.shape_cast %526 : vector<8xf32> to vector<8x1xf32>
    %528 = vector.broadcast %527 : vector<8x1xf32> to vector<8x8xf32>
    %529 = arith.subf %525, %528 : vector<8x8xf32>
    %530 = math.exp %529 : vector<8x8xf32>
    %cst_182 = arith.constant dense<0.000000e+00> : vector<8xf32>
    %531 = vector.multi_reduction <add>, %530, %cst_182 [1] : vector<8x8xf32> to vector<8xf32>
    %532 = vector.shape_cast %531 : vector<8xf32> to vector<8x1xf32>
    %533 = tpu.reciprocal %532 {approx = true} : vector<8x1xf32> -> vector<8x1xf32>
    %534 = vector.broadcast %533 : vector<8x1xf32> to vector<8x8xf32>
    %535 = arith.mulf %530, %534 : vector<8x8xf32>
    %cst_183 = arith.constant dense<0.000000e+00> : vector<8x8xf32>
    %536 = tpu.matmul %535, %521, %cst_183 {dimension_numbers = #tpu.dot_dimension_numbers<[1], [0], [0], [1], [0, 0, 1, 1], [], []>} : vector<8x8xf32>, vector<8x8xf32>, vector<8x8xf32> -> vector<8x8xf32>
    %537 = vector.extract_strided_slice %514 {offsets = [0, 8], sizes = [8, 8], strides = [1, 1]} : vector<8x32xf32> to vector<8x8xf32>
    %538 = vector.extract_strided_slice %515 {offsets = [0, 8], sizes = [8, 8], strides = [1, 1]} : vector<8x32xf32> to vector<8x8xf32>
    %539 = vector.extract_strided_slice %516 {offsets = [0, 8], sizes = [8, 8], strides = [1, 1]} : vector<8x32xf32> to vector<8x8xf32>
    %cst_184 = arith.constant dense<0.000000e+00> : vector<8x8xf32>
    %540 = tpu.matmul %537, %538, %cst_184 {dimension_numbers = #tpu.dot_dimension_numbers<[1], [1], [0], [0], [0, 0, 1, 0], [], []>} : vector<8x8xf32>, vector<8x8xf32>, vector<8x8xf32> -> vector<8x8xf32>
    %cst_185 = arith.constant 0.353553385 : f32
    %541 = vector.broadcast %cst_185 : f32 to vector<8x8xf32>
    %542 = arith.mulf %540, %541 : vector<8x8xf32>
    %543 = arith.addf %542, %518 : vector<8x8xf32>
    %cst_186 = arith.constant dense<0xFF800000> : vector<8xf32>
    %544 = vector.multi_reduction <maximumf>, %543, %cst_186 [1] : vector<8x8xf32> to vector<8xf32>
    %545 = vector.shape_cast %544 : vector<8xf32> to vector<8x1xf32>
    %546 = vector.broadcast %545 : vector<8x1xf32> to vector<8x8xf32>
    %547 = arith.subf %543, %546 : vector<8x8xf32>
    %548 = math.exp %547 : vector<8x8xf32>
    %cst_187 = arith.constant dense<0.000000e+00> : vector<8xf32>
    %549 = vector.multi_reduction <add>, %548, %cst_187 [1] : vector<8x8xf32> to vector<8xf32>
    %550 = vector.shape_cast %549 : vector<8xf32> to vector<8x1xf32>
    %551 = tpu.reciprocal %550 {approx = true} : vector<8x1xf32> -> vector<8x1xf32>
    %552 = vector.broadcast %551 : vector<8x1xf32> to vector<8x8xf32>
    %553 = arith.mulf %548, %552 : vector<8x8xf32>
    %cst_188 = arith.constant dense<0.000000e+00> : vector<8x8xf32>
    %554 = tpu.matmul %553, %539, %cst_188 {dimension_numbers = #tpu.dot_dimension_numbers<[1], [0], [0], [1], [0, 0, 1, 1], [], []>} : vector<8x8xf32>, vector<8x8xf32>, vector<8x8xf32> -> vector<8x8xf32>
    %555 = vector.extract_strided_slice %514 {offsets = [0, 16], sizes = [8, 8], strides = [1, 1]} : vector<8x32xf32> to vector<8x8xf32>
    %556 = vector.extract_strided_slice %515 {offsets = [0, 16], sizes = [8, 8], strides = [1, 1]} : vector<8x32xf32> to vector<8x8xf32>
    %557 = vector.extract_strided_slice %516 {offsets = [0, 16], sizes = [8, 8], strides = [1, 1]} : vector<8x32xf32> to vector<8x8xf32>
    %cst_189 = arith.constant dense<0.000000e+00> : vector<8x8xf32>
    %558 = tpu.matmul %555, %556, %cst_189 {dimension_numbers = #tpu.dot_dimension_numbers<[1], [1], [0], [0], [0, 0, 1, 0], [], []>} : vector<8x8xf32>, vector<8x8xf32>, vector<8x8xf32> -> vector<8x8xf32>
    %cst_190 = arith.constant 0.353553385 : f32
    %559 = vector.broadcast %cst_190 : f32 to vector<8x8xf32>
    %560 = arith.mulf %558, %559 : vector<8x8xf32>
    %561 = arith.addf %560, %518 : vector<8x8xf32>
    %cst_191 = arith.constant dense<0xFF800000> : vector<8xf32>
    %562 = vector.multi_reduction <maximumf>, %561, %cst_191 [1] : vector<8x8xf32> to vector<8xf32>
    %563 = vector.shape_cast %562 : vector<8xf32> to vector<8x1xf32>
    %564 = vector.broadcast %563 : vector<8x1xf32> to vector<8x8xf32>
    %565 = arith.subf %561, %564 : vector<8x8xf32>
    %566 = math.exp %565 : vector<8x8xf32>
    %cst_192 = arith.constant dense<0.000000e+00> : vector<8xf32>
    %567 = vector.multi_reduction <add>, %566, %cst_192 [1] : vector<8x8xf32> to vector<8xf32>
    %568 = vector.shape_cast %567 : vector<8xf32> to vector<8x1xf32>
    %569 = tpu.reciprocal %568 {approx = true} : vector<8x1xf32> -> vector<8x1xf32>
    %570 = vector.broadcast %569 : vector<8x1xf32> to vector<8x8xf32>
    %571 = arith.mulf %566, %570 : vector<8x8xf32>
    %cst_193 = arith.constant dense<0.000000e+00> : vector<8x8xf32>
    %572 = tpu.matmul %571, %557, %cst_193 {dimension_numbers = #tpu.dot_dimension_numbers<[1], [0], [0], [1], [0, 0, 1, 1], [], []>} : vector<8x8xf32>, vector<8x8xf32>, vector<8x8xf32> -> vector<8x8xf32>
    %573 = vector.extract_strided_slice %514 {offsets = [0, 24], sizes = [8, 8], strides = [1, 1]} : vector<8x32xf32> to vector<8x8xf32>
    %574 = vector.extract_strided_slice %515 {offsets = [0, 24], sizes = [8, 8], strides = [1, 1]} : vector<8x32xf32> to vector<8x8xf32>
    %575 = vector.extract_strided_slice %516 {offsets = [0, 24], sizes = [8, 8], strides = [1, 1]} : vector<8x32xf32> to vector<8x8xf32>
    %cst_194 = arith.constant dense<0.000000e+00> : vector<8x8xf32>
    %576 = tpu.matmul %573, %574, %cst_194 {dimension_numbers = #tpu.dot_dimension_numbers<[1], [1], [0], [0], [0, 0, 1, 0], [], []>} : vector<8x8xf32>, vector<8x8xf32>, vector<8x8xf32> -> vector<8x8xf32>
    %cst_195 = arith.constant 0.353553385 : f32
    %577 = vector.broadcast %cst_195 : f32 to vector<8x8xf32>
    %578 = arith.mulf %576, %577 : vector<8x8xf32>
    %579 = arith.addf %578, %518 : vector<8x8xf32>
    %cst_196 = arith.constant dense<0xFF800000> : vector<8xf32>
    %580 = vector.multi_reduction <maximumf>, %579, %cst_196 [1] : vector<8x8xf32> to vector<8xf32>
    %581 = vector.shape_cast %580 : vector<8xf32> to vector<8x1xf32>
    %582 = vector.broadcast %581 : vector<8x1xf32> to vector<8x8xf32>
    %583 = arith.subf %579, %582 : vector<8x8xf32>
    %584 = math.exp %583 : vector<8x8xf32>
    %cst_197 = arith.constant dense<0.000000e+00> : vector<8xf32>
    %585 = vector.multi_reduction <add>, %584, %cst_197 [1] : vector<8x8xf32> to vector<8xf32>
    %586 = vector.shape_cast %585 : vector<8xf32> to vector<8x1xf32>
    %587 = tpu.reciprocal %586 {approx = true} : vector<8x1xf32> -> vector<8x1xf32>
    %588 = vector.broadcast %587 : vector<8x1xf32> to vector<8x8xf32>
    %589 = arith.mulf %584, %588 : vector<8x8xf32>
    %cst_198 = arith.constant dense<0.000000e+00> : vector<8x8xf32>
    %590 = tpu.matmul %589, %575, %cst_198 {dimension_numbers = #tpu.dot_dimension_numbers<[1], [0], [0], [1], [0, 0, 1, 1], [], []>} : vector<8x8xf32>, vector<8x8xf32>, vector<8x8xf32> -> vector<8x8xf32>
    %591 = tpu.concatenate %536, %554, %572, %590 in 1 : vector<8x8xf32>, vector<8x8xf32>, vector<8x8xf32>, vector<8x8xf32> -> vector<8x32xf32>
    %592 = vector.extract_strided_slice %511 {offsets = [8, 0], sizes = [8, 32], strides = [1, 1]} : vector<16x32xf32> to vector<8x32xf32>
    %593 = vector.extract_strided_slice %512 {offsets = [8, 0], sizes = [8, 32], strides = [1, 1]} : vector<16x32xf32> to vector<8x32xf32>
    %594 = vector.extract_strided_slice %513 {offsets = [8, 0], sizes = [8, 32], strides = [1, 1]} : vector<16x32xf32> to vector<8x32xf32>
    %595 = vector.extract_strided_slice %12 {offsets = [1, 0, 0], sizes = [1, 8, 8], strides = [1, 1, 1]} : vector<2x8x8xf32> to vector<1x8x8xf32>
    %596 = vector.shape_cast %595 : vector<1x8x8xf32> to vector<8x8xf32>
    %597 = vector.extract_strided_slice %592 {offsets = [0, 0], sizes = [8, 8], strides = [1, 1]} : vector<8x32xf32> to vector<8x8xf32>
    %598 = vector.extract_strided_slice %593 {offsets = [0, 0], sizes = [8, 8], strides = [1, 1]} : vector<8x32xf32> to vector<8x8xf32>
    %599 = vector.extract_strided_slice %594 {offsets = [0, 0], sizes = [8, 8], strides = [1, 1]} : vector<8x32xf32> to vector<8x8xf32>
    %cst_199 = arith.constant dense<0.000000e+00> : vector<8x8xf32>
    %600 = tpu.matmul %597, %598, %cst_199 {dimension_numbers = #tpu.dot_dimension_numbers<[1], [1], [0], [0], [0, 0, 1, 0], [], []>} : vector<8x8xf32>, vector<8x8xf32>, vector<8x8xf32> -> vector<8x8xf32>
    %cst_200 = arith.constant 0.353553385 : f32
    %601 = vector.broadcast %cst_200 : f32 to vector<8x8xf32>
    %602 = arith.mulf %600, %601 : vector<8x8xf32>
    %603 = arith.addf %602, %596 : vector<8x8xf32>
    %cst_201 = arith.constant dense<0xFF800000> : vector<8xf32>
    %604 = vector.multi_reduction <maximumf>, %603, %cst_201 [1] : vector<8x8xf32> to vector<8xf32>
    %605 = vector.shape_cast %604 : vector<8xf32> to vector<8x1xf32>
    %606 = vector.broadcast %605 : vector<8x1xf32> to vector<8x8xf32>
    %607 = arith.subf %603, %606 : vector<8x8xf32>
    %608 = math.exp %607 : vector<8x8xf32>
    %cst_202 = arith.constant dense<0.000000e+00> : vector<8xf32>
    %609 = vector.multi_reduction <add>, %608, %cst_202 [1] : vector<8x8xf32> to vector<8xf32>
    %610 = vector.shape_cast %609 : vector<8xf32> to vector<8x1xf32>
    %611 = tpu.reciprocal %610 {approx = true} : vector<8x1xf32> -> vector<8x1xf32>
    %612 = vector.broadcast %611 : vector<8x1xf32> to vector<8x8xf32>
    %613 = arith.mulf %608, %612 : vector<8x8xf32>
    %cst_203 = arith.constant dense<0.000000e+00> : vector<8x8xf32>
    %614 = tpu.matmul %613, %599, %cst_203 {dimension_numbers = #tpu.dot_dimension_numbers<[1], [0], [0], [1], [0, 0, 1, 1], [], []>} : vector<8x8xf32>, vector<8x8xf32>, vector<8x8xf32> -> vector<8x8xf32>
    %615 = vector.extract_strided_slice %592 {offsets = [0, 8], sizes = [8, 8], strides = [1, 1]} : vector<8x32xf32> to vector<8x8xf32>
    %616 = vector.extract_strided_slice %593 {offsets = [0, 8], sizes = [8, 8], strides = [1, 1]} : vector<8x32xf32> to vector<8x8xf32>
    %617 = vector.extract_strided_slice %594 {offsets = [0, 8], sizes = [8, 8], strides = [1, 1]} : vector<8x32xf32> to vector<8x8xf32>
    %cst_204 = arith.constant dense<0.000000e+00> : vector<8x8xf32>
    %618 = tpu.matmul %615, %616, %cst_204 {dimension_numbers = #tpu.dot_dimension_numbers<[1], [1], [0], [0], [0, 0, 1, 0], [], []>} : vector<8x8xf32>, vector<8x8xf32>, vector<8x8xf32> -> vector<8x8xf32>
    %cst_205 = arith.constant 0.353553385 : f32
    %619 = vector.broadcast %cst_205 : f32 to vector<8x8xf32>
    %620 = arith.mulf %618, %619 : vector<8x8xf32>
    %621 = arith.addf %620, %596 : vector<8x8xf32>
    %cst_206 = arith.constant dense<0xFF800000> : vector<8xf32>
    %622 = vector.multi_reduction <maximumf>, %621, %cst_206 [1] : vector<8x8xf32> to vector<8xf32>
    %623 = vector.shape_cast %622 : vector<8xf32> to vector<8x1xf32>
    %624 = vector.broadcast %623 : vector<8x1xf32> to vector<8x8xf32>
    %625 = arith.subf %621, %624 : vector<8x8xf32>
    %626 = math.exp %625 : vector<8x8xf32>
    %cst_207 = arith.constant dense<0.000000e+00> : vector<8xf32>
    %627 = vector.multi_reduction <add>, %626, %cst_207 [1] : vector<8x8xf32> to vector<8xf32>
    %628 = vector.shape_cast %627 : vector<8xf32> to vector<8x1xf32>
    %629 = tpu.reciprocal %628 {approx = true} : vector<8x1xf32> -> vector<8x1xf32>
    %630 = vector.broadcast %629 : vector<8x1xf32> to vector<8x8xf32>
    %631 = arith.mulf %626, %630 : vector<8x8xf32>
    %cst_208 = arith.constant dense<0.000000e+00> : vector<8x8xf32>
    %632 = tpu.matmul %631, %617, %cst_208 {dimension_numbers = #tpu.dot_dimension_numbers<[1], [0], [0], [1], [0, 0, 1, 1], [], []>} : vector<8x8xf32>, vector<8x8xf32>, vector<8x8xf32> -> vector<8x8xf32>
    %633 = vector.extract_strided_slice %592 {offsets = [0, 16], sizes = [8, 8], strides = [1, 1]} : vector<8x32xf32> to vector<8x8xf32>
    %634 = vector.extract_strided_slice %593 {offsets = [0, 16], sizes = [8, 8], strides = [1, 1]} : vector<8x32xf32> to vector<8x8xf32>
    %635 = vector.extract_strided_slice %594 {offsets = [0, 16], sizes = [8, 8], strides = [1, 1]} : vector<8x32xf32> to vector<8x8xf32>
    %cst_209 = arith.constant dense<0.000000e+00> : vector<8x8xf32>
    %636 = tpu.matmul %633, %634, %cst_209 {dimension_numbers = #tpu.dot_dimension_numbers<[1], [1], [0], [0], [0, 0, 1, 0], [], []>} : vector<8x8xf32>, vector<8x8xf32>, vector<8x8xf32> -> vector<8x8xf32>
    %cst_210 = arith.constant 0.353553385 : f32
    %637 = vector.broadcast %cst_210 : f32 to vector<8x8xf32>
    %638 = arith.mulf %636, %637 : vector<8x8xf32>
    %639 = arith.addf %638, %596 : vector<8x8xf32>
    %cst_211 = arith.constant dense<0xFF800000> : vector<8xf32>
    %640 = vector.multi_reduction <maximumf>, %639, %cst_211 [1] : vector<8x8xf32> to vector<8xf32>
    %641 = vector.shape_cast %640 : vector<8xf32> to vector<8x1xf32>
    %642 = vector.broadcast %641 : vector<8x1xf32> to vector<8x8xf32>
    %643 = arith.subf %639, %642 : vector<8x8xf32>
    %644 = math.exp %643 : vector<8x8xf32>
    %cst_212 = arith.constant dense<0.000000e+00> : vector<8xf32>
    %645 = vector.multi_reduction <add>, %644, %cst_212 [1] : vector<8x8xf32> to vector<8xf32>
    %646 = vector.shape_cast %645 : vector<8xf32> to vector<8x1xf32>
    %647 = tpu.reciprocal %646 {approx = true} : vector<8x1xf32> -> vector<8x1xf32>
    %648 = vector.broadcast %647 : vector<8x1xf32> to vector<8x8xf32>
    %649 = arith.mulf %644, %648 : vector<8x8xf32>
    %cst_213 = arith.constant dense<0.000000e+00> : vector<8x8xf32>
    %650 = tpu.matmul %649, %635, %cst_213 {dimension_numbers = #tpu.dot_dimension_numbers<[1], [0], [0], [1], [0, 0, 1, 1], [], []>} : vector<8x8xf32>, vector<8x8xf32>, vector<8x8xf32> -> vector<8x8xf32>
    %651 = vector.extract_strided_slice %592 {offsets = [0, 24], sizes = [8, 8], strides = [1, 1]} : vector<8x32xf32> to vector<8x8xf32>
    %652 = vector.extract_strided_slice %593 {offsets = [0, 24], sizes = [8, 8], strides = [1, 1]} : vector<8x32xf32> to vector<8x8xf32>
    %653 = vector.extract_strided_slice %594 {offsets = [0, 24], sizes = [8, 8], strides = [1, 1]} : vector<8x32xf32> to vector<8x8xf32>
    %cst_214 = arith.constant dense<0.000000e+00> : vector<8x8xf32>
    %654 = tpu.matmul %651, %652, %cst_214 {dimension_numbers = #tpu.dot_dimension_numbers<[1], [1], [0], [0], [0, 0, 1, 0], [], []>} : vector<8x8xf32>, vector<8x8xf32>, vector<8x8xf32> -> vector<8x8xf32>
    %cst_215 = arith.constant 0.353553385 : f32
    %655 = vector.broadcast %cst_215 : f32 to vector<8x8xf32>
    %656 = arith.mulf %654, %655 : vector<8x8xf32>
    %657 = arith.addf %656, %596 : vector<8x8xf32>
    %cst_216 = arith.constant dense<0xFF800000> : vector<8xf32>
    %658 = vector.multi_reduction <maximumf>, %657, %cst_216 [1] : vector<8x8xf32> to vector<8xf32>
    %659 = vector.shape_cast %658 : vector<8xf32> to vector<8x1xf32>
    %660 = vector.broadcast %659 : vector<8x1xf32> to vector<8x8xf32>
    %661 = arith.subf %657, %660 : vector<8x8xf32>
    %662 = math.exp %661 : vector<8x8xf32>
    %cst_217 = arith.constant dense<0.000000e+00> : vector<8xf32>
    %663 = vector.multi_reduction <add>, %662, %cst_217 [1] : vector<8x8xf32> to vector<8xf32>
    %664 = vector.shape_cast %663 : vector<8xf32> to vector<8x1xf32>
    %665 = tpu.reciprocal %664 {approx = true} : vector<8x1xf32> -> vector<8x1xf32>
    %666 = vector.broadcast %665 : vector<8x1xf32> to vector<8x8xf32>
    %667 = arith.mulf %662, %666 : vector<8x8xf32>
    %cst_218 = arith.constant dense<0.000000e+00> : vector<8x8xf32>
    %668 = tpu.matmul %667, %653, %cst_218 {dimension_numbers = #tpu.dot_dimension_numbers<[1], [0], [0], [1], [0, 0, 1, 1], [], []>} : vector<8x8xf32>, vector<8x8xf32>, vector<8x8xf32> -> vector<8x8xf32>
    %669 = tpu.concatenate %614, %632, %650, %668 in 1 : vector<8x8xf32>, vector<8x8xf32>, vector<8x8xf32>, vector<8x8xf32> -> vector<8x32xf32>
    %670 = tpu.concatenate %591, %669 in 0 : vector<8x32xf32>, vector<8x32xf32> -> vector<16x32xf32>
    %c1_219 = arith.constant 1 : index
    %c0_220 = arith.constant 0 : index
    %c0_221 = arith.constant 0 : index
    %671 = vector.load %arg8[%c1_219, %c0_220, %c0_221] : memref<2x32x32xf32, #tpu.memory_space<vmem>>, vector<1x32x32xf32>
    %672 = vector.shape_cast %671 : vector<1x32x32xf32> to vector<32x32xf32>
    %cst_222 = arith.constant dense<0.000000e+00> : vector<16x32xf32>
    %673 = tpu.matmul %670, %672, %cst_222 {dimension_numbers = #tpu.dot_dimension_numbers<[1], [0], [0], [1], [0, 0, 1, 1], [], []>} : vector<16x32xf32>, vector<32x32xf32>, vector<16x32xf32> -> vector<16x32xf32>
    %674 = arith.addf %476, %673 : vector<16x32xf32>
    %c1_223 = arith.constant 1 : index
    %c0_224 = arith.constant 0 : index
    %c0_225 = arith.constant 0 : index
    %675 = vector.load %arg9[%c1_223, %c0_224, %c0_225] : memref<2x1x32xf32, #tpu.memory_space<vmem>>, vector<1x1x32xf32>
    %676 = vector.shape_cast %675 : vector<1x1x32xf32> to vector<1x32xf32>
    %677 = vector.broadcast %676 : vector<1x32xf32> to vector<16x32xf32>
    %678 = arith.addf %674, %677 : vector<16x32xf32>
    %679 = vector.extract_strided_slice %478 {offsets = [2, 0], sizes = [1, 32], strides = [1, 1]} : vector<6x32xf32> to vector<1x32xf32>
    %680 = vector.extract_strided_slice %478 {offsets = [3, 0], sizes = [1, 32], strides = [1, 1]} : vector<6x32xf32> to vector<1x32xf32>
    %cst_226 = arith.constant dense<0.000000e+00> : vector<16xf32>
    %681 = vector.multi_reduction <add>, %678, %cst_226 [1] : vector<16x32xf32> to vector<16xf32>
    %682 = vector.shape_cast %681 : vector<16xf32> to vector<16x1xf32>
    %cst_227 = arith.constant 3.200000e+01 : f32
    %683 = vector.broadcast %cst_227 : f32 to vector<16x1xf32>
    %684 = arith.divf %682, %683 : vector<16x1xf32>
    %685 = vector.broadcast %684 : vector<16x1xf32> to vector<16x32xf32>
    %686 = arith.subf %678, %685 : vector<16x32xf32>
    %687 = arith.mulf %686, %686 : vector<16x32xf32>
    %cst_228 = arith.constant dense<0.000000e+00> : vector<16xf32>
    %688 = vector.multi_reduction <add>, %687, %cst_228 [1] : vector<16x32xf32> to vector<16xf32>
    %689 = vector.shape_cast %688 : vector<16xf32> to vector<16x1xf32>
    %cst_229 = arith.constant 0.0322580636 : f32
    %690 = vector.broadcast %cst_229 : f32 to vector<16x1xf32>
    %691 = arith.mulf %689, %690 : vector<16x1xf32>
    %692 = math.sqrt %691 : vector<16x1xf32>
    %cst_230 = arith.constant 9.99999997E-7 : f32
    %693 = vector.broadcast %cst_230 : f32 to vector<16x1xf32>
    %694 = arith.addf %692, %693 : vector<16x1xf32>
    %695 = tpu.reciprocal %694 {approx = true} : vector<16x1xf32> -> vector<16x1xf32>
    %696 = vector.broadcast %684 : vector<16x1xf32> to vector<16x32xf32>
    %697 = arith.subf %678, %696 : vector<16x32xf32>
    %698 = vector.broadcast %679 : vector<1x32xf32> to vector<16x32xf32>
    %699 = arith.mulf %698, %697 : vector<16x32xf32>
    %700 = vector.broadcast %695 : vector<16x1xf32> to vector<16x32xf32>
    %701 = arith.mulf %699, %700 : vector<16x32xf32>
    %702 = vector.broadcast %680 : vector<1x32xf32> to vector<16x32xf32>
    %703 = arith.addf %701, %702 : vector<16x32xf32>
    %c1_231 = arith.constant 1 : index
    %c0_232 = arith.constant 0 : index
    %c0_233 = arith.constant 0 : index
    %704 = vector.load %arg10[%c1_231, %c0_232, %c0_233] : memref<2x32x32xf32, #tpu.memory_space<vmem>>, vector<1x32x32xf32>
    %705 = vector.shape_cast %704 : vector<1x32x32xf32> to vector<32x32xf32>
    %cst_234 = arith.constant dense<0.000000e+00> : vector<16x32xf32>
    %706 = tpu.matmul %703, %705, %cst_234 {dimension_numbers = #tpu.dot_dimension_numbers<[1], [0], [0], [1], [0, 0, 1, 1], [], []>} : vector<16x32xf32>, vector<32x32xf32>, vector<16x32xf32> -> vector<16x32xf32>
    %c1_235 = arith.constant 1 : index
    %c0_236 = arith.constant 0 : index
    %c0_237 = arith.constant 0 : index
    %707 = vector.load %arg11[%c1_235, %c0_236, %c0_237] : memref<2x1x32xf32, #tpu.memory_space<vmem>>, vector<1x1x32xf32>
    %708 = vector.shape_cast %707 : vector<1x1x32xf32> to vector<1x32xf32>
    %709 = vector.broadcast %708 : vector<1x32xf32> to vector<16x32xf32>
    %710 = arith.addf %706, %709 : vector<16x32xf32>
    %c1_238 = arith.constant 1 : index
    %c0_239 = arith.constant 0 : index
    %c0_240 = arith.constant 0 : index
    %711 = vector.load %arg12[%c1_238, %c0_239, %c0_240] : memref<2x32x64xf32, #tpu.memory_space<vmem>>, vector<1x32x64xf32>
    %712 = vector.shape_cast %711 : vector<1x32x64xf32> to vector<32x64xf32>
    %cst_241 = arith.constant dense<0.000000e+00> : vector<16x64xf32>
    %713 = tpu.matmul %6, %712, %cst_241 {dimension_numbers = #tpu.dot_dimension_numbers<[1], [0], [0], [1], [0, 0, 1, 1], [], []>} : vector<16x32xf32>, vector<32x64xf32>, vector<16x64xf32> -> vector<16x64xf32>
    %c1_242 = arith.constant 1 : index
    %c0_243 = arith.constant 0 : index
    %c0_244 = arith.constant 0 : index
    %714 = vector.load %arg13[%c1_242, %c0_243, %c0_244] : memref<2x1x64xf32, #tpu.memory_space<vmem>>, vector<1x1x64xf32>
    %715 = vector.shape_cast %714 : vector<1x1x64xf32> to vector<1x64xf32>
    %716 = vector.broadcast %715 : vector<1x64xf32> to vector<16x64xf32>
    %717 = arith.addf %713, %716 : vector<16x64xf32>
    %718 = vector.extract_strided_slice %717 {offsets = [0, 0], sizes = [16, 32], strides = [1, 1]} : vector<16x64xf32> to vector<16x32xf32>
    %719 = vector.extract_strided_slice %717 {offsets = [0, 32], sizes = [16, 32], strides = [1, 1]} : vector<16x64xf32> to vector<16x32xf32>
    %720 = vector.extract_strided_slice %710 {offsets = [0, 0], sizes = [8, 32], strides = [1, 1]} : vector<16x32xf32> to vector<8x32xf32>
    %721 = vector.extract_strided_slice %718 {offsets = [0, 0], sizes = [8, 32], strides = [1, 1]} : vector<16x32xf32> to vector<8x32xf32>
    %722 = vector.extract_strided_slice %719 {offsets = [0, 0], sizes = [8, 32], strides = [1, 1]} : vector<16x32xf32> to vector<8x32xf32>
    %723 = vector.extract_strided_slice %18 {offsets = [0, 0, 0], sizes = [1, 1, 8], strides = [1, 1, 1]} : vector<2x1x8xf32> to vector<1x1x8xf32>
    %724 = vector.shape_cast %723 : vector<1x1x8xf32> to vector<1x8xf32>
    %725 = vector.extract_strided_slice %720 {offsets = [0, 0], sizes = [8, 8], strides = [1, 1]} : vector<8x32xf32> to vector<8x8xf32>
    %726 = vector.extract_strided_slice %721 {offsets = [0, 0], sizes = [8, 8], strides = [1, 1]} : vector<8x32xf32> to vector<8x8xf32>
    %727 = vector.extract_strided_slice %722 {offsets = [0, 0], sizes = [8, 8], strides = [1, 1]} : vector<8x32xf32> to vector<8x8xf32>
    %cst_245 = arith.constant dense<0.000000e+00> : vector<8x8xf32>
    %728 = tpu.matmul %725, %726, %cst_245 {dimension_numbers = #tpu.dot_dimension_numbers<[1], [1], [0], [0], [0, 0, 1, 0], [], []>} : vector<8x8xf32>, vector<8x8xf32>, vector<8x8xf32> -> vector<8x8xf32>
    %cst_246 = arith.constant 0.353553385 : f32
    %729 = vector.broadcast %cst_246 : f32 to vector<8x8xf32>
    %730 = arith.mulf %728, %729 : vector<8x8xf32>
    %731 = vector.broadcast %724 : vector<1x8xf32> to vector<8x8xf32>
    %732 = arith.addf %730, %731 : vector<8x8xf32>
    %cst_247 = arith.constant dense<0xFF800000> : vector<8xf32>
    %733 = vector.multi_reduction <maximumf>, %732, %cst_247 [1] : vector<8x8xf32> to vector<8xf32>
    %734 = vector.shape_cast %733 : vector<8xf32> to vector<8x1xf32>
    %735 = vector.broadcast %734 : vector<8x1xf32> to vector<8x8xf32>
    %736 = arith.subf %732, %735 : vector<8x8xf32>
    %737 = math.exp %736 : vector<8x8xf32>
    %cst_248 = arith.constant dense<0.000000e+00> : vector<8xf32>
    %738 = vector.multi_reduction <add>, %737, %cst_248 [1] : vector<8x8xf32> to vector<8xf32>
    %739 = vector.shape_cast %738 : vector<8xf32> to vector<8x1xf32>
    %740 = tpu.reciprocal %739 {approx = true} : vector<8x1xf32> -> vector<8x1xf32>
    %741 = vector.broadcast %740 : vector<8x1xf32> to vector<8x8xf32>
    %742 = arith.mulf %737, %741 : vector<8x8xf32>
    %cst_249 = arith.constant dense<0.000000e+00> : vector<8x8xf32>
    %743 = tpu.matmul %742, %727, %cst_249 {dimension_numbers = #tpu.dot_dimension_numbers<[1], [0], [0], [1], [0, 0, 1, 1], [], []>} : vector<8x8xf32>, vector<8x8xf32>, vector<8x8xf32> -> vector<8x8xf32>
    %744 = vector.extract_strided_slice %720 {offsets = [0, 8], sizes = [8, 8], strides = [1, 1]} : vector<8x32xf32> to vector<8x8xf32>
    %745 = vector.extract_strided_slice %721 {offsets = [0, 8], sizes = [8, 8], strides = [1, 1]} : vector<8x32xf32> to vector<8x8xf32>
    %746 = vector.extract_strided_slice %722 {offsets = [0, 8], sizes = [8, 8], strides = [1, 1]} : vector<8x32xf32> to vector<8x8xf32>
    %cst_250 = arith.constant dense<0.000000e+00> : vector<8x8xf32>
    %747 = tpu.matmul %744, %745, %cst_250 {dimension_numbers = #tpu.dot_dimension_numbers<[1], [1], [0], [0], [0, 0, 1, 0], [], []>} : vector<8x8xf32>, vector<8x8xf32>, vector<8x8xf32> -> vector<8x8xf32>
    %cst_251 = arith.constant 0.353553385 : f32
    %748 = vector.broadcast %cst_251 : f32 to vector<8x8xf32>
    %749 = arith.mulf %747, %748 : vector<8x8xf32>
    %750 = vector.broadcast %724 : vector<1x8xf32> to vector<8x8xf32>
    %751 = arith.addf %749, %750 : vector<8x8xf32>
    %cst_252 = arith.constant dense<0xFF800000> : vector<8xf32>
    %752 = vector.multi_reduction <maximumf>, %751, %cst_252 [1] : vector<8x8xf32> to vector<8xf32>
    %753 = vector.shape_cast %752 : vector<8xf32> to vector<8x1xf32>
    %754 = vector.broadcast %753 : vector<8x1xf32> to vector<8x8xf32>
    %755 = arith.subf %751, %754 : vector<8x8xf32>
    %756 = math.exp %755 : vector<8x8xf32>
    %cst_253 = arith.constant dense<0.000000e+00> : vector<8xf32>
    %757 = vector.multi_reduction <add>, %756, %cst_253 [1] : vector<8x8xf32> to vector<8xf32>
    %758 = vector.shape_cast %757 : vector<8xf32> to vector<8x1xf32>
    %759 = tpu.reciprocal %758 {approx = true} : vector<8x1xf32> -> vector<8x1xf32>
    %760 = vector.broadcast %759 : vector<8x1xf32> to vector<8x8xf32>
    %761 = arith.mulf %756, %760 : vector<8x8xf32>
    %cst_254 = arith.constant dense<0.000000e+00> : vector<8x8xf32>
    %762 = tpu.matmul %761, %746, %cst_254 {dimension_numbers = #tpu.dot_dimension_numbers<[1], [0], [0], [1], [0, 0, 1, 1], [], []>} : vector<8x8xf32>, vector<8x8xf32>, vector<8x8xf32> -> vector<8x8xf32>
    %763 = vector.extract_strided_slice %720 {offsets = [0, 16], sizes = [8, 8], strides = [1, 1]} : vector<8x32xf32> to vector<8x8xf32>
    %764 = vector.extract_strided_slice %721 {offsets = [0, 16], sizes = [8, 8], strides = [1, 1]} : vector<8x32xf32> to vector<8x8xf32>
    %765 = vector.extract_strided_slice %722 {offsets = [0, 16], sizes = [8, 8], strides = [1, 1]} : vector<8x32xf32> to vector<8x8xf32>
    %cst_255 = arith.constant dense<0.000000e+00> : vector<8x8xf32>
    %766 = tpu.matmul %763, %764, %cst_255 {dimension_numbers = #tpu.dot_dimension_numbers<[1], [1], [0], [0], [0, 0, 1, 0], [], []>} : vector<8x8xf32>, vector<8x8xf32>, vector<8x8xf32> -> vector<8x8xf32>
    %cst_256 = arith.constant 0.353553385 : f32
    %767 = vector.broadcast %cst_256 : f32 to vector<8x8xf32>
    %768 = arith.mulf %766, %767 : vector<8x8xf32>
    %769 = vector.broadcast %724 : vector<1x8xf32> to vector<8x8xf32>
    %770 = arith.addf %768, %769 : vector<8x8xf32>
    %cst_257 = arith.constant dense<0xFF800000> : vector<8xf32>
    %771 = vector.multi_reduction <maximumf>, %770, %cst_257 [1] : vector<8x8xf32> to vector<8xf32>
    %772 = vector.shape_cast %771 : vector<8xf32> to vector<8x1xf32>
    %773 = vector.broadcast %772 : vector<8x1xf32> to vector<8x8xf32>
    %774 = arith.subf %770, %773 : vector<8x8xf32>
    %775 = math.exp %774 : vector<8x8xf32>
    %cst_258 = arith.constant dense<0.000000e+00> : vector<8xf32>
    %776 = vector.multi_reduction <add>, %775, %cst_258 [1] : vector<8x8xf32> to vector<8xf32>
    %777 = vector.shape_cast %776 : vector<8xf32> to vector<8x1xf32>
    %778 = tpu.reciprocal %777 {approx = true} : vector<8x1xf32> -> vector<8x1xf32>
    %779 = vector.broadcast %778 : vector<8x1xf32> to vector<8x8xf32>
    %780 = arith.mulf %775, %779 : vector<8x8xf32>
    %cst_259 = arith.constant dense<0.000000e+00> : vector<8x8xf32>
    %781 = tpu.matmul %780, %765, %cst_259 {dimension_numbers = #tpu.dot_dimension_numbers<[1], [0], [0], [1], [0, 0, 1, 1], [], []>} : vector<8x8xf32>, vector<8x8xf32>, vector<8x8xf32> -> vector<8x8xf32>
    %782 = vector.extract_strided_slice %720 {offsets = [0, 24], sizes = [8, 8], strides = [1, 1]} : vector<8x32xf32> to vector<8x8xf32>
    %783 = vector.extract_strided_slice %721 {offsets = [0, 24], sizes = [8, 8], strides = [1, 1]} : vector<8x32xf32> to vector<8x8xf32>
    %784 = vector.extract_strided_slice %722 {offsets = [0, 24], sizes = [8, 8], strides = [1, 1]} : vector<8x32xf32> to vector<8x8xf32>
    %cst_260 = arith.constant dense<0.000000e+00> : vector<8x8xf32>
    %785 = tpu.matmul %782, %783, %cst_260 {dimension_numbers = #tpu.dot_dimension_numbers<[1], [1], [0], [0], [0, 0, 1, 0], [], []>} : vector<8x8xf32>, vector<8x8xf32>, vector<8x8xf32> -> vector<8x8xf32>
    %cst_261 = arith.constant 0.353553385 : f32
    %786 = vector.broadcast %cst_261 : f32 to vector<8x8xf32>
    %787 = arith.mulf %785, %786 : vector<8x8xf32>
    %788 = vector.broadcast %724 : vector<1x8xf32> to vector<8x8xf32>
    %789 = arith.addf %787, %788 : vector<8x8xf32>
    %cst_262 = arith.constant dense<0xFF800000> : vector<8xf32>
    %790 = vector.multi_reduction <maximumf>, %789, %cst_262 [1] : vector<8x8xf32> to vector<8xf32>
    %791 = vector.shape_cast %790 : vector<8xf32> to vector<8x1xf32>
    %792 = vector.broadcast %791 : vector<8x1xf32> to vector<8x8xf32>
    %793 = arith.subf %789, %792 : vector<8x8xf32>
    %794 = math.exp %793 : vector<8x8xf32>
    %cst_263 = arith.constant dense<0.000000e+00> : vector<8xf32>
    %795 = vector.multi_reduction <add>, %794, %cst_263 [1] : vector<8x8xf32> to vector<8xf32>
    %796 = vector.shape_cast %795 : vector<8xf32> to vector<8x1xf32>
    %797 = tpu.reciprocal %796 {approx = true} : vector<8x1xf32> -> vector<8x1xf32>
    %798 = vector.broadcast %797 : vector<8x1xf32> to vector<8x8xf32>
    %799 = arith.mulf %794, %798 : vector<8x8xf32>
    %cst_264 = arith.constant dense<0.000000e+00> : vector<8x8xf32>
    %800 = tpu.matmul %799, %784, %cst_264 {dimension_numbers = #tpu.dot_dimension_numbers<[1], [0], [0], [1], [0, 0, 1, 1], [], []>} : vector<8x8xf32>, vector<8x8xf32>, vector<8x8xf32> -> vector<8x8xf32>
    %801 = tpu.concatenate %743, %762, %781, %800 in 1 : vector<8x8xf32>, vector<8x8xf32>, vector<8x8xf32>, vector<8x8xf32> -> vector<8x32xf32>
    %802 = vector.extract_strided_slice %710 {offsets = [8, 0], sizes = [8, 32], strides = [1, 1]} : vector<16x32xf32> to vector<8x32xf32>
    %803 = vector.extract_strided_slice %718 {offsets = [8, 0], sizes = [8, 32], strides = [1, 1]} : vector<16x32xf32> to vector<8x32xf32>
    %804 = vector.extract_strided_slice %719 {offsets = [8, 0], sizes = [8, 32], strides = [1, 1]} : vector<16x32xf32> to vector<8x32xf32>
    %805 = vector.extract_strided_slice %18 {offsets = [1, 0, 0], sizes = [1, 1, 8], strides = [1, 1, 1]} : vector<2x1x8xf32> to vector<1x1x8xf32>
    %806 = vector.shape_cast %805 : vector<1x1x8xf32> to vector<1x8xf32>
    %807 = vector.extract_strided_slice %802 {offsets = [0, 0], sizes = [8, 8], strides = [1, 1]} : vector<8x32xf32> to vector<8x8xf32>
    %808 = vector.extract_strided_slice %803 {offsets = [0, 0], sizes = [8, 8], strides = [1, 1]} : vector<8x32xf32> to vector<8x8xf32>
    %809 = vector.extract_strided_slice %804 {offsets = [0, 0], sizes = [8, 8], strides = [1, 1]} : vector<8x32xf32> to vector<8x8xf32>
    %cst_265 = arith.constant dense<0.000000e+00> : vector<8x8xf32>
    %810 = tpu.matmul %807, %808, %cst_265 {dimension_numbers = #tpu.dot_dimension_numbers<[1], [1], [0], [0], [0, 0, 1, 0], [], []>} : vector<8x8xf32>, vector<8x8xf32>, vector<8x8xf32> -> vector<8x8xf32>
    %cst_266 = arith.constant 0.353553385 : f32
    %811 = vector.broadcast %cst_266 : f32 to vector<8x8xf32>
    %812 = arith.mulf %810, %811 : vector<8x8xf32>
    %813 = vector.broadcast %806 : vector<1x8xf32> to vector<8x8xf32>
    %814 = arith.addf %812, %813 : vector<8x8xf32>
    %cst_267 = arith.constant dense<0xFF800000> : vector<8xf32>
    %815 = vector.multi_reduction <maximumf>, %814, %cst_267 [1] : vector<8x8xf32> to vector<8xf32>
    %816 = vector.shape_cast %815 : vector<8xf32> to vector<8x1xf32>
    %817 = vector.broadcast %816 : vector<8x1xf32> to vector<8x8xf32>
    %818 = arith.subf %814, %817 : vector<8x8xf32>
    %819 = math.exp %818 : vector<8x8xf32>
    %cst_268 = arith.constant dense<0.000000e+00> : vector<8xf32>
    %820 = vector.multi_reduction <add>, %819, %cst_268 [1] : vector<8x8xf32> to vector<8xf32>
    %821 = vector.shape_cast %820 : vector<8xf32> to vector<8x1xf32>
    %822 = tpu.reciprocal %821 {approx = true} : vector<8x1xf32> -> vector<8x1xf32>
    %823 = vector.broadcast %822 : vector<8x1xf32> to vector<8x8xf32>
    %824 = arith.mulf %819, %823 : vector<8x8xf32>
    %cst_269 = arith.constant dense<0.000000e+00> : vector<8x8xf32>
    %825 = tpu.matmul %824, %809, %cst_269 {dimension_numbers = #tpu.dot_dimension_numbers<[1], [0], [0], [1], [0, 0, 1, 1], [], []>} : vector<8x8xf32>, vector<8x8xf32>, vector<8x8xf32> -> vector<8x8xf32>
    %826 = vector.extract_strided_slice %802 {offsets = [0, 8], sizes = [8, 8], strides = [1, 1]} : vector<8x32xf32> to vector<8x8xf32>
    %827 = vector.extract_strided_slice %803 {offsets = [0, 8], sizes = [8, 8], strides = [1, 1]} : vector<8x32xf32> to vector<8x8xf32>
    %828 = vector.extract_strided_slice %804 {offsets = [0, 8], sizes = [8, 8], strides = [1, 1]} : vector<8x32xf32> to vector<8x8xf32>
    %cst_270 = arith.constant dense<0.000000e+00> : vector<8x8xf32>
    %829 = tpu.matmul %826, %827, %cst_270 {dimension_numbers = #tpu.dot_dimension_numbers<[1], [1], [0], [0], [0, 0, 1, 0], [], []>} : vector<8x8xf32>, vector<8x8xf32>, vector<8x8xf32> -> vector<8x8xf32>
    %cst_271 = arith.constant 0.353553385 : f32
    %830 = vector.broadcast %cst_271 : f32 to vector<8x8xf32>
    %831 = arith.mulf %829, %830 : vector<8x8xf32>
    %832 = vector.broadcast %806 : vector<1x8xf32> to vector<8x8xf32>
    %833 = arith.addf %831, %832 : vector<8x8xf32>
    %cst_272 = arith.constant dense<0xFF800000> : vector<8xf32>
    %834 = vector.multi_reduction <maximumf>, %833, %cst_272 [1] : vector<8x8xf32> to vector<8xf32>
    %835 = vector.shape_cast %834 : vector<8xf32> to vector<8x1xf32>
    %836 = vector.broadcast %835 : vector<8x1xf32> to vector<8x8xf32>
    %837 = arith.subf %833, %836 : vector<8x8xf32>
    %838 = math.exp %837 : vector<8x8xf32>
    %cst_273 = arith.constant dense<0.000000e+00> : vector<8xf32>
    %839 = vector.multi_reduction <add>, %838, %cst_273 [1] : vector<8x8xf32> to vector<8xf32>
    %840 = vector.shape_cast %839 : vector<8xf32> to vector<8x1xf32>
    %841 = tpu.reciprocal %840 {approx = true} : vector<8x1xf32> -> vector<8x1xf32>
    %842 = vector.broadcast %841 : vector<8x1xf32> to vector<8x8xf32>
    %843 = arith.mulf %838, %842 : vector<8x8xf32>
    %cst_274 = arith.constant dense<0.000000e+00> : vector<8x8xf32>
    %844 = tpu.matmul %843, %828, %cst_274 {dimension_numbers = #tpu.dot_dimension_numbers<[1], [0], [0], [1], [0, 0, 1, 1], [], []>} : vector<8x8xf32>, vector<8x8xf32>, vector<8x8xf32> -> vector<8x8xf32>
    %845 = vector.extract_strided_slice %802 {offsets = [0, 16], sizes = [8, 8], strides = [1, 1]} : vector<8x32xf32> to vector<8x8xf32>
    %846 = vector.extract_strided_slice %803 {offsets = [0, 16], sizes = [8, 8], strides = [1, 1]} : vector<8x32xf32> to vector<8x8xf32>
    %847 = vector.extract_strided_slice %804 {offsets = [0, 16], sizes = [8, 8], strides = [1, 1]} : vector<8x32xf32> to vector<8x8xf32>
    %cst_275 = arith.constant dense<0.000000e+00> : vector<8x8xf32>
    %848 = tpu.matmul %845, %846, %cst_275 {dimension_numbers = #tpu.dot_dimension_numbers<[1], [1], [0], [0], [0, 0, 1, 0], [], []>} : vector<8x8xf32>, vector<8x8xf32>, vector<8x8xf32> -> vector<8x8xf32>
    %cst_276 = arith.constant 0.353553385 : f32
    %849 = vector.broadcast %cst_276 : f32 to vector<8x8xf32>
    %850 = arith.mulf %848, %849 : vector<8x8xf32>
    %851 = vector.broadcast %806 : vector<1x8xf32> to vector<8x8xf32>
    %852 = arith.addf %850, %851 : vector<8x8xf32>
    %cst_277 = arith.constant dense<0xFF800000> : vector<8xf32>
    %853 = vector.multi_reduction <maximumf>, %852, %cst_277 [1] : vector<8x8xf32> to vector<8xf32>
    %854 = vector.shape_cast %853 : vector<8xf32> to vector<8x1xf32>
    %855 = vector.broadcast %854 : vector<8x1xf32> to vector<8x8xf32>
    %856 = arith.subf %852, %855 : vector<8x8xf32>
    %857 = math.exp %856 : vector<8x8xf32>
    %cst_278 = arith.constant dense<0.000000e+00> : vector<8xf32>
    %858 = vector.multi_reduction <add>, %857, %cst_278 [1] : vector<8x8xf32> to vector<8xf32>
    %859 = vector.shape_cast %858 : vector<8xf32> to vector<8x1xf32>
    %860 = tpu.reciprocal %859 {approx = true} : vector<8x1xf32> -> vector<8x1xf32>
    %861 = vector.broadcast %860 : vector<8x1xf32> to vector<8x8xf32>
    %862 = arith.mulf %857, %861 : vector<8x8xf32>
    %cst_279 = arith.constant dense<0.000000e+00> : vector<8x8xf32>
    %863 = tpu.matmul %862, %847, %cst_279 {dimension_numbers = #tpu.dot_dimension_numbers<[1], [0], [0], [1], [0, 0, 1, 1], [], []>} : vector<8x8xf32>, vector<8x8xf32>, vector<8x8xf32> -> vector<8x8xf32>
    %864 = vector.extract_strided_slice %802 {offsets = [0, 24], sizes = [8, 8], strides = [1, 1]} : vector<8x32xf32> to vector<8x8xf32>
    %865 = vector.extract_strided_slice %803 {offsets = [0, 24], sizes = [8, 8], strides = [1, 1]} : vector<8x32xf32> to vector<8x8xf32>
    %866 = vector.extract_strided_slice %804 {offsets = [0, 24], sizes = [8, 8], strides = [1, 1]} : vector<8x32xf32> to vector<8x8xf32>
    %cst_280 = arith.constant dense<0.000000e+00> : vector<8x8xf32>
    %867 = tpu.matmul %864, %865, %cst_280 {dimension_numbers = #tpu.dot_dimension_numbers<[1], [1], [0], [0], [0, 0, 1, 0], [], []>} : vector<8x8xf32>, vector<8x8xf32>, vector<8x8xf32> -> vector<8x8xf32>
    %cst_281 = arith.constant 0.353553385 : f32
    %868 = vector.broadcast %cst_281 : f32 to vector<8x8xf32>
    %869 = arith.mulf %867, %868 : vector<8x8xf32>
    %870 = vector.broadcast %806 : vector<1x8xf32> to vector<8x8xf32>
    %871 = arith.addf %869, %870 : vector<8x8xf32>
    %cst_282 = arith.constant dense<0xFF800000> : vector<8xf32>
    %872 = vector.multi_reduction <maximumf>, %871, %cst_282 [1] : vector<8x8xf32> to vector<8xf32>
    %873 = vector.shape_cast %872 : vector<8xf32> to vector<8x1xf32>
    %874 = vector.broadcast %873 : vector<8x1xf32> to vector<8x8xf32>
    %875 = arith.subf %871, %874 : vector<8x8xf32>
    %876 = math.exp %875 : vector<8x8xf32>
    %cst_283 = arith.constant dense<0.000000e+00> : vector<8xf32>
    %877 = vector.multi_reduction <add>, %876, %cst_283 [1] : vector<8x8xf32> to vector<8xf32>
    %878 = vector.shape_cast %877 : vector<8xf32> to vector<8x1xf32>
    %879 = tpu.reciprocal %878 {approx = true} : vector<8x1xf32> -> vector<8x1xf32>
    %880 = vector.broadcast %879 : vector<8x1xf32> to vector<8x8xf32>
    %881 = arith.mulf %876, %880 : vector<8x8xf32>
    %cst_284 = arith.constant dense<0.000000e+00> : vector<8x8xf32>
    %882 = tpu.matmul %881, %866, %cst_284 {dimension_numbers = #tpu.dot_dimension_numbers<[1], [0], [0], [1], [0, 0, 1, 1], [], []>} : vector<8x8xf32>, vector<8x8xf32>, vector<8x8xf32> -> vector<8x8xf32>
    %883 = tpu.concatenate %825, %844, %863, %882 in 1 : vector<8x8xf32>, vector<8x8xf32>, vector<8x8xf32>, vector<8x8xf32> -> vector<8x32xf32>
    %884 = tpu.concatenate %801, %883 in 0 : vector<8x32xf32>, vector<8x32xf32> -> vector<16x32xf32>
    %c1_285 = arith.constant 1 : index
    %c0_286 = arith.constant 0 : index
    %c0_287 = arith.constant 0 : index
    %885 = vector.load %arg14[%c1_285, %c0_286, %c0_287] : memref<2x32x32xf32, #tpu.memory_space<vmem>>, vector<1x32x32xf32>
    %886 = vector.shape_cast %885 : vector<1x32x32xf32> to vector<32x32xf32>
    %cst_288 = arith.constant dense<0.000000e+00> : vector<16x32xf32>
    %887 = tpu.matmul %884, %886, %cst_288 {dimension_numbers = #tpu.dot_dimension_numbers<[1], [0], [0], [1], [0, 0, 1, 1], [], []>} : vector<16x32xf32>, vector<32x32xf32>, vector<16x32xf32> -> vector<16x32xf32>
    %888 = arith.addf %678, %887 : vector<16x32xf32>
    %c1_289 = arith.constant 1 : index
    %c0_290 = arith.constant 0 : index
    %c0_291 = arith.constant 0 : index
    %889 = vector.load %arg15[%c1_289, %c0_290, %c0_291] : memref<2x1x32xf32, #tpu.memory_space<vmem>>, vector<1x1x32xf32>
    %890 = vector.shape_cast %889 : vector<1x1x32xf32> to vector<1x32xf32>
    %891 = vector.broadcast %890 : vector<1x32xf32> to vector<16x32xf32>
    %892 = arith.addf %888, %891 : vector<16x32xf32>
    %893 = vector.extract_strided_slice %478 {offsets = [4, 0], sizes = [1, 32], strides = [1, 1]} : vector<6x32xf32> to vector<1x32xf32>
    %894 = vector.extract_strided_slice %478 {offsets = [5, 0], sizes = [1, 32], strides = [1, 1]} : vector<6x32xf32> to vector<1x32xf32>
    %cst_292 = arith.constant dense<0.000000e+00> : vector<16xf32>
    %895 = vector.multi_reduction <add>, %892, %cst_292 [1] : vector<16x32xf32> to vector<16xf32>
    %896 = vector.shape_cast %895 : vector<16xf32> to vector<16x1xf32>
    %cst_293 = arith.constant 3.200000e+01 : f32
    %897 = vector.broadcast %cst_293 : f32 to vector<16x1xf32>
    %898 = arith.divf %896, %897 : vector<16x1xf32>
    %899 = vector.broadcast %898 : vector<16x1xf32> to vector<16x32xf32>
    %900 = arith.subf %892, %899 : vector<16x32xf32>
    %901 = arith.mulf %900, %900 : vector<16x32xf32>
    %cst_294 = arith.constant dense<0.000000e+00> : vector<16xf32>
    %902 = vector.multi_reduction <add>, %901, %cst_294 [1] : vector<16x32xf32> to vector<16xf32>
    %903 = vector.shape_cast %902 : vector<16xf32> to vector<16x1xf32>
    %cst_295 = arith.constant 0.0322580636 : f32
    %904 = vector.broadcast %cst_295 : f32 to vector<16x1xf32>
    %905 = arith.mulf %903, %904 : vector<16x1xf32>
    %906 = math.sqrt %905 : vector<16x1xf32>
    %cst_296 = arith.constant 9.99999997E-7 : f32
    %907 = vector.broadcast %cst_296 : f32 to vector<16x1xf32>
    %908 = arith.addf %906, %907 : vector<16x1xf32>
    %909 = tpu.reciprocal %908 {approx = true} : vector<16x1xf32> -> vector<16x1xf32>
    %910 = vector.broadcast %898 : vector<16x1xf32> to vector<16x32xf32>
    %911 = arith.subf %892, %910 : vector<16x32xf32>
    %912 = vector.broadcast %893 : vector<1x32xf32> to vector<16x32xf32>
    %913 = arith.mulf %912, %911 : vector<16x32xf32>
    %914 = vector.broadcast %909 : vector<16x1xf32> to vector<16x32xf32>
    %915 = arith.mulf %913, %914 : vector<16x32xf32>
    %916 = vector.broadcast %894 : vector<1x32xf32> to vector<16x32xf32>
    %917 = arith.addf %915, %916 : vector<16x32xf32>
    %c1_297 = arith.constant 1 : index
    %c0_298 = arith.constant 0 : index
    %c0_299 = arith.constant 0 : index
    %918 = vector.load %arg16[%c1_297, %c0_298, %c0_299] : memref<2x32x64xf32, #tpu.memory_space<vmem>>, vector<1x32x64xf32>
    %919 = vector.shape_cast %918 : vector<1x32x64xf32> to vector<32x64xf32>
    %cst_300 = arith.constant dense<0.000000e+00> : vector<16x64xf32>
    %920 = tpu.matmul %917, %919, %cst_300 {dimension_numbers = #tpu.dot_dimension_numbers<[1], [0], [0], [1], [0, 0, 1, 1], [], []>} : vector<16x32xf32>, vector<32x64xf32>, vector<16x64xf32> -> vector<16x64xf32>
    %c1_301 = arith.constant 1 : index
    %c0_302 = arith.constant 0 : index
    %c0_303 = arith.constant 0 : index
    %921 = vector.load %arg17[%c1_301, %c0_302, %c0_303] : memref<2x1x64xf32, #tpu.memory_space<vmem>>, vector<1x1x64xf32>
    %922 = vector.shape_cast %921 : vector<1x1x64xf32> to vector<1x64xf32>
    %923 = vector.broadcast %922 : vector<1x64xf32> to vector<16x64xf32>
    %924 = arith.addf %920, %923 : vector<16x64xf32>
    %cst_304 = arith.constant 0.000000e+00 : f32
    %925 = vector.broadcast %cst_304 : f32 to vector<16x64xf32>
    %926 = arith.maximumf %924, %925 : vector<16x64xf32>
    %c1_305 = arith.constant 1 : index
    %c0_306 = arith.constant 0 : index
    %c0_307 = arith.constant 0 : index
    %927 = vector.load %arg18[%c1_305, %c0_306, %c0_307] : memref<2x64x32xf32, #tpu.memory_space<vmem>>, vector<1x64x32xf32>
    %928 = vector.shape_cast %927 : vector<1x64x32xf32> to vector<64x32xf32>
    %cst_308 = arith.constant dense<0.000000e+00> : vector<16x32xf32>
    %929 = tpu.matmul %926, %928, %cst_308 {dimension_numbers = #tpu.dot_dimension_numbers<[1], [0], [0], [1], [0, 0, 1, 1], [], []>} : vector<16x64xf32>, vector<64x32xf32>, vector<16x32xf32> -> vector<16x32xf32>
    %930 = arith.addf %892, %929 : vector<16x32xf32>
    %c1_309 = arith.constant 1 : index
    %c0_310 = arith.constant 0 : index
    %c0_311 = arith.constant 0 : index
    %931 = vector.load %arg19[%c1_309, %c0_310, %c0_311] : memref<2x1x32xf32, #tpu.memory_space<vmem>>, vector<1x1x32xf32>
    %932 = vector.shape_cast %931 : vector<1x1x32xf32> to vector<1x32xf32>
    %933 = vector.broadcast %932 : vector<1x32xf32> to vector<16x32xf32>
    %934 = arith.addf %930, %933 : vector<16x32xf32>
    %c0_312 = arith.constant 0 : index
    %c0_313 = arith.constant 0 : index
    %935 = vector.load %arg20[%c0_312, %c0_313] : memref<2x32xf32, #tpu.memory_space<vmem>>, vector<2x32xf32>
    %936 = vector.extract_strided_slice %935 {offsets = [0, 0], sizes = [1, 32], strides = [1, 1]} : vector<2x32xf32> to vector<1x32xf32>
    %937 = vector.extract_strided_slice %935 {offsets = [1, 0], sizes = [1, 32], strides = [1, 1]} : vector<2x32xf32> to vector<1x32xf32>
    %cst_314 = arith.constant dense<0.000000e+00> : vector<16xf32>
    %938 = vector.multi_reduction <add>, %934, %cst_314 [1] : vector<16x32xf32> to vector<16xf32>
    %939 = vector.shape_cast %938 : vector<16xf32> to vector<16x1xf32>
    %cst_315 = arith.constant 3.200000e+01 : f32
    %940 = vector.broadcast %cst_315 : f32 to vector<16x1xf32>
    %941 = arith.divf %939, %940 : vector<16x1xf32>
    %942 = vector.broadcast %941 : vector<16x1xf32> to vector<16x32xf32>
    %943 = arith.subf %934, %942 : vector<16x32xf32>
    %944 = arith.mulf %943, %943 : vector<16x32xf32>
    %cst_316 = arith.constant dense<0.000000e+00> : vector<16xf32>
    %945 = vector.multi_reduction <add>, %944, %cst_316 [1] : vector<16x32xf32> to vector<16xf32>
    %946 = vector.shape_cast %945 : vector<16xf32> to vector<16x1xf32>
    %cst_317 = arith.constant 0.0322580636 : f32
    %947 = vector.broadcast %cst_317 : f32 to vector<16x1xf32>
    %948 = arith.mulf %946, %947 : vector<16x1xf32>
    %949 = math.sqrt %948 : vector<16x1xf32>
    %cst_318 = arith.constant 9.99999997E-7 : f32
    %950 = vector.broadcast %cst_318 : f32 to vector<16x1xf32>
    %951 = arith.addf %949, %950 : vector<16x1xf32>
    %952 = tpu.reciprocal %951 {approx = true} : vector<16x1xf32> -> vector<16x1xf32>
    %953 = vector.broadcast %941 : vector<16x1xf32> to vector<16x32xf32>
    %954 = arith.subf %934, %953 : vector<16x32xf32>
    %955 = vector.broadcast %936 : vector<1x32xf32> to vector<16x32xf32>
    %956 = arith.mulf %955, %954 : vector<16x32xf32>
    %957 = vector.broadcast %952 : vector<16x1xf32> to vector<16x32xf32>
    %958 = arith.mulf %956, %957 : vector<16x32xf32>
    %959 = vector.broadcast %937 : vector<1x32xf32> to vector<16x32xf32>
    %960 = arith.addf %958, %959 : vector<16x32xf32>
    %c0_319 = arith.constant 0 : index
    %c0_320 = arith.constant 0 : index
    %961 = vector.load %arg21[%c0_319, %c0_320] : memref<16x32xf32, #tpu.memory_space<vmem>>, vector<16x32xf32>
    tpu.vector_store %arg21[%c0_319, %c0_320], %960 {strides = array<i32>} : memref<16x32xf32, #tpu.memory_space<vmem>>, vector<16x32xf32>,
    return
  }
}

</mosaic_0001>

<llo_original>
// kernel: tpu_custom_call.1
$region0: #{tpu_custom_call.1}
  #allocation0 [shape = 'u32[]', space=smem, size = 0x4, offset = 0x4, fixed_abs, tag = 'smem constant byte address 0x4 - core index']
  #allocation1 [shape = 'u32[72,128]{1,0:T(1,128)}', space=vmem, size = 0x9000, scoped, tag = 'internal scratch']
  %s0 = inlined_call_operand.vmem [shape: f32[16,32], index: 0, kind: input, shape index: {}]
  %s1 = inlined_call_operand.vmem [shape: f32[8,32], index: 1, kind: input, shape index: {}]
  %s2 = inlined_call_operand.hbm [shape: f32[16,32], index: 2, kind: input, shape index: {}]
  %s3 = inlined_call_operand.hbm [shape: f32[2,8,8], index: 3, kind: input, shape index: {}]
  %s4 = inlined_call_operand.vmem [shape: f32[2,1,8], index: 4, kind: input, shape index: {}]
  %s5 = inlined_call_operand.vmem [shape: f32[2,6,32], index: 5, kind: input, shape index: {}]
  %s6 = inlined_call_operand.vmem [shape: f32[2,32,96], index: 6, kind: input, shape index: {}]
  %s7 = inlined_call_operand.vmem [shape: f32[2,1,96], index: 7, kind: input, shape index: {}]
  %s8 = inlined_call_operand.vmem [shape: f32[2,32,32], index: 8, kind: input, shape index: {}]
  %s9 = inlined_call_operand.vmem [shape: f32[2,1,32], index: 9, kind: input, shape index: {}]
  %s10 = inlined_call_operand.vmem [shape: f32[2,32,32], index: 10, kind: input, shape index: {}]
  %s11 = inlined_call_operand.vmem [shape: f32[2,1,32], index: 11, kind: input, shape index: {}]
  %s12 = inlined_call_operand.hbm [shape: f32[2,32,64], index: 12, kind: input, shape index: {}]
  %s13 = inlined_call_operand.vmem [shape: f32[2,1,64], index: 13, kind: input, shape index: {}]
  %s14 = inlined_call_operand.hbm [shape: f32[2,32,32], index: 14, kind: input, shape index: {}]
  %s15 = inlined_call_operand.vmem [shape: f32[2,1,32], index: 15, kind: input, shape index: {}]
  %s16 = inlined_call_operand.hbm [shape: f32[2,32,64], index: 16, kind: input, shape index: {}]
  %s17 = inlined_call_operand.vmem [shape: f32[2,1,64], index: 17, kind: input, shape index: {}]
  %s18 = inlined_call_operand.vmem [shape: f32[2,64,32], index: 18, kind: input, shape index: {}]
  %s19 = inlined_call_operand.vmem [shape: f32[2,1,32], index: 19, kind: input, shape index: {}]
  %s20 = inlined_call_operand.vmem [shape: f32[2,32], index: 20, kind: input, shape index: {}]
  %s21 = inlined_call_operand.hbm [shape: f32[16,32], index: 21, kind: output, shape index: {}]
  %s22 = sld [smem:[#allocation0]]
  $region114: #{tpu_custom_call.1} parent=0
    _
  %s24 = ssub.s32 1, %s22
  %s25 = scalar_select 0, %s24, %s22
  $region1: #{tpu_custom_call.1} parent=0
    #allocation2 [shape = 'u8[8192]{0}', space=vmem, size = 0x2000, scoped, tag = 'input window, operand 2, single buffered']
    #allocation3 [shape = 's32[1]{0}', space=sflag, size = 0x4, scoped, tag = 'scoped memory for tpu_custom_call.1']
    #allocation4 [shape = 's32[1]{0}', space=sflag, size = 0x4, scoped, tag = 'scoped memory for tpu_custom_call.1']
    #allocation5 [shape = 'u8[8192]{0}', space=vmem, size = 0x2000, scoped, tag = 'input window, operand 3, single buffered']
    #allocation6 [shape = 's32[1]{0}', space=sflag, size = 0x4, scoped, tag = 'scoped memory for tpu_custom_call.1']
    #allocation7 [shape = 'u8[32768]{0}', space=vmem, size = 0x8000, scoped, tag = 'input window, operand 12, single buffered']
    #allocation8 [shape = 'u8[32768]{0}', space=vmem, size = 0x8000, scoped, tag = 'input window, operand 14, single buffered']
    #allocation9 [shape = 's32[1]{0}', space=sflag, size = 0x4, scoped, tag = 'scoped memory for tpu_custom_call.1']
    #allocation10 [shape = 'u8[32768]{0}', space=vmem, size = 0x8000, scoped, tag = 'input window, operand 16, single buffered']
    #allocation11 [shape = 'u8[8192]{0}', space=vmem, size = 0x2000, scoped, tag = 'output window, operand 0, single buffered']
    %26 = vsyncpa [#allocation3], 0
    %27 = vsyncpa [#allocation6], 0
    %28 = vsyncpa [#allocation9], 0
    %29 = vsyncpa [#allocation4], 0
    // Predicated region
    $region2: #{tpu_custom_call.1} parent=1 // pred_check
      _
    $region3: #{tpu_custom_call.1} parent=1 // pred_check_branch
      %31 = sbr.rel (0) target = $region5
    $region4: #{tpu_custom_call.1} parent=1 // pred_region
      _
    $region5: #{tpu_custom_call.1} parent=1 // pred_fallthru
      _
    // Predicated region
    $region6: #{tpu_custom_call.1} parent=1 // pred_check
      _
    $region7: #{tpu_custom_call.1} parent=1 // pred_check_branch
      %33 = sbr.rel (0) target = $region9
    $region8: #{tpu_custom_call.1} parent=1 // pred_region
      _
    $region9: #{tpu_custom_call.1} parent=1 // pred_fallthru
      _
    // Predicated region
    $region10: #{tpu_custom_call.1} parent=1 // pred_check
      _
    $region11: #{tpu_custom_call.1} parent=1 // pred_check_branch
      %35 = sbr.rel (0) target = $region13
    $region12: #{tpu_custom_call.1} parent=1 // pred_region
      %37 = vsyncadd [#allocation3], 0
      %s38 = sshll.u32 %s2, 4
      %s39 = int_to_ptr.hbm [resolvable:$true] %s38
      %s40 = sshll.u32 [#allocation2], 4
      %s41 = int_to_ptr.vmem [resolvable:$true] %s40
      %46 = dma.hbm_to_vmem [thread:$0]  %s39, 256, %s41, [#allocation3], 128, 128, 8
    $region13: #{tpu_custom_call.1} parent=1 // pred_fallthru
      _
    // Predicated region
    $region14: #{tpu_custom_call.1} parent=1 // pred_check
      _
    $region15: #{tpu_custom_call.1} parent=1 // pred_check_branch
      %48 = sbr.rel (0) target = $region17
    $region16: #{tpu_custom_call.1} parent=1 // pred_region
      %50 = vsyncadd [#allocation6], 0
      %s51 = sshll.u32 %s3, 4
      %s52 = int_to_ptr.hbm [resolvable:$true] %s51
      %s53 = sshll.u32 [#allocation5], 4
      %s54 = int_to_ptr.vmem [resolvable:$true] %s53
      %59 = dma.hbm_to_vmem [thread:$0]  %s52, 256, %s54, [#allocation6], 128, 128, 8
    $region17: #{tpu_custom_call.1} parent=1 // pred_fallthru
      _
    // Predicated region
    $region18: #{tpu_custom_call.1} parent=1 // pred_check
      _
    $region19: #{tpu_custom_call.1} parent=1 // pred_check_branch
      %61 = sbr.rel (0) target = $region21
    $region20: #{tpu_custom_call.1} parent=1 // pred_region
      _
    $region21: #{tpu_custom_call.1} parent=1 // pred_fallthru
      _
    // Predicated region
    $region22: #{tpu_custom_call.1} parent=1 // pred_check
      _
    $region23: #{tpu_custom_call.1} parent=1 // pred_check_branch
      %63 = sbr.rel (0) target = $region25
    $region24: #{tpu_custom_call.1} parent=1 // pred_region
      _
    $region25: #{tpu_custom_call.1} parent=1 // pred_fallthru
      _
    // Predicated region
    $region26: #{tpu_custom_call.1} parent=1 // pred_check
      _
    $region27: #{tpu_custom_call.1} parent=1 // pred_check_branch
      %65 = sbr.rel (0) target = $region29
    $region28: #{tpu_custom_call.1} parent=1 // pred_region
      _
    $region29: #{tpu_custom_call.1} parent=1 // pred_fallthru
      _
    // Predicated region
    $region30: #{tpu_custom_call.1} parent=1 // pred_check
      _
    $region31: #{tpu_custom_call.1} parent=1 // pred_check_branch
      %67 = sbr.rel (0) target = $region33
    $region32: #{tpu_custom_call.1} parent=1 // pred_region
      _
    $region33: #{tpu_custom_call.1} parent=1 // pred_fallthru
      _
    // Predicated region
    $region34: #{tpu_custom_call.1} parent=1 // pred_check
      _
    $region35: #{tpu_custom_call.1} parent=1 // pred_check_branch
      %69 = sbr.rel (0) target = $region37
    $region36: #{tpu_custom_call.1} parent=1 // pred_region
      _
    $region37: #{tpu_custom_call.1} parent=1 // pred_fallthru
      _
    // Predicated region
    $region38: #{tpu_custom_call.1} parent=1 // pred_check
      _
    $region39: #{tpu_custom_call.1} parent=1 // pred_check_branch
      %71 = sbr.rel (0) target = $region41
    $region40: #{tpu_custom_call.1} parent=1 // pred_region
      _
    $region41: #{tpu_custom_call.1} parent=1 // pred_fallthru
      _
    // Predicated region
    $region42: #{tpu_custom_call.1} parent=1 // pred_check
      _
    $region43: #{tpu_custom_call.1} parent=1 // pred_check_branch
      %73 = sbr.rel (0) target = $region45
    $region44: #{tpu_custom_call.1} parent=1 // pred_region
      _
    $region45: #{tpu_custom_call.1} parent=1 // pred_fallthru
      _
    // Predicated region
    $region46: #{tpu_custom_call.1} parent=1 // pred_check
      _
    $region47: #{tpu_custom_call.1} parent=1 // pred_check_branch
      %75 = sbr.rel (0) target = $region49
    $region48: #{tpu_custom_call.1} parent=1 // pred_region
      _
    $region49: #{tpu_custom_call.1} parent=1 // pred_fallthru
      _
    // Predicated region
    $region50: #{tpu_custom_call.1} parent=1 // pred_check
      _
    $region51: #{tpu_custom_call.1} parent=1 // pred_check_branch
      %77 = sbr.rel (0) target = $region53
    $region52: #{tpu_custom_call.1} parent=1 // pred_region
      %79 = vsyncadd [#allocation6], 0
      %s80 = sshll.u32 %s12, 4
      %s81 = int_to_ptr.hbm [resolvable:$true] %s80
      %s82 = sshll.u32 [#allocation7], 4
      %s83 = int_to_ptr.vmem [resolvable:$true] %s82
      %88 = dma.hbm_to_vmem [thread:$0]  %s81, 1024, %s83, [#allocation6], 128, 128, 8
    $region53: #{tpu_custom_call.1} parent=1 // pred_fallthru
      _
    // Predicated region
    $region54: #{tpu_custom_call.1} parent=1 // pred_check
      _
    $region55: #{tpu_custom_call.1} parent=1 // pred_check_branch
      %90 = sbr.rel (0) target = $region57
    $region56: #{tpu_custom_call.1} parent=1 // pred_region
      _
    $region57: #{tpu_custom_call.1} parent=1 // pred_fallthru
      _
    // Predicated region
    $region58: #{tpu_custom_call.1} parent=1 // pred_check
      _
    $region59: #{tpu_custom_call.1} parent=1 // pred_check_branch
      %92 = sbr.rel (0) target = $region61
    $region60: #{tpu_custom_call.1} parent=1 // pred_region
      %94 = vsyncadd [#allocation9], 0
      %s95 = sshll.u32 %s14, 4
      %s96 = int_to_ptr.hbm [resolvable:$true] %s95
      %s97 = sshll.u32 [#allocation8], 4
      %s98 = int_to_ptr.vmem [resolvable:$true] %s97
      %103 = dma.hbm_to_vmem [thread:$0]  %s96, 1024, %s98, [#allocation9], 128, 128, 8
    $region61: #{tpu_custom_call.1} parent=1 // pred_fallthru
      _
    // Predicated region
    $region62: #{tpu_custom_call.1} parent=1 // pred_check
      _
    $region63: #{tpu_custom_call.1} parent=1 // pred_check_branch
      %105 = sbr.rel (0) target = $region65
    $region64: #{tpu_custom_call.1} parent=1 // pred_region
      _
    $region65: #{tpu_custom_call.1} parent=1 // pred_fallthru
      _
    // Predicated region
    $region66: #{tpu_custom_call.1} parent=1 // pred_check
      _
    $region67: #{tpu_custom_call.1} parent=1 // pred_check_branch
      %107 = sbr.rel (0) target = $region69
    $region68: #{tpu_custom_call.1} parent=1 // pred_region
      %109 = vsyncadd [#allocation9], 0
      %s110 = sshll.u32 %s16, 4
      %s111 = int_to_ptr.hbm [resolvable:$true] %s110
      %s112 = sshll.u32 [#allocation10], 4
      %s113 = int_to_ptr.vmem [resolvable:$true] %s112
      %118 = dma.hbm_to_vmem [thread:$0]  %s111, 1024, %s113, [#allocation9], 128, 128, 8
    $region69: #{tpu_custom_call.1} parent=1 // pred_fallthru
      _
    // Predicated region
    $region70: #{tpu_custom_call.1} parent=1 // pred_check
      _
    $region71: #{tpu_custom_call.1} parent=1 // pred_check_branch
      %120 = sbr.rel (0) target = $region73
    $region72: #{tpu_custom_call.1} parent=1 // pred_region
      _
    $region73: #{tpu_custom_call.1} parent=1 // pred_fallthru
      _
    // Predicated region
    $region74: #{tpu_custom_call.1} parent=1 // pred_check
      _
    $region75: #{tpu_custom_call.1} parent=1 // pred_check_branch
      %122 = sbr.rel (0) target = $region77
    $region76: #{tpu_custom_call.1} parent=1 // pred_region
      _
    $region77: #{tpu_custom_call.1} parent=1 // pred_fallthru
      _
    // Predicated region
    $region78: #{tpu_custom_call.1} parent=1 // pred_check
      _
    $region79: #{tpu_custom_call.1} parent=1 // pred_check_branch
      %124 = sbr.rel (0) target = $region81
    $region80: #{tpu_custom_call.1} parent=1 // pred_region
      _
    $region81: #{tpu_custom_call.1} parent=1 // pred_fallthru
      _
    // Predicated region
    $region82: #{tpu_custom_call.1} parent=1 // pred_check
      _
    $region83: #{tpu_custom_call.1} parent=1 // pred_check_branch
      %126 = sbr.rel (0) target = $region85
    $region84: #{tpu_custom_call.1} parent=1 // pred_region
      _
    $region85: #{tpu_custom_call.1} parent=1 // pred_fallthru
      _
    // Predicated region
    $region86: #{tpu_custom_call.1} parent=1 // pred_check
      _
    $region87: #{tpu_custom_call.1} parent=1 // pred_check_branch
      %128 = sbr.rel (0) target = $region89
    $region88: #{tpu_custom_call.1} parent=1 // pred_region
      %130 = dma.done [#allocation3], 256
    $region89: #{tpu_custom_call.1} parent=1 // pred_fallthru
      _
    // Predicated region
    $region90: #{tpu_custom_call.1} parent=1 // pred_check
      _
    $region91: #{tpu_custom_call.1} parent=1 // pred_check_branch
      %132 = sbr.rel (0) target = $region93
    $region92: #{tpu_custom_call.1} parent=1 // pred_region
      %134 = dma.done [#allocation6], 256
    $region93: #{tpu_custom_call.1} parent=1 // pred_fallthru
      _
    // Predicated region
    $region94: #{tpu_custom_call.1} parent=1 // pred_check
      _
    $region95: #{tpu_custom_call.1} parent=1 // pred_check_branch
      %136 = sbr.rel (0) target = $region97
    $region96: #{tpu_custom_call.1} parent=1 // pred_region
      %138 = dma.done [#allocation6], 1024
    $region97: #{tpu_custom_call.1} parent=1 // pred_fallthru
      _
    // Predicated region
    $region98: #{tpu_custom_call.1} parent=1 // pred_check
      _
    $region99: #{tpu_custom_call.1} parent=1 // pred_check_branch
      %140 = sbr.rel (0) target = $region101
    $region100: #{tpu_custom_call.1} parent=1 // pred_region
      %142 = dma.done [#allocation9], 1024
    $region101: #{tpu_custom_call.1} parent=1 // pred_fallthru
      _
    // Predicated region
    $region102: #{tpu_custom_call.1} parent=1 // pred_check
      _
    $region103: #{tpu_custom_call.1} parent=1 // pred_check_branch
      %144 = sbr.rel (0) target = $region105
    $region104: #{tpu_custom_call.1} parent=1 // pred_region
      %146 = dma.done [#allocation9], 1024
    $region105: #{tpu_custom_call.1} parent=1 // pred_fallthru
      _
    %v147 = vld [vmem:[%s1] sm:$0xff]
    %v148 = vld [vmem:[%s0] sm:$0xff]
    %v149 = vld [vmem:[%s0 + $0x8] sm:$0xff]
    %v150 = vmul.f32 %v148, 5.656854
    %v151 = vmul.f32 %v149, 5.656854
    %v152 = vadd.f32 %v150, %v147
    %v153 = vadd.f32 %v151, %v147
    %v154 = vld [vmem:[#allocation2] sm:$0xff]
    %v155 = vld [vmem:[#allocation2 + $0x8] sm:$0xff]
    %v156 = vld [vmem:[#allocation5] sm:$0xff]
    %v157 = vld [vmem:[#allocation5 + $0x8] sm:$0xff]
    %vm158 = vcmp.eq.f32.partialorder %v156, 0.0
    %vm159 = vcmp.eq.f32.partialorder %v157, 0.0
    %v160 = vsel %vm158, -1e+09, 0.0
    %v161 = vsel %vm159, -1e+09, 0.0
    %v162 = vld [vmem:[%s4] sm:$0x1]
    %v163 = vld [vmem:[%s4 + $0x1] sm:$0x1]
    %vm164 = vcmp.eq.f32.partialorder %v162, 0.0
    %vm165 = vcmp.eq.f32.partialorder %v163, 0.0
    %v166 = vsel %vm164, -1e+09, 0.0
    %v167 = vsel %vm165, -1e+09, 0.0
    %v168 = vld [vmem:[%s5] sm:$0x3f]
    %vm169 = vcmask 261120
    %v170 = vsel %vm169, %v152, 0.0
    %171 = vadd.xlane.f32.xlu0 %v170
    %v172 = vpop.xlane.xlu0 %171
    %v173 = vsel %vm169, %v153, 0.0
    %174 = vadd.xlane.f32.xlu0 %v173
    %v175 = vpop.xlane.xlu0 %174
    %v176 = vrcp.pop 32.0
    %v177 = vmul.f32 32.0, %v176
    %v178 = vsub.f32 1.0, %v177
    %v179 = vmul.f32 %v176, %v178
    %v180 = vadd.f32 %v176, %v179
    %vm181 = vweird.f32 %v176
    %v182 = vsel %vm181, %v176, %v180
    %v183 = vmul.f32 %v172, %v182
    %v184 = vmul.f32 %v175, %v182
    %v185 = vsub.f32 %v152, %v183
    %v186 = vsub.f32 %v153, %v184
    %v187 = vmul.f32 %v185, %v185
    %v188 = vmul.f32 %v186, %v186
    %v189 = vsel %vm169, %v187, 0.0
    %190 = vadd.xlane.f32.xlu0 %v189
    %v191 = vpop.xlane.xlu0 %190
    %v192 = vsel %vm169, %v188, 0.0
    %193 = vadd.xlane.f32.xlu0 %v192
    %v194 = vpop.xlane.xlu0 %193
    %v195 = vmul.f32 %v191, 0.032258064
    %v196 = vmul.f32 %v194, 0.032258064
    %v197 = vrsqrt.pop %v195
    %v198 = vmul.f32 %v197, %v195
    %v199 = vmul.f32 %v198, %v197
    %v200 = vmul.f32 0.5, %v199
    %v201 = vsub.f32 1.5, %v200
    %v202 = vmul.f32 %v197, %v201
    %v203 = vmul.f32 %v195, %v202
    %vm204 = vcmp.eq.f32.partialorder %v195, inf
    %v205 = vsel %vm204, %v195, %v203
    %vm206 = vcmp.eq.f32.partialorder %v195, 0.0
    %v207 = vand.u32 %v195, 2147483648
    %v208 = vsel %vm206, %v207, %v205
    %v209 = vrsqrt.pop %v196
    %v210 = vmul.f32 %v209, %v196
    %v211 = vmul.f32 %v210, %v209
    %v212 = vmul.f32 0.5, %v211
    %v213 = vsub.f32 1.5, %v212
    %v214 = vmul.f32 %v209, %v213
    %v215 = vmul.f32 %v196, %v214
    %vm216 = vcmp.eq.f32.partialorder %v196, inf
    %v217 = vsel %vm216, %v196, %v215
    %vm218 = vcmp.eq.f32.partialorder %v196, 0.0
    %v219 = vand.u32 %v196, 2147483648
    %v220 = vsel %vm218, %v219, %v217
    %v221 = vadd.f32 %v208, 1e-06
    %v222 = vadd.f32 %v220, 1e-06
    %v223 = vrcp.pop %v221
    %v224 = vrcp.pop %v222
    %v225 = vperm.slane %v168, 0
    %v226 = vmul.f32 %v225, %v185
    %v227 = vmul.f32 %v225, %v186
    %v228 = vmul.f32 %v226, %v223
    %v229 = vmul.f32 %v227, %v224
    %v230 = vperm.slane %v168, 1
    %v231 = vadd.f32 %v228, %v230
    %v232 = vadd.f32 %v229, %v230
    %v233 = vld [vmem:[%s6] sm:$0xff]
    %v234 = vld [vmem:[%s6 + $0x8] sm:$0xff]
    %v235 = vld [vmem:[%s6 + $0x10] sm:$0xff]
    %v236 = vld [vmem:[%s6 + $0x18] sm:$0xff]
    %v237 = vld [vmem:[%s7] sm:$0x1]
    %v239 = vperm.slane %v237, 0
    %v242 = vsel %vm169, %v231, 0
    %v245 = vsel %vm169, %v232, 0
    %247 = vmatpush.msra.mxu0 0.0
    %248 = vmatpush.msra.mxu0 0.0
    %249 = vmatpush.msra.mxu0 0.0
    %250 = vmatpush.msra.mxu0 0.0
    %251 = vmatpush.msra.mxu0 0.0
    %252 = vmatpush.msra.mxu0 0.0
    %253 = vmatpush.msra.mxu0 0.0
    %254 = vmatpush.msra.mxu0 0.0
    %255 = vmatpush.msra.mxu0 0.0
    %256 = vmatpush.msra.mxu0 0.0
    %257 = vmatpush.msra.mxu0 0.0
    %258 = vmatpush.msra.mxu0 0.0
    %259 = vmatpush.msra.mxu0 %v236
    %260 = vmatpush.msra.mxu0 %v235
    %261 = vmatpush.msra.mxu0 %v234
    %262 = vmatpush.msra.mxu0 %v233
    %263 = vmatmul.f32.gmra.mxu0 %v242
    %v264 = vpop.f32.mrf.mxu0
    %v265 = vadd.f32 %v239, %v264
    %266 = vmatmul.f32.gmra.mxu0 %v245
    %v267 = vpop.f32.mrf.mxu0
    %v268 = vadd.f32 %v239, %v267
    %269 = vdwg.mxu0
    %271 = vrot.lane.b32.xlu0 %v265, 96
    %v272 = vpop.permute.xlu0 %271
    %vm273 = vcmask 64512
    %v274 = vsel %vm273, %v265, 0
    %v276 = vsel %vm273, %v272, 0
    %278 = vmatpush.xpose.msra.mxu0 0.0
    %279 = vmatpush.xpose.msra.mxu0 0.0
    %280 = vmatpush.xpose.msra.mxu0 0.0
    %281 = vmatpush.xpose.msra.mxu0 0.0
    %282 = vmatpush.xpose.msra.mxu0 0.0
    %283 = vmatpush.xpose.msra.mxu0 0.0
    %284 = vmatpush.xpose.msra.mxu0 0.0
    %285 = vmatpush.xpose.msra.mxu0 0.0
    %286 = vmatpush.xpose.msra.mxu0 0.0
    %287 = vmatpush.xpose.msra.mxu0 0.0
    %288 = vmatpush.xpose.msra.mxu0 0.0
    %289 = vmatpush.xpose.msra.mxu0 0.0
    %290 = vmatpush.xpose.msra.mxu0 0.0
    %291 = vmatpush.xpose.msra.mxu0 0.0
    %292 = vmatpush.xpose.msra.mxu0 0.0
    %293 = vmatpush.xpose.msra.mxu0 %v276
    %294 = vmatmul.f32.gmra.mxu0 %v274
    %v295 = vpop.f32.mrf.mxu0
    %v296 = vadd.f32 0.0, %v295
    %297 = vdwg.mxu0
    %v298 = vmul.f32 %v296, 0.35355338
    %v299 = vadd.f32 %v298, %v160
    %v300 = vsel %vm273, %v299, -inf
    %301 = vmax.xlane.f32.xlu0 %v300
    %v302 = vpop.xlane.xlu0 %301
    %v303 = vsub.f32 %v299, %v302
    %v304 = vmul.f32 %v303, 1.442695
    %v305 = vpow.pop %v304
    %v306 = vsel %vm273, %v305, 0.0
    %307 = vadd.xlane.f32.xlu0 %v306
    %v308 = vpop.xlane.xlu0 %307
    %v309 = vrcp.pop %v308
    %v310 = vmul.f32 %v305, %v309
    %311 = vrot.lane.b32.xlu0 %v265, 64
    %v312 = vpop.permute.xlu0 %311
    %v315 = vsel %vm273, %v310, 0
    %317 = vmatpush.msra.mxu0 0.0
    %318 = vmatpush.msra.mxu0 0.0
    %319 = vmatpush.msra.mxu0 0.0
    %320 = vmatpush.msra.mxu0 0.0
    %321 = vmatpush.msra.mxu0 0.0
    %322 = vmatpush.msra.mxu0 0.0
    %323 = vmatpush.msra.mxu0 0.0
    %324 = vmatpush.msra.mxu0 0.0
    %325 = vmatpush.msra.mxu0 0.0
    %326 = vmatpush.msra.mxu0 0.0
    %327 = vmatpush.msra.mxu0 0.0
    %328 = vmatpush.msra.mxu0 0.0
    %329 = vmatpush.msra.mxu0 0.0
    %330 = vmatpush.msra.mxu0 0.0
    %331 = vmatpush.msra.mxu0 0.0
    %332 = vmatpush.msra.mxu0 %v312
    %333 = vmatmul.f32.gmra.mxu0 %v315
    %v334 = vpop.f32.mrf.mxu0
    %v335 = vadd.f32 0.0, %v334
    %336 = vdwg.mxu0
    %337 = vrot.lane.b32.xlu0 %v265, 120
    %v338 = vpop.permute.xlu0 %337
    %339 = vrot.lane.b32.xlu0 %v265, 88
    %v340 = vpop.permute.xlu0 %339
    %v341 = vsel %vm273, %v338, 0
    %v343 = vsel %vm273, %v340, 0
    %345 = vmatpush.xpose.msra.mxu0 0.0
    %346 = vmatpush.xpose.msra.mxu0 0.0
    %347 = vmatpush.xpose.msra.mxu0 0.0
    %348 = vmatpush.xpose.msra.mxu0 0.0
    %349 = vmatpush.xpose.msra.mxu0 0.0
    %350 = vmatpush.xpose.msra.mxu0 0.0
    %351 = vmatpush.xpose.msra.mxu0 0.0
    %352 = vmatpush.xpose.msra.mxu0 0.0
    %353 = vmatpush.xpose.msra.mxu0 0.0
    %354 = vmatpush.xpose.msra.mxu0 0.0
    %355 = vmatpush.xpose.msra.mxu0 0.0
    %356 = vmatpush.xpose.msra.mxu0 0.0
    %357 = vmatpush.xpose.msra.mxu0 0.0
    %358 = vmatpush.xpose.msra.mxu0 0.0
    %359 = vmatpush.xpose.msra.mxu0 0.0
    %360 = vmatpush.xpose.msra.mxu0 %v343
    %361 = vmatmul.f32.gmra.mxu0 %v341
    %v362 = vpop.f32.mrf.mxu0
    %v363 = vadd.f32 0.0, %v362
    %364 = vdwg.mxu0
    %v365 = vmul.f32 %v363, 0.35355338
    %v366 = vadd.f32 %v365, %v160
    %v367 = vsel %vm273, %v366, -inf
    %368 = vmax.xlane.f32.xlu0 %v367
    %v369 = vpop.xlane.xlu0 %368
    %v370 = vsub.f32 %v366, %v369
    %v371 = vmul.f32 %v370, 1.442695
    %v372 = vpow.pop %v371
    %v373 = vsel %vm273, %v372, 0.0
    %374 = vadd.xlane.f32.xlu0 %v373
    %v375 = vpop.xlane.xlu0 %374
    %v376 = vrcp.pop %v375
    %v377 = vmul.f32 %v372, %v376
    %378 = vrot.lane.b32.xlu0 %v265, 56
    %v379 = vpop.permute.xlu0 %378
    %v382 = vsel %vm273, %v377, 0
    %384 = vmatpush.msra.mxu0 0.0
    %385 = vmatpush.msra.mxu0 0.0
    %386 = vmatpush.msra.mxu0 0.0
    %387 = vmatpush.msra.mxu0 0.0
    %388 = vmatpush.msra.mxu0 0.0
    %389 = vmatpush.msra.mxu0 0.0
    %390 = vmatpush.msra.mxu0 0.0
    %391 = vmatpush.msra.mxu0 0.0
    %392 = vmatpush.msra.mxu0 0.0
    %393 = vmatpush.msra.mxu0 0.0
    %394 = vmatpush.msra.mxu0 0.0
    %395 = vmatpush.msra.mxu0 0.0
    %396 = vmatpush.msra.mxu0 0.0
    %397 = vmatpush.msra.mxu0 0.0
    %398 = vmatpush.msra.mxu0 0.0
    %399 = vmatpush.msra.mxu0 %v379
    %400 = vmatmul.f32.gmra.mxu0 %v382
    %v401 = vpop.f32.mrf.mxu0
    %v402 = vadd.f32 0.0, %v401
    %403 = vdwg.mxu0
    %404 = vrot.lane.b32.xlu0 %v265, 112
    %v405 = vpop.permute.xlu0 %404
    %406 = vrot.lane.b32.xlu0 %v265, 80
    %v407 = vpop.permute.xlu0 %406
    %v408 = vsel %vm273, %v405, 0
    %v410 = vsel %vm273, %v407, 0
    %412 = vmatpush.xpose.msra.mxu0 0.0
    %413 = vmatpush.xpose.msra.mxu0 0.0
    %414 = vmatpush.xpose.msra.mxu0 0.0
    %415 = vmatpush.xpose.msra.mxu0 0.0
    %416 = vmatpush.xpose.msra.mxu0 0.0
    %417 = vmatpush.xpose.msra.mxu0 0.0
    %418 = vmatpush.xpose.msra.mxu0 0.0
    %419 = vmatpush.xpose.msra.mxu0 0.0
    %420 = vmatpush.xpose.msra.mxu0 0.0
    %421 = vmatpush.xpose.msra.mxu0 0.0
    %422 = vmatpush.xpose.msra.mxu0 0.0
    %423 = vmatpush.xpose.msra.mxu0 0.0
    %424 = vmatpush.xpose.msra.mxu0 0.0
    %425 = vmatpush.xpose.msra.mxu0 0.0
    %426 = vmatpush.xpose.msra.mxu0 0.0
    %427 = vmatpush.xpose.msra.mxu0 %v410
    %428 = vmatmul.f32.gmra.mxu0 %v408
    %v429 = vpop.f32.mrf.mxu0
    %v430 = vadd.f32 0.0, %v429
    %431 = vdwg.mxu0
    %v432 = vmul.f32 %v430, 0.35355338
    %v433 = vadd.f32 %v432, %v160
    %v434 = vsel %vm273, %v433, -inf
    %435 = vmax.xlane.f32.xlu0 %v434
    %v436 = vpop.xlane.xlu0 %435
    %v437 = vsub.f32 %v433, %v436
    %v438 = vmul.f32 %v437, 1.442695
    %v439 = vpow.pop %v438
    %v440 = vsel %vm273, %v439, 0.0
    %441 = vadd.xlane.f32.xlu0 %v440
    %v442 = vpop.xlane.xlu0 %441
    %v443 = vrcp.pop %v442
    %v444 = vmul.f32 %v439, %v443
    %445 = vrot.lane.b32.xlu0 %v265, 48
    %v446 = vpop.permute.xlu0 %445
    %v449 = vsel %vm273, %v444, 0
    %451 = vmatpush.msra.mxu0 0.0
    %452 = vmatpush.msra.mxu0 0.0
    %453 = vmatpush.msra.mxu0 0.0
    %454 = vmatpush.msra.mxu0 0.0
    %455 = vmatpush.msra.mxu0 0.0
    %456 = vmatpush.msra.mxu0 0.0
    %457 = vmatpush.msra.mxu0 0.0
    %458 = vmatpush.msra.mxu0 0.0
    %459 = vmatpush.msra.mxu0 0.0
    %460 = vmatpush.msra.mxu0 0.0
    %461 = vmatpush.msra.mxu0 0.0
    %462 = vmatpush.msra.mxu0 0.0
    %463 = vmatpush.msra.mxu0 0.0
    %464 = vmatpush.msra.mxu0 0.0
    %465 = vmatpush.msra.mxu0 0.0
    %466 = vmatpush.msra.mxu0 %v446
    %467 = vmatmul.f32.gmra.mxu0 %v449
    %v468 = vpop.f32.mrf.mxu0
    %v469 = vadd.f32 0.0, %v468
    %470 = vdwg.mxu0
    %471 = vrot.lane.b32.xlu0 %v265, 104
    %v472 = vpop.permute.xlu0 %471
    %473 = vrot.lane.b32.xlu0 %v265, 72
    %v474 = vpop.permute.xlu0 %473
    %v475 = vsel %vm273, %v472, 0
    %v477 = vsel %vm273, %v474, 0
    %479 = vmatpush.xpose.msra.mxu0 0.0
    %480 = vmatpush.xpose.msra.mxu0 0.0
    %481 = vmatpush.xpose.msra.mxu0 0.0
    %482 = vmatpush.xpose.msra.mxu0 0.0
    %483 = vmatpush.xpose.msra.mxu0 0.0
    %484 = vmatpush.xpose.msra.mxu0 0.0
    %485 = vmatpush.xpose.msra.mxu0 0.0
    %486 = vmatpush.xpose.msra.mxu0 0.0
    %487 = vmatpush.xpose.msra.mxu0 0.0
    %488 = vmatpush.xpose.msra.mxu0 0.0
    %489 = vmatpush.xpose.msra.mxu0 0.0
    %490 = vmatpush.xpose.msra.mxu0 0.0
    %491 = vmatpush.xpose.msra.mxu0 0.0
    %492 = vmatpush.xpose.msra.mxu0 0.0
    %493 = vmatpush.xpose.msra.mxu0 0.0
    %494 = vmatpush.xpose.msra.mxu0 %v477
    %495 = vmatmul.f32.gmra.mxu0 %v475
    %v496 = vpop.f32.mrf.mxu0
    %v497 = vadd.f32 0.0, %v496
    %498 = vdwg.mxu0
    %v499 = vmul.f32 %v497, 0.35355338
    %v500 = vadd.f32 %v499, %v160
    %v501 = vsel %vm273, %v500, -inf
    %502 = vmax.xlane.f32.xlu0 %v501
    %v503 = vpop.xlane.xlu0 %502
    %v504 = vsub.f32 %v500, %v503
    %v505 = vmul.f32 %v504, 1.442695
    %v506 = vpow.pop %v505
    %v507 = vsel %vm273, %v506, 0.0
    %508 = vadd.xlane.f32.xlu0 %v507
    %v509 = vpop.xlane.xlu0 %508
    %v510 = vrcp.pop %v509
    %v511 = vmul.f32 %v506, %v510
    %512 = vrot.lane.b32.xlu0 %v265, 40
    %v513 = vpop.permute.xlu0 %512
    %v516 = vsel %vm273, %v511, 0
    %518 = vmatpush.msra.mxu0 0.0
    %519 = vmatpush.msra.mxu0 0.0
    %520 = vmatpush.msra.mxu0 0.0
    %521 = vmatpush.msra.mxu0 0.0
    %522 = vmatpush.msra.mxu0 0.0
    %523 = vmatpush.msra.mxu0 0.0
    %524 = vmatpush.msra.mxu0 0.0
    %525 = vmatpush.msra.mxu0 0.0
    %526 = vmatpush.msra.mxu0 0.0
    %527 = vmatpush.msra.mxu0 0.0
    %528 = vmatpush.msra.mxu0 0.0
    %529 = vmatpush.msra.mxu0 0.0
    %530 = vmatpush.msra.mxu0 0.0
    %531 = vmatpush.msra.mxu0 0.0
    %532 = vmatpush.msra.mxu0 0.0
    %533 = vmatpush.msra.mxu0 %v513
    %534 = vmatmul.f32.gmra.mxu0 %v516
    %v535 = vpop.f32.mrf.mxu0
    %v536 = vadd.f32 0.0, %v535
    %537 = vdwg.mxu0
    %539 = vrot.lane.b32.xlu0 %v402, 8
    %v540 = vpop.permute.xlu0 %539
    %543 = vrot.lane.b32.xlu0 %v469, 16
    %v544 = vpop.permute.xlu0 %543
    %547 = vrot.lane.b32.xlu0 %v536, 24
    %v548 = vpop.permute.xlu0 %547
    %v550 = vsel %vm273, %v335, %v540
    %vm551 = vcmask 130048
    %v552 = vsel %vm551, %v550, %v544
    %vm553 = vcmask 195584
    %v554 = vsel %vm553, %v552, %v548
    %556 = vrot.lane.b32.xlu0 %v268, 96
    %v557 = vpop.permute.xlu0 %556
    %v558 = vsel %vm273, %v268, 0
    %v560 = vsel %vm273, %v557, 0
    %562 = vmatpush.xpose.msra.mxu0 0.0
    %563 = vmatpush.xpose.msra.mxu0 0.0
    %564 = vmatpush.xpose.msra.mxu0 0.0
    %565 = vmatpush.xpose.msra.mxu0 0.0
    %566 = vmatpush.xpose.msra.mxu0 0.0
    %567 = vmatpush.xpose.msra.mxu0 0.0
    %568 = vmatpush.xpose.msra.mxu0 0.0
    %569 = vmatpush.xpose.msra.mxu0 0.0
    %570 = vmatpush.xpose.msra.mxu0 0.0
    %571 = vmatpush.xpose.msra.mxu0 0.0
    %572 = vmatpush.xpose.msra.mxu0 0.0
    %573 = vmatpush.xpose.msra.mxu0 0.0
    %574 = vmatpush.xpose.msra.mxu0 0.0
    %575 = vmatpush.xpose.msra.mxu0 0.0
    %576 = vmatpush.xpose.msra.mxu0 0.0
    %577 = vmatpush.xpose.msra.mxu0 %v560
    %578 = vmatmul.f32.gmra.mxu0 %v558
    %v579 = vpop.f32.mrf.mxu0
    %v580 = vadd.f32 0.0, %v579
    %581 = vdwg.mxu0
    %v582 = vmul.f32 %v580, 0.35355338
    %v583 = vadd.f32 %v582, %v161
    %v584 = vsel %vm273, %v583, -inf
    %585 = vmax.xlane.f32.xlu0 %v584
    %v586 = vpop.xlane.xlu0 %585
    %v587 = vsub.f32 %v583, %v586
    %v588 = vmul.f32 %v587, 1.442695
    %v589 = vpow.pop %v588
    %v590 = vsel %vm273, %v589, 0.0
    %591 = vadd.xlane.f32.xlu0 %v590
    %v592 = vpop.xlane.xlu0 %591
    %v593 = vrcp.pop %v592
    %v594 = vmul.f32 %v589, %v593
    %595 = vrot.lane.b32.xlu0 %v268, 64
    %v596 = vpop.permute.xlu0 %595
    %v599 = vsel %vm273, %v594, 0
    %601 = vmatpush.msra.mxu0 0.0
    %602 = vmatpush.msra.mxu0 0.0
    %603 = vmatpush.msra.mxu0 0.0
    %604 = vmatpush.msra.mxu0 0.0
    %605 = vmatpush.msra.mxu0 0.0
    %606 = vmatpush.msra.mxu0 0.0
    %607 = vmatpush.msra.mxu0 0.0
    %608 = vmatpush.msra.mxu0 0.0
    %609 = vmatpush.msra.mxu0 0.0
    %610 = vmatpush.msra.mxu0 0.0
    %611 = vmatpush.msra.mxu0 0.0
    %612 = vmatpush.msra.mxu0 0.0
    %613 = vmatpush.msra.mxu0 0.0
    %614 = vmatpush.msra.mxu0 0.0
    %615 = vmatpush.msra.mxu0 0.0
    %616 = vmatpush.msra.mxu0 %v596
    %617 = vmatmul.f32.gmra.mxu0 %v599
    %v618 = vpop.f32.mrf.mxu0
    %v619 = vadd.f32 0.0, %v618
    %620 = vdwg.mxu0
    %621 = vrot.lane.b32.xlu0 %v268, 120
    %v622 = vpop.permute.xlu0 %621
    %623 = vrot.lane.b32.xlu0 %v268, 88
    %v624 = vpop.permute.xlu0 %623
    %v625 = vsel %vm273, %v622, 0
    %v627 = vsel %vm273, %v624, 0
    %629 = vmatpush.xpose.msra.mxu0 0.0
    %630 = vmatpush.xpose.msra.mxu0 0.0
    %631 = vmatpush.xpose.msra.mxu0 0.0
    %632 = vmatpush.xpose.msra.mxu0 0.0
    %633 = vmatpush.xpose.msra.mxu0 0.0
    %634 = vmatpush.xpose.msra.mxu0 0.0
    %635 = vmatpush.xpose.msra.mxu0 0.0
    %636 = vmatpush.xpose.msra.mxu0 0.0
    %637 = vmatpush.xpose.msra.mxu0 0.0
    %638 = vmatpush.xpose.msra.mxu0 0.0
    %639 = vmatpush.xpose.msra.mxu0 0.0
    %640 = vmatpush.xpose.msra.mxu0 0.0
    %641 = vmatpush.xpose.msra.mxu0 0.0
    %642 = vmatpush.xpose.msra.mxu0 0.0
    %643 = vmatpush.xpose.msra.mxu0 0.0
    %644 = vmatpush.xpose.msra.mxu0 %v627
    %645 = vmatmul.f32.gmra.mxu0 %v625
    %v646 = vpop.f32.mrf.mxu0
    %v647 = vadd.f32 0.0, %v646
    %648 = vdwg.mxu0
    %v649 = vmul.f32 %v647, 0.35355338
    %v650 = vadd.f32 %v649, %v161
    %v651 = vsel %vm273, %v650, -inf
    %652 = vmax.xlane.f32.xlu0 %v651
    %v653 = vpop.xlane.xlu0 %652
    %v654 = vsub.f32 %v650, %v653
    %v655 = vmul.f32 %v654, 1.442695
    %v656 = vpow.pop %v655
    %v657 = vsel %vm273, %v656, 0.0
    %658 = vadd.xlane.f32.xlu0 %v657
    %v659 = vpop.xlane.xlu0 %658
    %v660 = vrcp.pop %v659
    %v661 = vmul.f32 %v656, %v660
    %662 = vrot.lane.b32.xlu0 %v268, 56
    %v663 = vpop.permute.xlu0 %662
    %v666 = vsel %vm273, %v661, 0
    %668 = vmatpush.msra.mxu0 0.0
    %669 = vmatpush.msra.mxu0 0.0
    %670 = vmatpush.msra.mxu0 0.0
    %671 = vmatpush.msra.mxu0 0.0
    %672 = vmatpush.msra.mxu0 0.0
    %673 = vmatpush.msra.mxu0 0.0
    %674 = vmatpush.msra.mxu0 0.0
    %675 = vmatpush.msra.mxu0 0.0
    %676 = vmatpush.msra.mxu0 0.0
    %677 = vmatpush.msra.mxu0 0.0
    %678 = vmatpush.msra.mxu0 0.0
    %679 = vmatpush.msra.mxu0 0.0
    %680 = vmatpush.msra.mxu0 0.0
    %681 = vmatpush.msra.mxu0 0.0
    %682 = vmatpush.msra.mxu0 0.0
    %683 = vmatpush.msra.mxu0 %v663
    %684 = vmatmul.f32.gmra.mxu0 %v666
    %v685 = vpop.f32.mrf.mxu0
    %v686 = vadd.f32 0.0, %v685
    %687 = vdwg.mxu0
    %688 = vrot.lane.b32.xlu0 %v268, 112
    %v689 = vpop.permute.xlu0 %688
    %690 = vrot.lane.b32.xlu0 %v268, 80
    %v691 = vpop.permute.xlu0 %690
    %v692 = vsel %vm273, %v689, 0
    %v694 = vsel %vm273, %v691, 0
    %696 = vmatpush.xpose.msra.mxu0 0.0
    %697 = vmatpush.xpose.msra.mxu0 0.0
    %698 = vmatpush.xpose.msra.mxu0 0.0
    %699 = vmatpush.xpose.msra.mxu0 0.0
    %700 = vmatpush.xpose.msra.mxu0 0.0
    %701 = vmatpush.xpose.msra.mxu0 0.0
    %702 = vmatpush.xpose.msra.mxu0 0.0
    %703 = vmatpush.xpose.msra.mxu0 0.0
    %704 = vmatpush.xpose.msra.mxu0 0.0
    %705 = vmatpush.xpose.msra.mxu0 0.0
    %706 = vmatpush.xpose.msra.mxu0 0.0
    %707 = vmatpush.xpose.msra.mxu0 0.0
    %708 = vmatpush.xpose.msra.mxu0 0.0
    %709 = vmatpush.xpose.msra.mxu0 0.0
    %710 = vmatpush.xpose.msra.mxu0 0.0
    %711 = vmatpush.xpose.msra.mxu0 %v694
    %712 = vmatmul.f32.gmra.mxu0 %v692
    %v713 = vpop.f32.mrf.mxu0
    %v714 = vadd.f32 0.0, %v713
    %715 = vdwg.mxu0
    %v716 = vmul.f32 %v714, 0.35355338
    %v717 = vadd.f32 %v716, %v161
    %v718 = vsel %vm273, %v717, -inf
    %719 = vmax.xlane.f32.xlu0 %v718
    %v720 = vpop.xlane.xlu0 %719
    %v721 = vsub.f32 %v717, %v720
    %v722 = vmul.f32 %v721, 1.442695
    %v723 = vpow.pop %v722
    %v724 = vsel %vm273, %v723, 0.0
    %725 = vadd.xlane.f32.xlu0 %v724
    %v726 = vpop.xlane.xlu0 %725
    %v727 = vrcp.pop %v726
    %v728 = vmul.f32 %v723, %v727
    %729 = vrot.lane.b32.xlu0 %v268, 48
    %v730 = vpop.permute.xlu0 %729
    %v733 = vsel %vm273, %v728, 0
    %735 = vmatpush.msra.mxu0 0.0
    %736 = vmatpush.msra.mxu0 0.0
    %737 = vmatpush.msra.mxu0 0.0
    %738 = vmatpush.msra.mxu0 0.0
    %739 = vmatpush.msra.mxu0 0.0
    %740 = vmatpush.msra.mxu0 0.0
    %741 = vmatpush.msra.mxu0 0.0
    %742 = vmatpush.msra.mxu0 0.0
    %743 = vmatpush.msra.mxu0 0.0
    %744 = vmatpush.msra.mxu0 0.0
    %745 = vmatpush.msra.mxu0 0.0
    %746 = vmatpush.msra.mxu0 0.0
    %747 = vmatpush.msra.mxu0 0.0
    %748 = vmatpush.msra.mxu0 0.0
    %749 = vmatpush.msra.mxu0 0.0
    %750 = vmatpush.msra.mxu0 %v730
    %751 = vmatmul.f32.gmra.mxu0 %v733
    %v752 = vpop.f32.mrf.mxu0
    %v753 = vadd.f32 0.0, %v752
    %754 = vdwg.mxu0
    %755 = vrot.lane.b32.xlu0 %v268, 104
    %v756 = vpop.permute.xlu0 %755
    %757 = vrot.lane.b32.xlu0 %v268, 72
    %v758 = vpop.permute.xlu0 %757
    %v759 = vsel %vm273, %v756, 0
    %v761 = vsel %vm273, %v758, 0
    %763 = vmatpush.xpose.msra.mxu0 0.0
    %764 = vmatpush.xpose.msra.mxu0 0.0
    %765 = vmatpush.xpose.msra.mxu0 0.0
    %766 = vmatpush.xpose.msra.mxu0 0.0
    %767 = vmatpush.xpose.msra.mxu0 0.0
    %768 = vmatpush.xpose.msra.mxu0 0.0
    %769 = vmatpush.xpose.msra.mxu0 0.0
    %770 = vmatpush.xpose.msra.mxu0 0.0
    %771 = vmatpush.xpose.msra.mxu0 0.0
    %772 = vmatpush.xpose.msra.mxu0 0.0
    %773 = vmatpush.xpose.msra.mxu0 0.0
    %774 = vmatpush.xpose.msra.mxu0 0.0
    %775 = vmatpush.xpose.msra.mxu0 0.0
    %776 = vmatpush.xpose.msra.mxu0 0.0
    %777 = vmatpush.xpose.msra.mxu0 0.0
    %778 = vmatpush.xpose.msra.mxu0 %v761
    %779 = vmatmul.f32.gmra.mxu0 %v759
    %v780 = vpop.f32.mrf.mxu0
    %v781 = vadd.f32 0.0, %v780
    %782 = vdwg.mxu0
    %v783 = vmul.f32 %v781, 0.35355338
    %v784 = vadd.f32 %v783, %v161
    %v785 = vsel %vm273, %v784, -inf
    %786 = vmax.xlane.f32.xlu0 %v785
    %v787 = vpop.xlane.xlu0 %786
    %v788 = vsub.f32 %v784, %v787
    %v789 = vmul.f32 %v788, 1.442695
    %v790 = vpow.pop %v789
    %v791 = vsel %vm273, %v790, 0.0
    %792 = vadd.xlane.f32.xlu0 %v791
    %v793 = vpop.xlane.xlu0 %792
    %v794 = vrcp.pop %v793
    %v795 = vmul.f32 %v790, %v794
    %796 = vrot.lane.b32.xlu0 %v268, 40
    %v797 = vpop.permute.xlu0 %796
    %v800 = vsel %vm273, %v795, 0
    %802 = vmatpush.msra.mxu0 0.0
    %803 = vmatpush.msra.mxu0 0.0
    %804 = vmatpush.msra.mxu0 0.0
    %805 = vmatpush.msra.mxu0 0.0
    %806 = vmatpush.msra.mxu0 0.0
    %807 = vmatpush.msra.mxu0 0.0
    %808 = vmatpush.msra.mxu0 0.0
    %809 = vmatpush.msra.mxu0 0.0
    %810 = vmatpush.msra.mxu0 0.0
    %811 = vmatpush.msra.mxu0 0.0
    %812 = vmatpush.msra.mxu0 0.0
    %813 = vmatpush.msra.mxu0 0.0
    %814 = vmatpush.msra.mxu0 0.0
    %815 = vmatpush.msra.mxu0 0.0
    %816 = vmatpush.msra.mxu0 0.0
    %817 = vmatpush.msra.mxu0 %v797
    %818 = vmatmul.f32.gmra.mxu0 %v800
    %v819 = vpop.f32.mrf.mxu0
    %v820 = vadd.f32 0.0, %v819
    %821 = vdwg.mxu0
    %823 = vrot.lane.b32.xlu0 %v686, 8
    %v824 = vpop.permute.xlu0 %823
    %827 = vrot.lane.b32.xlu0 %v753, 16
    %v828 = vpop.permute.xlu0 %827
    %831 = vrot.lane.b32.xlu0 %v820, 24
    %v832 = vpop.permute.xlu0 %831
    %v834 = vsel %vm273, %v619, %v824
    %v835 = vsel %vm551, %v834, %v828
    %v836 = vsel %vm553, %v835, %v832
    %v837 = vld [vmem:[%s8] sm:$0xff]
    %v838 = vld [vmem:[%s8 + $0x8] sm:$0xff]
    %v839 = vld [vmem:[%s8 + $0x10] sm:$0xff]
    %v840 = vld [vmem:[%s8 + $0x18] sm:$0xff]
    %v842 = vsel %vm169, %v554, 0
    %v845 = vsel %vm169, %v836, 0
    %847 = vmatpush.msra.mxu0 0.0
    %848 = vmatpush.msra.mxu0 0.0
    %849 = vmatpush.msra.mxu0 0.0
    %850 = vmatpush.msra.mxu0 0.0
    %851 = vmatpush.msra.mxu0 0.0
    %852 = vmatpush.msra.mxu0 0.0
    %853 = vmatpush.msra.mxu0 0.0
    %854 = vmatpush.msra.mxu0 0.0
    %855 = vmatpush.msra.mxu0 0.0
    %856 = vmatpush.msra.mxu0 0.0
    %857 = vmatpush.msra.mxu0 0.0
    %858 = vmatpush.msra.mxu0 0.0
    %859 = vmatpush.msra.mxu0 %v840
    %860 = vmatpush.msra.mxu0 %v839
    %861 = vmatpush.msra.mxu0 %v838
    %862 = vmatpush.msra.mxu0 %v837
    %863 = vmatmul.f32.gmra.mxu0 %v842
    %v864 = vpop.f32.mrf.mxu0
    %v865 = vadd.f32 0.0, %v864
    %866 = vmatmul.f32.gmra.mxu0 %v845
    %v867 = vpop.f32.mrf.mxu0
    %v868 = vadd.f32 0.0, %v867
    %869 = vdwg.mxu0
    %v870 = vadd.f32 %v152, %v865
    %v871 = vadd.f32 %v153, %v868
    %v872 = vld [vmem:[%s9] sm:$0x1]
    %v874 = vperm.slane %v872, 0
    %v876 = vadd.f32 %v870, %v874
    %v877 = vadd.f32 %v871, %v874
    %v878 = vsel %vm169, %v876, 0.0
    %879 = vadd.xlane.f32.xlu0 %v878
    %v880 = vpop.xlane.xlu0 %879
    %v881 = vsel %vm169, %v877, 0.0
    %882 = vadd.xlane.f32.xlu0 %v881
    %v883 = vpop.xlane.xlu0 %882
    %v884 = vmul.f32 %v880, %v182
    %v885 = vmul.f32 %v883, %v182
    %v886 = vsub.f32 %v876, %v884
    %v887 = vsub.f32 %v877, %v885
    %v888 = vmul.f32 %v886, %v886
    %v889 = vmul.f32 %v887, %v887
    %v890 = vsel %vm169, %v888, 0.0
    %891 = vadd.xlane.f32.xlu0 %v890
    %v892 = vpop.xlane.xlu0 %891
    %v893 = vsel %vm169, %v889, 0.0
    %894 = vadd.xlane.f32.xlu0 %v893
    %v895 = vpop.xlane.xlu0 %894
    %v896 = vmul.f32 %v892, 0.032258064
    %v897 = vmul.f32 %v895, 0.032258064
    %v898 = vrsqrt.pop %v896
    %v899 = vmul.f32 %v898, %v896
    %v900 = vmul.f32 %v899, %v898
    %v901 = vmul.f32 0.5, %v900
    %v902 = vsub.f32 1.5, %v901
    %v903 = vmul.f32 %v898, %v902
    %v904 = vmul.f32 %v896, %v903
    %vm905 = vcmp.eq.f32.partialorder %v896, inf
    %v906 = vsel %vm905, %v896, %v904
    %vm907 = vcmp.eq.f32.partialorder %v896, 0.0
    %v908 = vand.u32 %v896, 2147483648
    %v909 = vsel %vm907, %v908, %v906
    %v910 = vrsqrt.pop %v897
    %v911 = vmul.f32 %v910, %v897
    %v912 = vmul.f32 %v911, %v910
    %v913 = vmul.f32 0.5, %v912
    %v914 = vsub.f32 1.5, %v913
    %v915 = vmul.f32 %v910, %v914
    %v916 = vmul.f32 %v897, %v915
    %vm917 = vcmp.eq.f32.partialorder %v897, inf
    %v918 = vsel %vm917, %v897, %v916
    %vm919 = vcmp.eq.f32.partialorder %v897, 0.0
    %v920 = vand.u32 %v897, 2147483648
    %v921 = vsel %vm919, %v920, %v918
    %v922 = vadd.f32 %v909, 1e-06
    %v923 = vadd.f32 %v921, 1e-06
    %v924 = vrcp.pop %v922
    %v925 = vrcp.pop %v923
    %v926 = vperm.slane %v168, 2
    %v927 = vmul.f32 %v926, %v886
    %v928 = vmul.f32 %v926, %v887
    %v929 = vmul.f32 %v927, %v924
    %v930 = vmul.f32 %v928, %v925
    %v931 = vperm.slane %v168, 3
    %v932 = vadd.f32 %v929, %v931
    %v933 = vadd.f32 %v930, %v931
    %v934 = vld [vmem:[%s10] sm:$0xff]
    %v935 = vld [vmem:[%s10 + $0x8] sm:$0xff]
    %v936 = vld [vmem:[%s10 + $0x10] sm:$0xff]
    %v937 = vld [vmem:[%s10 + $0x18] sm:$0xff]
    %v938 = vld [vmem:[%s11] sm:$0x1]
    %v940 = vperm.slane %v938, 0
    %v943 = vsel %vm169, %v932, 0
    %v946 = vsel %vm169, %v933, 0
    %948 = vmatpush.msra.mxu0 0.0
    %949 = vmatpush.msra.mxu0 0.0
    %950 = vmatpush.msra.mxu0 0.0
    %951 = vmatpush.msra.mxu0 0.0
    %952 = vmatpush.msra.mxu0 0.0
    %953 = vmatpush.msra.mxu0 0.0
    %954 = vmatpush.msra.mxu0 0.0
    %955 = vmatpush.msra.mxu0 0.0
    %956 = vmatpush.msra.mxu0 0.0
    %957 = vmatpush.msra.mxu0 0.0
    %958 = vmatpush.msra.mxu0 0.0
    %959 = vmatpush.msra.mxu0 0.0
    %960 = vmatpush.msra.mxu0 %v937
    %961 = vmatpush.msra.mxu0 %v936
    %962 = vmatpush.msra.mxu0 %v935
    %963 = vmatpush.msra.mxu0 %v934
    %964 = vmatmul.f32.gmra.mxu0 %v943
    %v965 = vpop.f32.mrf.mxu0
    %v966 = vadd.f32 %v940, %v965
    %967 = vmatmul.f32.gmra.mxu0 %v946
    %v968 = vpop.f32.mrf.mxu0
    %v969 = vadd.f32 %v940, %v968
    %970 = vdwg.mxu0
    %v971 = vld [vmem:[#allocation7] sm:$0xff]
    %v972 = vld [vmem:[#allocation7 + $0x8] sm:$0xff]
    %v973 = vld [vmem:[#allocation7 + $0x10] sm:$0xff]
    %v974 = vld [vmem:[#allocation7 + $0x18] sm:$0xff]
    %v975 = vld [vmem:[%s13] sm:$0x1]
    %v977 = vperm.slane %v975, 0
    %v980 = vsel %vm169, %v154, 0
    %v983 = vsel %vm169, %v155, 0
    %985 = vmatpush.msra.mxu0 0.0
    %986 = vmatpush.msra.mxu0 0.0
    %987 = vmatpush.msra.mxu0 0.0
    %988 = vmatpush.msra.mxu0 0.0
    %989 = vmatpush.msra.mxu0 0.0
    %990 = vmatpush.msra.mxu0 0.0
    %991 = vmatpush.msra.mxu0 0.0
    %992 = vmatpush.msra.mxu0 0.0
    %993 = vmatpush.msra.mxu0 0.0
    %994 = vmatpush.msra.mxu0 0.0
    %995 = vmatpush.msra.mxu0 0.0
    %996 = vmatpush.msra.mxu0 0.0
    %997 = vmatpush.msra.mxu0 %v974
    %998 = vmatpush.msra.mxu0 %v973
    %999 = vmatpush.msra.mxu0 %v972
    %1000 = vmatpush.msra.mxu0 %v971
    %1001 = vmatmul.f32.gmra.mxu0 %v980
    %v1002 = vpop.f32.mrf.mxu0
    %v1003 = vadd.f32 %v977, %v1002
    %1004 = vmatmul.f32.gmra.mxu0 %v983
    %v1005 = vpop.f32.mrf.mxu0
    %v1006 = vadd.f32 %v977, %v1005
    %1007 = vdwg.mxu0
    %v1009 = vsel %vm273, %v966, 0
    %v1012 = vsel %vm273, %v1003, 0
    %1014 = vmatpush.xpose.msra.mxu0 0.0
    %1015 = vmatpush.xpose.msra.mxu0 0.0
    %1016 = vmatpush.xpose.msra.mxu0 0.0
    %1017 = vmatpush.xpose.msra.mxu0 0.0
    %1018 = vmatpush.xpose.msra.mxu0 0.0
    %1019 = vmatpush.xpose.msra.mxu0 0.0
    %1020 = vmatpush.xpose.msra.mxu0 0.0
    %1021 = vmatpush.xpose.msra.mxu0 0.0
    %1022 = vmatpush.xpose.msra.mxu0 0.0
    %1023 = vmatpush.xpose.msra.mxu0 0.0
    %1024 = vmatpush.xpose.msra.mxu0 0.0
    %1025 = vmatpush.xpose.msra.mxu0 0.0
    %1026 = vmatpush.xpose.msra.mxu0 0.0
    %1027 = vmatpush.xpose.msra.mxu0 0.0
    %1028 = vmatpush.xpose.msra.mxu0 0.0
    %1029 = vmatpush.xpose.msra.mxu0 %v1012
    %1030 = vmatmul.f32.gmra.mxu0 %v1009
    %v1031 = vpop.f32.mrf.mxu0
    %v1032 = vadd.f32 0.0, %v1031
    %1033 = vdwg.mxu0
    %v1034 = vmul.f32 %v1032, 0.35355338
    %v1036 = vperm.slane %v166, 0
    %v1038 = vadd.f32 %v1034, %v1036
    %v1039 = vsel %vm273, %v1038, -inf
    %1040 = vmax.xlane.f32.xlu0 %v1039
    %v1041 = vpop.xlane.xlu0 %1040
    %v1042 = vsub.f32 %v1038, %v1041
    %v1043 = vmul.f32 %v1042, 1.442695
    %v1044 = vpow.pop %v1043
    %v1045 = vsel %vm273, %v1044, 0.0
    %1046 = vadd.xlane.f32.xlu0 %v1045
    %v1047 = vpop.xlane.xlu0 %1046
    %v1048 = vrcp.pop %v1047
    %v1049 = vmul.f32 %v1044, %v1048
    %1050 = vrot.lane.b32.xlu0 %v1003, 96
    %v1051 = vpop.permute.xlu0 %1050
    %v1054 = vsel %vm273, %v1049, 0
    %1056 = vmatpush.msra.mxu0 0.0
    %1057 = vmatpush.msra.mxu0 0.0
    %1058 = vmatpush.msra.mxu0 0.0
    %1059 = vmatpush.msra.mxu0 0.0
    %1060 = vmatpush.msra.mxu0 0.0
    %1061 = vmatpush.msra.mxu0 0.0
    %1062 = vmatpush.msra.mxu0 0.0
    %1063 = vmatpush.msra.mxu0 0.0
    %1064 = vmatpush.msra.mxu0 0.0
    %1065 = vmatpush.msra.mxu0 0.0
    %1066 = vmatpush.msra.mxu0 0.0
    %1067 = vmatpush.msra.mxu0 0.0
    %1068 = vmatpush.msra.mxu0 0.0
    %1069 = vmatpush.msra.mxu0 0.0
    %1070 = vmatpush.msra.mxu0 0.0
    %1071 = vmatpush.msra.mxu0 %v1051
    %1072 = vmatmul.f32.gmra.mxu0 %v1054
    %v1073 = vpop.f32.mrf.mxu0
    %v1074 = vadd.f32 0.0, %v1073
    %1075 = vdwg.mxu0
    %1076 = vrot.lane.b32.xlu0 %v966, 120
    %v1077 = vpop.permute.xlu0 %1076
    %1078 = vrot.lane.b32.xlu0 %v1003, 120
    %v1079 = vpop.permute.xlu0 %1078
    %v1080 = vsel %vm273, %v1077, 0
    %v1082 = vsel %vm273, %v1079, 0
    %1084 = vmatpush.xpose.msra.mxu0 0.0
    %1085 = vmatpush.xpose.msra.mxu0 0.0
    %1086 = vmatpush.xpose.msra.mxu0 0.0
    %1087 = vmatpush.xpose.msra.mxu0 0.0
    %1088 = vmatpush.xpose.msra.mxu0 0.0
    %1089 = vmatpush.xpose.msra.mxu0 0.0
    %1090 = vmatpush.xpose.msra.mxu0 0.0
    %1091 = vmatpush.xpose.msra.mxu0 0.0
    %1092 = vmatpush.xpose.msra.mxu0 0.0
    %1093 = vmatpush.xpose.msra.mxu0 0.0
    %1094 = vmatpush.xpose.msra.mxu0 0.0
    %1095 = vmatpush.xpose.msra.mxu0 0.0
    %1096 = vmatpush.xpose.msra.mxu0 0.0
    %1097 = vmatpush.xpose.msra.mxu0 0.0
    %1098 = vmatpush.xpose.msra.mxu0 0.0
    %1099 = vmatpush.xpose.msra.mxu0 %v1082
    %1100 = vmatmul.f32.gmra.mxu0 %v1080
    %v1101 = vpop.f32.mrf.mxu0
    %v1102 = vadd.f32 0.0, %v1101
    %1103 = vdwg.mxu0
    %v1104 = vmul.f32 %v1102, 0.35355338
    %v1105 = vadd.f32 %v1104, %v1036
    %v1106 = vsel %vm273, %v1105, -inf
    %1107 = vmax.xlane.f32.xlu0 %v1106
    %v1108 = vpop.xlane.xlu0 %1107
    %v1109 = vsub.f32 %v1105, %v1108
    %v1110 = vmul.f32 %v1109, 1.442695
    %v1111 = vpow.pop %v1110
    %v1112 = vsel %vm273, %v1111, 0.0
    %1113 = vadd.xlane.f32.xlu0 %v1112
    %v1114 = vpop.xlane.xlu0 %1113
    %v1115 = vrcp.pop %v1114
    %v1116 = vmul.f32 %v1111, %v1115
    %1117 = vrot.lane.b32.xlu0 %v1003, 88
    %v1118 = vpop.permute.xlu0 %1117
    %v1121 = vsel %vm273, %v1116, 0
    %1123 = vmatpush.msra.mxu0 0.0
    %1124 = vmatpush.msra.mxu0 0.0
    %1125 = vmatpush.msra.mxu0 0.0
    %1126 = vmatpush.msra.mxu0 0.0
    %1127 = vmatpush.msra.mxu0 0.0
    %1128 = vmatpush.msra.mxu0 0.0
    %1129 = vmatpush.msra.mxu0 0.0
    %1130 = vmatpush.msra.mxu0 0.0
    %1131 = vmatpush.msra.mxu0 0.0
    %1132 = vmatpush.msra.mxu0 0.0
    %1133 = vmatpush.msra.mxu0 0.0
    %1134 = vmatpush.msra.mxu0 0.0
    %1135 = vmatpush.msra.mxu0 0.0
    %1136 = vmatpush.msra.mxu0 0.0
    %1137 = vmatpush.msra.mxu0 0.0
    %1138 = vmatpush.msra.mxu0 %v1118
    %1139 = vmatmul.f32.gmra.mxu0 %v1121
    %v1140 = vpop.f32.mrf.mxu0
    %v1141 = vadd.f32 0.0, %v1140
    %1142 = vdwg.mxu0
    %1143 = vrot.lane.b32.xlu0 %v966, 112
    %v1144 = vpop.permute.xlu0 %1143
    %1145 = vrot.lane.b32.xlu0 %v1003, 112
    %v1146 = vpop.permute.xlu0 %1145
    %v1147 = vsel %vm273, %v1144, 0
    %v1149 = vsel %vm273, %v1146, 0
    %1151 = vmatpush.xpose.msra.mxu0 0.0
    %1152 = vmatpush.xpose.msra.mxu0 0.0
    %1153 = vmatpush.xpose.msra.mxu0 0.0
    %1154 = vmatpush.xpose.msra.mxu0 0.0
    %1155 = vmatpush.xpose.msra.mxu0 0.0
    %1156 = vmatpush.xpose.msra.mxu0 0.0
    %1157 = vmatpush.xpose.msra.mxu0 0.0
    %1158 = vmatpush.xpose.msra.mxu0 0.0
    %1159 = vmatpush.xpose.msra.mxu0 0.0
    %1160 = vmatpush.xpose.msra.mxu0 0.0
    %1161 = vmatpush.xpose.msra.mxu0 0.0
    %1162 = vmatpush.xpose.msra.mxu0 0.0
    %1163 = vmatpush.xpose.msra.mxu0 0.0
    %1164 = vmatpush.xpose.msra.mxu0 0.0
    %1165 = vmatpush.xpose.msra.mxu0 0.0
    %1166 = vmatpush.xpose.msra.mxu0 %v1149
    %1167 = vmatmul.f32.gmra.mxu0 %v1147
    %v1168 = vpop.f32.mrf.mxu0
    %v1169 = vadd.f32 0.0, %v1168
    %1170 = vdwg.mxu0
    %v1171 = vmul.f32 %v1169, 0.35355338
    %v1172 = vadd.f32 %v1171, %v1036
    %v1173 = vsel %vm273, %v1172, -inf
    %1174 = vmax.xlane.f32.xlu0 %v1173
    %v1175 = vpop.xlane.xlu0 %1174
    %v1176 = vsub.f32 %v1172, %v1175
    %v1177 = vmul.f32 %v1176, 1.442695
    %v1178 = vpow.pop %v1177
    %v1179 = vsel %vm273, %v1178, 0.0
    %1180 = vadd.xlane.f32.xlu0 %v1179
    %v1181 = vpop.xlane.xlu0 %1180
    %v1182 = vrcp.pop %v1181
    %v1183 = vmul.f32 %v1178, %v1182
    %1184 = vrot.lane.b32.xlu0 %v1003, 80
    %v1185 = vpop.permute.xlu0 %1184
    %v1188 = vsel %vm273, %v1183, 0
    %1190 = vmatpush.msra.mxu0 0.0
    %1191 = vmatpush.msra.mxu0 0.0
    %1192 = vmatpush.msra.mxu0 0.0
    %1193 = vmatpush.msra.mxu0 0.0
    %1194 = vmatpush.msra.mxu0 0.0
    %1195 = vmatpush.msra.mxu0 0.0
    %1196 = vmatpush.msra.mxu0 0.0
    %1197 = vmatpush.msra.mxu0 0.0
    %1198 = vmatpush.msra.mxu0 0.0
    %1199 = vmatpush.msra.mxu0 0.0
    %1200 = vmatpush.msra.mxu0 0.0
    %1201 = vmatpush.msra.mxu0 0.0
    %1202 = vmatpush.msra.mxu0 0.0
    %1203 = vmatpush.msra.mxu0 0.0
    %1204 = vmatpush.msra.mxu0 0.0
    %1205 = vmatpush.msra.mxu0 %v1185
    %1206 = vmatmul.f32.gmra.mxu0 %v1188
    %v1207 = vpop.f32.mrf.mxu0
    %v1208 = vadd.f32 0.0, %v1207
    %1209 = vdwg.mxu0
    %1210 = vrot.lane.b32.xlu0 %v966, 104
    %v1211 = vpop.permute.xlu0 %1210
    %1212 = vrot.lane.b32.xlu0 %v1003, 104
    %v1213 = vpop.permute.xlu0 %1212
    %v1214 = vsel %vm273, %v1211, 0
    %v1216 = vsel %vm273, %v1213, 0
    %1218 = vmatpush.xpose.msra.mxu0 0.0
    %1219 = vmatpush.xpose.msra.mxu0 0.0
    %1220 = vmatpush.xpose.msra.mxu0 0.0
    %1221 = vmatpush.xpose.msra.mxu0 0.0
    %1222 = vmatpush.xpose.msra.mxu0 0.0
    %1223 = vmatpush.xpose.msra.mxu0 0.0
    %1224 = vmatpush.xpose.msra.mxu0 0.0
    %1225 = vmatpush.xpose.msra.mxu0 0.0
    %1226 = vmatpush.xpose.msra.mxu0 0.0
    %1227 = vmatpush.xpose.msra.mxu0 0.0
    %1228 = vmatpush.xpose.msra.mxu0 0.0
    %1229 = vmatpush.xpose.msra.mxu0 0.0
    %1230 = vmatpush.xpose.msra.mxu0 0.0
    %1231 = vmatpush.xpose.msra.mxu0 0.0
    %1232 = vmatpush.xpose.msra.mxu0 0.0
    %1233 = vmatpush.xpose.msra.mxu0 %v1216
    %1234 = vmatmul.f32.gmra.mxu0 %v1214
    %v1235 = vpop.f32.mrf.mxu0
    %v1236 = vadd.f32 0.0, %v1235
    %1237 = vdwg.mxu0
    %v1238 = vmul.f32 %v1236, 0.35355338
    %v1239 = vadd.f32 %v1238, %v1036
    %v1240 = vsel %vm273, %v1239, -inf
    %1241 = vmax.xlane.f32.xlu0 %v1240
    %v1242 = vpop.xlane.xlu0 %1241
    %v1243 = vsub.f32 %v1239, %v1242
    %v1244 = vmul.f32 %v1243, 1.442695
    %v1245 = vpow.pop %v1244
    %v1246 = vsel %vm273, %v1245, 0.0
    %1247 = vadd.xlane.f32.xlu0 %v1246
    %v1248 = vpop.xlane.xlu0 %1247
    %v1249 = vrcp.pop %v1248
    %v1250 = vmul.f32 %v1245, %v1249
    %1251 = vrot.lane.b32.xlu0 %v1003, 72
    %v1252 = vpop.permute.xlu0 %1251
    %v1255 = vsel %vm273, %v1250, 0
    %1257 = vmatpush.msra.mxu0 0.0
    %1258 = vmatpush.msra.mxu0 0.0
    %1259 = vmatpush.msra.mxu0 0.0
    %1260 = vmatpush.msra.mxu0 0.0
    %1261 = vmatpush.msra.mxu0 0.0
    %1262 = vmatpush.msra.mxu0 0.0
    %1263 = vmatpush.msra.mxu0 0.0
    %1264 = vmatpush.msra.mxu0 0.0
    %1265 = vmatpush.msra.mxu0 0.0
    %1266 = vmatpush.msra.mxu0 0.0
    %1267 = vmatpush.msra.mxu0 0.0
    %1268 = vmatpush.msra.mxu0 0.0
    %1269 = vmatpush.msra.mxu0 0.0
    %1270 = vmatpush.msra.mxu0 0.0
    %1271 = vmatpush.msra.mxu0 0.0
    %1272 = vmatpush.msra.mxu0 %v1252
    %1273 = vmatmul.f32.gmra.mxu0 %v1255
    %v1274 = vpop.f32.mrf.mxu0
    %v1275 = vadd.f32 0.0, %v1274
    %1276 = vdwg.mxu0
    %1278 = vrot.lane.b32.xlu0 %v1141, 8
    %v1279 = vpop.permute.xlu0 %1278
    %1282 = vrot.lane.b32.xlu0 %v1208, 16
    %v1283 = vpop.permute.xlu0 %1282
    %1286 = vrot.lane.b32.xlu0 %v1275, 24
    %v1287 = vpop.permute.xlu0 %1286
    %v1289 = vsel %vm273, %v1074, %v1279
    %v1290 = vsel %vm551, %v1289, %v1283
    %v1291 = vsel %vm553, %v1290, %v1287
    %v1293 = vsel %vm273, %v969, 0
    %v1296 = vsel %vm273, %v1006, 0
    %1298 = vmatpush.xpose.msra.mxu0 0.0
    %1299 = vmatpush.xpose.msra.mxu0 0.0
    %1300 = vmatpush.xpose.msra.mxu0 0.0
    %1301 = vmatpush.xpose.msra.mxu0 0.0
    %1302 = vmatpush.xpose.msra.mxu0 0.0
    %1303 = vmatpush.xpose.msra.mxu0 0.0
    %1304 = vmatpush.xpose.msra.mxu0 0.0
    %1305 = vmatpush.xpose.msra.mxu0 0.0
    %1306 = vmatpush.xpose.msra.mxu0 0.0
    %1307 = vmatpush.xpose.msra.mxu0 0.0
    %1308 = vmatpush.xpose.msra.mxu0 0.0
    %1309 = vmatpush.xpose.msra.mxu0 0.0
    %1310 = vmatpush.xpose.msra.mxu0 0.0
    %1311 = vmatpush.xpose.msra.mxu0 0.0
    %1312 = vmatpush.xpose.msra.mxu0 0.0
    %1313 = vmatpush.xpose.msra.mxu0 %v1296
    %1314 = vmatmul.f32.gmra.mxu0 %v1293
    %v1315 = vpop.f32.mrf.mxu0
    %v1316 = vadd.f32 0.0, %v1315
    %1317 = vdwg.mxu0
    %v1318 = vmul.f32 %v1316, 0.35355338
    %v1320 = vperm.slane %v167, 0
    %v1322 = vadd.f32 %v1318, %v1320
    %v1323 = vsel %vm273, %v1322, -inf
    %1324 = vmax.xlane.f32.xlu0 %v1323
    %v1325 = vpop.xlane.xlu0 %1324
    %v1326 = vsub.f32 %v1322, %v1325
    %v1327 = vmul.f32 %v1326, 1.442695
    %v1328 = vpow.pop %v1327
    %v1329 = vsel %vm273, %v1328, 0.0
    %1330 = vadd.xlane.f32.xlu0 %v1329
    %v1331 = vpop.xlane.xlu0 %1330
    %v1332 = vrcp.pop %v1331
    %v1333 = vmul.f32 %v1328, %v1332
    %1334 = vrot.lane.b32.xlu0 %v1006, 96
    %v1335 = vpop.permute.xlu0 %1334
    %v1338 = vsel %vm273, %v1333, 0
    %1340 = vmatpush.msra.mxu0 0.0
    %1341 = vmatpush.msra.mxu0 0.0
    %1342 = vmatpush.msra.mxu0 0.0
    %1343 = vmatpush.msra.mxu0 0.0
    %1344 = vmatpush.msra.mxu0 0.0
    %1345 = vmatpush.msra.mxu0 0.0
    %1346 = vmatpush.msra.mxu0 0.0
    %1347 = vmatpush.msra.mxu0 0.0
    %1348 = vmatpush.msra.mxu0 0.0
    %1349 = vmatpush.msra.mxu0 0.0
    %1350 = vmatpush.msra.mxu0 0.0
    %1351 = vmatpush.msra.mxu0 0.0
    %1352 = vmatpush.msra.mxu0 0.0
    %1353 = vmatpush.msra.mxu0 0.0
    %1354 = vmatpush.msra.mxu0 0.0
    %1355 = vmatpush.msra.mxu0 %v1335
    %1356 = vmatmul.f32.gmra.mxu0 %v1338
    %v1357 = vpop.f32.mrf.mxu0
    %v1358 = vadd.f32 0.0, %v1357
    %1359 = vdwg.mxu0
    %1360 = vrot.lane.b32.xlu0 %v969, 120
    %v1361 = vpop.permute.xlu0 %1360
    %1362 = vrot.lane.b32.xlu0 %v1006, 120
    %v1363 = vpop.permute.xlu0 %1362
    %v1364 = vsel %vm273, %v1361, 0
    %v1366 = vsel %vm273, %v1363, 0
    %1368 = vmatpush.xpose.msra.mxu0 0.0
    %1369 = vmatpush.xpose.msra.mxu0 0.0
    %1370 = vmatpush.xpose.msra.mxu0 0.0
    %1371 = vmatpush.xpose.msra.mxu0 0.0
    %1372 = vmatpush.xpose.msra.mxu0 0.0
    %1373 = vmatpush.xpose.msra.mxu0 0.0
    %1374 = vmatpush.xpose.msra.mxu0 0.0
    %1375 = vmatpush.xpose.msra.mxu0 0.0
    %1376 = vmatpush.xpose.msra.mxu0 0.0
    %1377 = vmatpush.xpose.msra.mxu0 0.0
    %1378 = vmatpush.xpose.msra.mxu0 0.0
    %1379 = vmatpush.xpose.msra.mxu0 0.0
    %1380 = vmatpush.xpose.msra.mxu0 0.0
    %1381 = vmatpush.xpose.msra.mxu0 0.0
    %1382 = vmatpush.xpose.msra.mxu0 0.0
    %1383 = vmatpush.xpose.msra.mxu0 %v1366
    %1384 = vmatmul.f32.gmra.mxu0 %v1364
    %v1385 = vpop.f32.mrf.mxu0
    %v1386 = vadd.f32 0.0, %v1385
    %1387 = vdwg.mxu0
    %v1388 = vmul.f32 %v1386, 0.35355338
    %v1389 = vadd.f32 %v1388, %v1320
    %v1390 = vsel %vm273, %v1389, -inf
    %1391 = vmax.xlane.f32.xlu0 %v1390
    %v1392 = vpop.xlane.xlu0 %1391
    %v1393 = vsub.f32 %v1389, %v1392
    %v1394 = vmul.f32 %v1393, 1.442695
    %v1395 = vpow.pop %v1394
    %v1396 = vsel %vm273, %v1395, 0.0
    %1397 = vadd.xlane.f32.xlu0 %v1396
    %v1398 = vpop.xlane.xlu0 %1397
    %v1399 = vrcp.pop %v1398
    %v1400 = vmul.f32 %v1395, %v1399
    %1401 = vrot.lane.b32.xlu0 %v1006, 88
    %v1402 = vpop.permute.xlu0 %1401
    %v1405 = vsel %vm273, %v1400, 0
    %1407 = vmatpush.msra.mxu0 0.0
    %1408 = vmatpush.msra.mxu0 0.0
    %1409 = vmatpush.msra.mxu0 0.0
    %1410 = vmatpush.msra.mxu0 0.0
    %1411 = vmatpush.msra.mxu0 0.0
    %1412 = vmatpush.msra.mxu0 0.0
    %1413 = vmatpush.msra.mxu0 0.0
    %1414 = vmatpush.msra.mxu0 0.0
    %1415 = vmatpush.msra.mxu0 0.0
    %1416 = vmatpush.msra.mxu0 0.0
    %1417 = vmatpush.msra.mxu0 0.0
    %1418 = vmatpush.msra.mxu0 0.0
    %1419 = vmatpush.msra.mxu0 0.0
    %1420 = vmatpush.msra.mxu0 0.0
    %1421 = vmatpush.msra.mxu0 0.0
    %1422 = vmatpush.msra.mxu0 %v1402
    %1423 = vmatmul.f32.gmra.mxu0 %v1405
    %v1424 = vpop.f32.mrf.mxu0
    %v1425 = vadd.f32 0.0, %v1424
    %1426 = vdwg.mxu0
    %1427 = vrot.lane.b32.xlu0 %v969, 112
    %v1428 = vpop.permute.xlu0 %1427
    %1429 = vrot.lane.b32.xlu0 %v1006, 112
    %v1430 = vpop.permute.xlu0 %1429
    %v1431 = vsel %vm273, %v1428, 0
    %v1433 = vsel %vm273, %v1430, 0
    %1435 = vmatpush.xpose.msra.mxu0 0.0
    %1436 = vmatpush.xpose.msra.mxu0 0.0
    %1437 = vmatpush.xpose.msra.mxu0 0.0
    %1438 = vmatpush.xpose.msra.mxu0 0.0
    %1439 = vmatpush.xpose.msra.mxu0 0.0
    %1440 = vmatpush.xpose.msra.mxu0 0.0
    %1441 = vmatpush.xpose.msra.mxu0 0.0
    %1442 = vmatpush.xpose.msra.mxu0 0.0
    %1443 = vmatpush.xpose.msra.mxu0 0.0
    %1444 = vmatpush.xpose.msra.mxu0 0.0
    %1445 = vmatpush.xpose.msra.mxu0 0.0
    %1446 = vmatpush.xpose.msra.mxu0 0.0
    %1447 = vmatpush.xpose.msra.mxu0 0.0
    %1448 = vmatpush.xpose.msra.mxu0 0.0
    %1449 = vmatpush.xpose.msra.mxu0 0.0
    %1450 = vmatpush.xpose.msra.mxu0 %v1433
    %1451 = vmatmul.f32.gmra.mxu0 %v1431
    %v1452 = vpop.f32.mrf.mxu0
    %v1453 = vadd.f32 0.0, %v1452
    %1454 = vdwg.mxu0
    %v1455 = vmul.f32 %v1453, 0.35355338
    %v1456 = vadd.f32 %v1455, %v1320
    %v1457 = vsel %vm273, %v1456, -inf
    %1458 = vmax.xlane.f32.xlu0 %v1457
    %v1459 = vpop.xlane.xlu0 %1458
    %v1460 = vsub.f32 %v1456, %v1459
    %v1461 = vmul.f32 %v1460, 1.442695
    %v1462 = vpow.pop %v1461
    %v1463 = vsel %vm273, %v1462, 0.0
    %1464 = vadd.xlane.f32.xlu0 %v1463
    %v1465 = vpop.xlane.xlu0 %1464
    %v1466 = vrcp.pop %v1465
    %v1467 = vmul.f32 %v1462, %v1466
    %1468 = vrot.lane.b32.xlu0 %v1006, 80
    %v1469 = vpop.permute.xlu0 %1468
    %v1472 = vsel %vm273, %v1467, 0
    %1474 = vmatpush.msra.mxu0 0.0
    %1475 = vmatpush.msra.mxu0 0.0
    %1476 = vmatpush.msra.mxu0 0.0
    %1477 = vmatpush.msra.mxu0 0.0
    %1478 = vmatpush.msra.mxu0 0.0
    %1479 = vmatpush.msra.mxu0 0.0
    %1480 = vmatpush.msra.mxu0 0.0
    %1481 = vmatpush.msra.mxu0 0.0
    %1482 = vmatpush.msra.mxu0 0.0
    %1483 = vmatpush.msra.mxu0 0.0
    %1484 = vmatpush.msra.mxu0 0.0
    %1485 = vmatpush.msra.mxu0 0.0
    %1486 = vmatpush.msra.mxu0 0.0
    %1487 = vmatpush.msra.mxu0 0.0
    %1488 = vmatpush.msra.mxu0 0.0
    %1489 = vmatpush.msra.mxu0 %v1469
    %1490 = vmatmul.f32.gmra.mxu0 %v1472
    %v1491 = vpop.f32.mrf.mxu0
    %v1492 = vadd.f32 0.0, %v1491
    %1493 = vdwg.mxu0
    %1494 = vrot.lane.b32.xlu0 %v969, 104
    %v1495 = vpop.permute.xlu0 %1494
    %1496 = vrot.lane.b32.xlu0 %v1006, 104
    %v1497 = vpop.permute.xlu0 %1496
    %v1498 = vsel %vm273, %v1495, 0
    %v1500 = vsel %vm273, %v1497, 0
    %1502 = vmatpush.xpose.msra.mxu0 0.0
    %1503 = vmatpush.xpose.msra.mxu0 0.0
    %1504 = vmatpush.xpose.msra.mxu0 0.0
    %1505 = vmatpush.xpose.msra.mxu0 0.0
    %1506 = vmatpush.xpose.msra.mxu0 0.0
    %1507 = vmatpush.xpose.msra.mxu0 0.0
    %1508 = vmatpush.xpose.msra.mxu0 0.0
    %1509 = vmatpush.xpose.msra.mxu0 0.0
    %1510 = vmatpush.xpose.msra.mxu0 0.0
    %1511 = vmatpush.xpose.msra.mxu0 0.0
    %1512 = vmatpush.xpose.msra.mxu0 0.0
    %1513 = vmatpush.xpose.msra.mxu0 0.0
    %1514 = vmatpush.xpose.msra.mxu0 0.0
    %1515 = vmatpush.xpose.msra.mxu0 0.0
    %1516 = vmatpush.xpose.msra.mxu0 0.0
    %1517 = vmatpush.xpose.msra.mxu0 %v1500
    %1518 = vmatmul.f32.gmra.mxu0 %v1498
    %v1519 = vpop.f32.mrf.mxu0
    %v1520 = vadd.f32 0.0, %v1519
    %1521 = vdwg.mxu0
    %v1522 = vmul.f32 %v1520, 0.35355338
    %v1523 = vadd.f32 %v1522, %v1320
    %v1524 = vsel %vm273, %v1523, -inf
    %1525 = vmax.xlane.f32.xlu0 %v1524
    %v1526 = vpop.xlane.xlu0 %1525
    %v1527 = vsub.f32 %v1523, %v1526
    %v1528 = vmul.f32 %v1527, 1.442695
    %v1529 = vpow.pop %v1528
    %v1530 = vsel %vm273, %v1529, 0.0
    %1531 = vadd.xlane.f32.xlu0 %v1530
    %v1532 = vpop.xlane.xlu0 %1531
    %v1533 = vrcp.pop %v1532
    %v1534 = vmul.f32 %v1529, %v1533
    %1535 = vrot.lane.b32.xlu0 %v1006, 72
    %v1536 = vpop.permute.xlu0 %1535
    %v1539 = vsel %vm273, %v1534, 0
    %1541 = vmatpush.msra.mxu0 0.0
    %1542 = vmatpush.msra.mxu0 0.0
    %1543 = vmatpush.msra.mxu0 0.0
    %1544 = vmatpush.msra.mxu0 0.0
    %1545 = vmatpush.msra.mxu0 0.0
    %1546 = vmatpush.msra.mxu0 0.0
    %1547 = vmatpush.msra.mxu0 0.0
    %1548 = vmatpush.msra.mxu0 0.0
    %1549 = vmatpush.msra.mxu0 0.0
    %1550 = vmatpush.msra.mxu0 0.0
    %1551 = vmatpush.msra.mxu0 0.0
    %1552 = vmatpush.msra.mxu0 0.0
    %1553 = vmatpush.msra.mxu0 0.0
    %1554 = vmatpush.msra.mxu0 0.0
    %1555 = vmatpush.msra.mxu0 0.0
    %1556 = vmatpush.msra.mxu0 %v1536
    %1557 = vmatmul.f32.gmra.mxu0 %v1539
    %v1558 = vpop.f32.mrf.mxu0
    %v1559 = vadd.f32 0.0, %v1558
    %1560 = vdwg.mxu0
    %1562 = vrot.lane.b32.xlu0 %v1425, 8
    %v1563 = vpop.permute.xlu0 %1562
    %1566 = vrot.lane.b32.xlu0 %v1492, 16
    %v1567 = vpop.permute.xlu0 %1566
    %1570 = vrot.lane.b32.xlu0 %v1559, 24
    %v1571 = vpop.permute.xlu0 %1570
    %v1573 = vsel %vm273, %v1358, %v1563
    %v1574 = vsel %vm551, %v1573, %v1567
    %v1575 = vsel %vm553, %v1574, %v1571
    %v1576 = vld [vmem:[#allocation8] sm:$0xff]
    %v1577 = vld [vmem:[#allocation8 + $0x8] sm:$0xff]
    %v1578 = vld [vmem:[#allocation8 + $0x10] sm:$0xff]
    %v1579 = vld [vmem:[#allocation8 + $0x18] sm:$0xff]
    %v1581 = vsel %vm169, %v1291, 0
    %v1584 = vsel %vm169, %v1575, 0
    %1586 = vmatpush.msra.mxu0 0.0
    %1587 = vmatpush.msra.mxu0 0.0
    %1588 = vmatpush.msra.mxu0 0.0
    %1589 = vmatpush.msra.mxu0 0.0
    %1590 = vmatpush.msra.mxu0 0.0
    %1591 = vmatpush.msra.mxu0 0.0
    %1592 = vmatpush.msra.mxu0 0.0
    %1593 = vmatpush.msra.mxu0 0.0
    %1594 = vmatpush.msra.mxu0 0.0
    %1595 = vmatpush.msra.mxu0 0.0
    %1596 = vmatpush.msra.mxu0 0.0
    %1597 = vmatpush.msra.mxu0 0.0
    %1598 = vmatpush.msra.mxu0 %v1579
    %1599 = vmatpush.msra.mxu0 %v1578
    %1600 = vmatpush.msra.mxu0 %v1577
    %1601 = vmatpush.msra.mxu0 %v1576
    %1602 = vmatmul.f32.gmra.mxu0 %v1581
    %v1603 = vpop.f32.mrf.mxu0
    %v1604 = vadd.f32 0.0, %v1603
    %1605 = vmatmul.f32.gmra.mxu0 %v1584
    %v1606 = vpop.f32.mrf.mxu0
    %v1607 = vadd.f32 0.0, %v1606
    %1608 = vdwg.mxu0
    %v1609 = vadd.f32 %v876, %v1604
    %v1610 = vadd.f32 %v877, %v1607
    %v1611 = vld [vmem:[%s15] sm:$0x1]
    %v1613 = vperm.slane %v1611, 0
    %v1615 = vadd.f32 %v1609, %v1613
    %v1616 = vadd.f32 %v1610, %v1613
    %v1617 = vsel %vm169, %v1615, 0.0
    %1618 = vadd.xlane.f32.xlu0 %v1617
    %v1619 = vpop.xlane.xlu0 %1618
    %v1620 = vsel %vm169, %v1616, 0.0
    %1621 = vadd.xlane.f32.xlu0 %v1620
    %v1622 = vpop.xlane.xlu0 %1621
    %v1623 = vmul.f32 %v1619, %v182
    %v1624 = vmul.f32 %v1622, %v182
    %v1625 = vsub.f32 %v1615, %v1623
    %v1626 = vsub.f32 %v1616, %v1624
    %v1627 = vmul.f32 %v1625, %v1625
    %v1628 = vmul.f32 %v1626, %v1626
    %v1629 = vsel %vm169, %v1627, 0.0
    %1630 = vadd.xlane.f32.xlu0 %v1629
    %v1631 = vpop.xlane.xlu0 %1630
    %v1632 = vsel %vm169, %v1628, 0.0
    %1633 = vadd.xlane.f32.xlu0 %v1632
    %v1634 = vpop.xlane.xlu0 %1633
    %v1635 = vmul.f32 %v1631, 0.032258064
    %v1636 = vmul.f32 %v1634, 0.032258064
    %v1637 = vrsqrt.pop %v1635
    %v1638 = vmul.f32 %v1637, %v1635
    %v1639 = vmul.f32 %v1638, %v1637
    %v1640 = vmul.f32 0.5, %v1639
    %v1641 = vsub.f32 1.5, %v1640
    %v1642 = vmul.f32 %v1637, %v1641
    %v1643 = vmul.f32 %v1635, %v1642
    %vm1644 = vcmp.eq.f32.partialorder %v1635, inf
    %v1645 = vsel %vm1644, %v1635, %v1643
    %vm1646 = vcmp.eq.f32.partialorder %v1635, 0.0
    %v1647 = vand.u32 %v1635, 2147483648
    %v1648 = vsel %vm1646, %v1647, %v1645
    %v1649 = vrsqrt.pop %v1636
    %v1650 = vmul.f32 %v1649, %v1636
    %v1651 = vmul.f32 %v1650, %v1649
    %v1652 = vmul.f32 0.5, %v1651
    %v1653 = vsub.f32 1.5, %v1652
    %v1654 = vmul.f32 %v1649, %v1653
    %v1655 = vmul.f32 %v1636, %v1654
    %vm1656 = vcmp.eq.f32.partialorder %v1636, inf
    %v1657 = vsel %vm1656, %v1636, %v1655
    %vm1658 = vcmp.eq.f32.partialorder %v1636, 0.0
    %v1659 = vand.u32 %v1636, 2147483648
    %v1660 = vsel %vm1658, %v1659, %v1657
    %v1661 = vadd.f32 %v1648, 1e-06
    %v1662 = vadd.f32 %v1660, 1e-06
    %v1663 = vrcp.pop %v1661
    %v1664 = vrcp.pop %v1662
    %v1665 = vperm.slane %v168, 4
    %v1666 = vmul.f32 %v1665, %v1625
    %v1667 = vmul.f32 %v1665, %v1626
    %v1668 = vmul.f32 %v1666, %v1663
    %v1669 = vmul.f32 %v1667, %v1664
    %v1670 = vperm.slane %v168, 5
    %v1671 = vadd.f32 %v1668, %v1670
    %v1672 = vadd.f32 %v1669, %v1670
    %v1673 = vld [vmem:[#allocation10] sm:$0xff]
    %v1674 = vld [vmem:[#allocation10 + $0x8] sm:$0xff]
    %v1675 = vld [vmem:[#allocation10 + $0x10] sm:$0xff]
    %v1676 = vld [vmem:[#allocation10 + $0x18] sm:$0xff]
    %v1677 = vld [vmem:[%s17] sm:$0x1]
    %v1679 = vperm.slane %v1677, 0
    %v1682 = vsel %vm169, %v1671, 0
    %v1685 = vsel %vm169, %v1672, 0
    %1687 = vmatpush.msra.mxu0 0.0
    %1688 = vmatpush.msra.mxu0 0.0
    %1689 = vmatpush.msra.mxu0 0.0
    %1690 = vmatpush.msra.mxu0 0.0
    %1691 = vmatpush.msra.mxu0 0.0
    %1692 = vmatpush.msra.mxu0 0.0
    %1693 = vmatpush.msra.mxu0 0.0
    %1694 = vmatpush.msra.mxu0 0.0
    %1695 = vmatpush.msra.mxu0 0.0
    %1696 = vmatpush.msra.mxu0 0.0
    %1697 = vmatpush.msra.mxu0 0.0
    %1698 = vmatpush.msra.mxu0 0.0
    %1699 = vmatpush.msra.mxu0 %v1676
    %1700 = vmatpush.msra.mxu0 %v1675
    %1701 = vmatpush.msra.mxu0 %v1674
    %1702 = vmatpush.msra.mxu0 %v1673
    %1703 = vmatmul.f32.gmra.mxu0 %v1682
    %v1704 = vpop.f32.mrf.mxu0
    %v1705 = vadd.f32 %v1679, %v1704
    %1706 = vmatmul.f32.gmra.mxu0 %v1685
    %v1707 = vpop.f32.mrf.mxu0
    %v1708 = vadd.f32 %v1679, %v1707
    %1709 = vdwg.mxu0
    %v1710 = vmax.f32 %v1705, 0.0
    %v1711 = vmax.f32 %v1708, 0.0
    %v1712 = vld [vmem:[%s18] sm:$0xff]
    %v1713 = vld [vmem:[%s18 + $0x8] sm:$0xff]
    %v1714 = vld [vmem:[%s18 + $0x10] sm:$0xff]
    %v1715 = vld [vmem:[%s18 + $0x18] sm:$0xff]
    %v1716 = vld [vmem:[%s18 + $0x20] sm:$0xff]
    %v1717 = vld [vmem:[%s18 + $0x28] sm:$0xff]
    %v1718 = vld [vmem:[%s18 + $0x30] sm:$0xff]
    %v1719 = vld [vmem:[%s18 + $0x38] sm:$0xff]
    %vm1720 = vcmask 523264
    %v1722 = vsel %vm1720, %v1710, 0
    %v1725 = vsel %vm1720, %v1711, 0
    %1727 = vmatpush.msra.mxu0 0.0
    %1728 = vmatpush.msra.mxu0 0.0
    %1729 = vmatpush.msra.mxu0 0.0
    %1730 = vmatpush.msra.mxu0 0.0
    %1731 = vmatpush.msra.mxu0 0.0
    %1732 = vmatpush.msra.mxu0 0.0
    %1733 = vmatpush.msra.mxu0 0.0
    %1734 = vmatpush.msra.mxu0 0.0
    %1735 = vmatpush.msra.mxu0 %v1719
    %1736 = vmatpush.msra.mxu0 %v1718
    %1737 = vmatpush.msra.mxu0 %v1717
    %1738 = vmatpush.msra.mxu0 %v1716
    %1739 = vmatpush.msra.mxu0 %v1715
    %1740 = vmatpush.msra.mxu0 %v1714
    %1741 = vmatpush.msra.mxu0 %v1713
    %1742 = vmatpush.msra.mxu0 %v1712
    %1743 = vmatmul.f32.gmra.mxu0 %v1722
    %v1744 = vpop.f32.mrf.mxu0
    %v1745 = vadd.f32 0.0, %v1744
    %1746 = vmatmul.f32.gmra.mxu0 %v1725
    %v1747 = vpop.f32.mrf.mxu0
    %v1748 = vadd.f32 0.0, %v1747
    %1749 = vdwg.mxu0
    %v1750 = vadd.f32 %v1615, %v1745
    %v1751 = vadd.f32 %v1616, %v1748
    %v1752 = vld [vmem:[%s19] sm:$0x1]
    %v1754 = vperm.slane %v1752, 0
    %v1756 = vadd.f32 %v1750, %v1754
    %v1757 = vadd.f32 %v1751, %v1754
    %s1758 = scalar_lea.vmem %s5, 8
    %v1759 = vld [vmem:[%s1758] sm:$0x3f]
    %v1760 = vsel %vm169, %v1756, 0.0
    %1761 = vadd.xlane.f32.xlu0 %v1760
    %v1762 = vpop.xlane.xlu0 %1761
    %v1763 = vsel %vm169, %v1757, 0.0
    %1764 = vadd.xlane.f32.xlu0 %v1763
    %v1765 = vpop.xlane.xlu0 %1764
    %v1766 = vmul.f32 %v1762, %v182
    %v1767 = vmul.f32 %v1765, %v182
    %v1768 = vsub.f32 %v1756, %v1766
    %v1769 = vsub.f32 %v1757, %v1767
    %v1770 = vmul.f32 %v1768, %v1768
    %v1771 = vmul.f32 %v1769, %v1769
    %v1772 = vsel %vm169, %v1770, 0.0
    %1773 = vadd.xlane.f32.xlu0 %v1772
    %v1774 = vpop.xlane.xlu0 %1773
    %v1775 = vsel %vm169, %v1771, 0.0
    %1776 = vadd.xlane.f32.xlu0 %v1775
    %v1777 = vpop.xlane.xlu0 %1776
    %v1778 = vmul.f32 %v1774, 0.032258064
    %v1779 = vmul.f32 %v1777, 0.032258064
    %v1780 = vrsqrt.pop %v1778
    %v1781 = vmul.f32 %v1780, %v1778
    %v1782 = vmul.f32 %v1781, %v1780
    %v1783 = vmul.f32 0.5, %v1782
    %v1784 = vsub.f32 1.5, %v1783
    %v1785 = vmul.f32 %v1780, %v1784
    %v1786 = vmul.f32 %v1778, %v1785
    %vm1787 = vcmp.eq.f32.partialorder %v1778, inf
    %v1788 = vsel %vm1787, %v1778, %v1786
    %vm1789 = vcmp.eq.f32.partialorder %v1778, 0.0
    %v1790 = vand.u32 %v1778, 2147483648
    %v1791 = vsel %vm1789, %v1790, %v1788
    %v1792 = vrsqrt.pop %v1779
    %v1793 = vmul.f32 %v1792, %v1779
    %v1794 = vmul.f32 %v1793, %v1792
    %v1795 = vmul.f32 0.5, %v1794
    %v1796 = vsub.f32 1.5, %v1795
    %v1797 = vmul.f32 %v1792, %v1796
    %v1798 = vmul.f32 %v1779, %v1797
    %vm1799 = vcmp.eq.f32.partialorder %v1779, inf
    %v1800 = vsel %vm1799, %v1779, %v1798
    %vm1801 = vcmp.eq.f32.partialorder %v1779, 0.0
    %v1802 = vand.u32 %v1779, 2147483648
    %v1803 = vsel %vm1801, %v1802, %v1800
    %v1804 = vadd.f32 %v1791, 1e-06
    %v1805 = vadd.f32 %v1803, 1e-06
    %v1806 = vrcp.pop %v1804
    %v1807 = vrcp.pop %v1805
    %v1808 = vperm.slane %v1759, 0
    %v1809 = vmul.f32 %v1808, %v1768
    %v1810 = vmul.f32 %v1808, %v1769
    %v1811 = vmul.f32 %v1809, %v1806
    %v1812 = vmul.f32 %v1810, %v1807
    %v1813 = vperm.slane %v1759, 1
    %v1814 = vadd.f32 %v1811, %v1813
    %v1815 = vadd.f32 %v1812, %v1813
    %s1816 = scalar_lea.vmem %s6, 32
    %v1817 = vld [vmem:[%s1816] sm:$0xff]
    %v1818 = vld [vmem:[%s1816 + $0x8] sm:$0xff]
    %v1819 = vld [vmem:[%s1816 + $0x10] sm:$0xff]
    %v1820 = vld [vmem:[%s1816 + $0x18] sm:$0xff]
    %s1821 = scalar_lea.vmem %s7, 1
    %v1822 = vld [vmem:[%s1821] sm:$0x1]
    %v1824 = vperm.slane %v1822, 0
    %v1827 = vsel %vm169, %v1814, 0
    %v1830 = vsel %vm169, %v1815, 0
    %1832 = vmatpush.msra.mxu0 0.0
    %1833 = vmatpush.msra.mxu0 0.0
    %1834 = vmatpush.msra.mxu0 0.0
    %1835 = vmatpush.msra.mxu0 0.0
    %1836 = vmatpush.msra.mxu0 0.0
    %1837 = vmatpush.msra.mxu0 0.0
    %1838 = vmatpush.msra.mxu0 0.0
    %1839 = vmatpush.msra.mxu0 0.0
    %1840 = vmatpush.msra.mxu0 0.0
    %1841 = vmatpush.msra.mxu0 0.0
    %1842 = vmatpush.msra.mxu0 0.0
    %1843 = vmatpush.msra.mxu0 0.0
    %1844 = vmatpush.msra.mxu0 %v1820
    %1845 = vmatpush.msra.mxu0 %v1819
    %1846 = vmatpush.msra.mxu0 %v1818
    %1847 = vmatpush.msra.mxu0 %v1817
    %1848 = vmatmul.f32.gmra.mxu0 %v1827
    %v1849 = vpop.f32.mrf.mxu0
    %v1850 = vadd.f32 %v1824, %v1849
    %1851 = vmatmul.f32.gmra.mxu0 %v1830
    %v1852 = vpop.f32.mrf.mxu0
    %v1853 = vadd.f32 %v1824, %v1852
    %1854 = vdwg.mxu0
    %1856 = vrot.lane.b32.xlu0 %v1850, 96
    %v1857 = vpop.permute.xlu0 %1856
    %v1858 = vsel %vm273, %v1850, 0
    %v1860 = vsel %vm273, %v1857, 0
    %1862 = vmatpush.xpose.msra.mxu0 0.0
    %1863 = vmatpush.xpose.msra.mxu0 0.0
    %1864 = vmatpush.xpose.msra.mxu0 0.0
    %1865 = vmatpush.xpose.msra.mxu0 0.0
    %1866 = vmatpush.xpose.msra.mxu0 0.0
    %1867 = vmatpush.xpose.msra.mxu0 0.0
    %1868 = vmatpush.xpose.msra.mxu0 0.0
    %1869 = vmatpush.xpose.msra.mxu0 0.0
    %1870 = vmatpush.xpose.msra.mxu0 0.0
    %1871 = vmatpush.xpose.msra.mxu0 0.0
    %1872 = vmatpush.xpose.msra.mxu0 0.0
    %1873 = vmatpush.xpose.msra.mxu0 0.0
    %1874 = vmatpush.xpose.msra.mxu0 0.0
    %1875 = vmatpush.xpose.msra.mxu0 0.0
    %1876 = vmatpush.xpose.msra.mxu0 0.0
    %1877 = vmatpush.xpose.msra.mxu0 %v1860
    %1878 = vmatmul.f32.gmra.mxu0 %v1858
    %v1879 = vpop.f32.mrf.mxu0
    %v1880 = vadd.f32 0.0, %v1879
    %1881 = vdwg.mxu0
    %v1882 = vmul.f32 %v1880, 0.35355338
    %v1883 = vadd.f32 %v1882, %v160
    %v1884 = vsel %vm273, %v1883, -inf
    %1885 = vmax.xlane.f32.xlu0 %v1884
    %v1886 = vpop.xlane.xlu0 %1885
    %v1887 = vsub.f32 %v1883, %v1886
    %v1888 = vmul.f32 %v1887, 1.442695
    %v1889 = vpow.pop %v1888
    %v1890 = vsel %vm273, %v1889, 0.0
    %1891 = vadd.xlane.f32.xlu0 %v1890
    %v1892 = vpop.xlane.xlu0 %1891
    %v1893 = vrcp.pop %v1892
    %v1894 = vmul.f32 %v1889, %v1893
    %1895 = vrot.lane.b32.xlu0 %v1850, 64
    %v1896 = vpop.permute.xlu0 %1895
    %v1899 = vsel %vm273, %v1894, 0
    %1901 = vmatpush.msra.mxu0 0.0
    %1902 = vmatpush.msra.mxu0 0.0
    %1903 = vmatpush.msra.mxu0 0.0
    %1904 = vmatpush.msra.mxu0 0.0
    %1905 = vmatpush.msra.mxu0 0.0
    %1906 = vmatpush.msra.mxu0 0.0
    %1907 = vmatpush.msra.mxu0 0.0
    %1908 = vmatpush.msra.mxu0 0.0
    %1909 = vmatpush.msra.mxu0 0.0
    %1910 = vmatpush.msra.mxu0 0.0
    %1911 = vmatpush.msra.mxu0 0.0
    %1912 = vmatpush.msra.mxu0 0.0
    %1913 = vmatpush.msra.mxu0 0.0
    %1914 = vmatpush.msra.mxu0 0.0
    %1915 = vmatpush.msra.mxu0 0.0
    %1916 = vmatpush.msra.mxu0 %v1896
    %1917 = vmatmul.f32.gmra.mxu0 %v1899
    %v1918 = vpop.f32.mrf.mxu0
    %v1919 = vadd.f32 0.0, %v1918
    %1920 = vdwg.mxu0
    %1921 = vrot.lane.b32.xlu0 %v1850, 120
    %v1922 = vpop.permute.xlu0 %1921
    %1923 = vrot.lane.b32.xlu0 %v1850, 88
    %v1924 = vpop.permute.xlu0 %1923
    %v1925 = vsel %vm273, %v1922, 0
    %v1927 = vsel %vm273, %v1924, 0
    %1929 = vmatpush.xpose.msra.mxu0 0.0
    %1930 = vmatpush.xpose.msra.mxu0 0.0
    %1931 = vmatpush.xpose.msra.mxu0 0.0
    %1932 = vmatpush.xpose.msra.mxu0 0.0
    %1933 = vmatpush.xpose.msra.mxu0 0.0
    %1934 = vmatpush.xpose.msra.mxu0 0.0
    %1935 = vmatpush.xpose.msra.mxu0 0.0
    %1936 = vmatpush.xpose.msra.mxu0 0.0
    %1937 = vmatpush.xpose.msra.mxu0 0.0
    %1938 = vmatpush.xpose.msra.mxu0 0.0
    %1939 = vmatpush.xpose.msra.mxu0 0.0
    %1940 = vmatpush.xpose.msra.mxu0 0.0
    %1941 = vmatpush.xpose.msra.mxu0 0.0
    %1942 = vmatpush.xpose.msra.mxu0 0.0
    %1943 = vmatpush.xpose.msra.mxu0 0.0
    %1944 = vmatpush.xpose.msra.mxu0 %v1927
    %1945 = vmatmul.f32.gmra.mxu0 %v1925
    %v1946 = vpop.f32.mrf.mxu0
    %v1947 = vadd.f32 0.0, %v1946
    %1948 = vdwg.mxu0
    %v1949 = vmul.f32 %v1947, 0.35355338
    %v1950 = vadd.f32 %v1949, %v160
    %v1951 = vsel %vm273, %v1950, -inf
    %1952 = vmax.xlane.f32.xlu0 %v1951
    %v1953 = vpop.xlane.xlu0 %1952
    %v1954 = vsub.f32 %v1950, %v1953
    %v1955 = vmul.f32 %v1954, 1.442695
    %v1956 = vpow.pop %v1955
    %v1957 = vsel %vm273, %v1956, 0.0
    %1958 = vadd.xlane.f32.xlu0 %v1957
    %v1959 = vpop.xlane.xlu0 %1958
    %v1960 = vrcp.pop %v1959
    %v1961 = vmul.f32 %v1956, %v1960
    %1962 = vrot.lane.b32.xlu0 %v1850, 56
    %v1963 = vpop.permute.xlu0 %1962
    %v1966 = vsel %vm273, %v1961, 0
    %1968 = vmatpush.msra.mxu0 0.0
    %1969 = vmatpush.msra.mxu0 0.0
    %1970 = vmatpush.msra.mxu0 0.0
    %1971 = vmatpush.msra.mxu0 0.0
    %1972 = vmatpush.msra.mxu0 0.0
    %1973 = vmatpush.msra.mxu0 0.0
    %1974 = vmatpush.msra.mxu0 0.0
    %1975 = vmatpush.msra.mxu0 0.0
    %1976 = vmatpush.msra.mxu0 0.0
    %1977 = vmatpush.msra.mxu0 0.0
    %1978 = vmatpush.msra.mxu0 0.0
    %1979 = vmatpush.msra.mxu0 0.0
    %1980 = vmatpush.msra.mxu0 0.0
    %1981 = vmatpush.msra.mxu0 0.0
    %1982 = vmatpush.msra.mxu0 0.0
    %1983 = vmatpush.msra.mxu0 %v1963
    %1984 = vmatmul.f32.gmra.mxu0 %v1966
    %v1985 = vpop.f32.mrf.mxu0
    %v1986 = vadd.f32 0.0, %v1985
    %1987 = vdwg.mxu0
    %1988 = vrot.lane.b32.xlu0 %v1850, 112
    %v1989 = vpop.permute.xlu0 %1988
    %1990 = vrot.lane.b32.xlu0 %v1850, 80
    %v1991 = vpop.permute.xlu0 %1990
    %v1992 = vsel %vm273, %v1989, 0
    %v1994 = vsel %vm273, %v1991, 0
    %1996 = vmatpush.xpose.msra.mxu0 0.0
    %1997 = vmatpush.xpose.msra.mxu0 0.0
    %1998 = vmatpush.xpose.msra.mxu0 0.0
    %1999 = vmatpush.xpose.msra.mxu0 0.0
    %2000 = vmatpush.xpose.msra.mxu0 0.0
    %2001 = vmatpush.xpose.msra.mxu0 0.0
    %2002 = vmatpush.xpose.msra.mxu0 0.0
    %2003 = vmatpush.xpose.msra.mxu0 0.0
    %2004 = vmatpush.xpose.msra.mxu0 0.0
    %2005 = vmatpush.xpose.msra.mxu0 0.0
    %2006 = vmatpush.xpose.msra.mxu0 0.0
    %2007 = vmatpush.xpose.msra.mxu0 0.0
    %2008 = vmatpush.xpose.msra.mxu0 0.0
    %2009 = vmatpush.xpose.msra.mxu0 0.0
    %2010 = vmatpush.xpose.msra.mxu0 0.0
    %2011 = vmatpush.xpose.msra.mxu0 %v1994
    %2012 = vmatmul.f32.gmra.mxu0 %v1992
    %v2013 = vpop.f32.mrf.mxu0
    %v2014 = vadd.f32 0.0, %v2013
    %2015 = vdwg.mxu0
    %v2016 = vmul.f32 %v2014, 0.35355338
    %v2017 = vadd.f32 %v2016, %v160
    %v2018 = vsel %vm273, %v2017, -inf
    %2019 = vmax.xlane.f32.xlu0 %v2018
    %v2020 = vpop.xlane.xlu0 %2019
    %v2021 = vsub.f32 %v2017, %v2020
    %v2022 = vmul.f32 %v2021, 1.442695
    %v2023 = vpow.pop %v2022
    %v2024 = vsel %vm273, %v2023, 0.0
    %2025 = vadd.xlane.f32.xlu0 %v2024
    %v2026 = vpop.xlane.xlu0 %2025
    %v2027 = vrcp.pop %v2026
    %v2028 = vmul.f32 %v2023, %v2027
    %2029 = vrot.lane.b32.xlu0 %v1850, 48
    %v2030 = vpop.permute.xlu0 %2029
    %v2033 = vsel %vm273, %v2028, 0
    %2035 = vmatpush.msra.mxu0 0.0
    %2036 = vmatpush.msra.mxu0 0.0
    %2037 = vmatpush.msra.mxu0 0.0
    %2038 = vmatpush.msra.mxu0 0.0
    %2039 = vmatpush.msra.mxu0 0.0
    %2040 = vmatpush.msra.mxu0 0.0
    %2041 = vmatpush.msra.mxu0 0.0
    %2042 = vmatpush.msra.mxu0 0.0
    %2043 = vmatpush.msra.mxu0 0.0
    %2044 = vmatpush.msra.mxu0 0.0
    %2045 = vmatpush.msra.mxu0 0.0
    %2046 = vmatpush.msra.mxu0 0.0
    %2047 = vmatpush.msra.mxu0 0.0
    %2048 = vmatpush.msra.mxu0 0.0
    %2049 = vmatpush.msra.mxu0 0.0
    %2050 = vmatpush.msra.mxu0 %v2030
    %2051 = vmatmul.f32.gmra.mxu0 %v2033
    %v2052 = vpop.f32.mrf.mxu0
    %v2053 = vadd.f32 0.0, %v2052
    %2054 = vdwg.mxu0
    %2055 = vrot.lane.b32.xlu0 %v1850, 104
    %v2056 = vpop.permute.xlu0 %2055
    %2057 = vrot.lane.b32.xlu0 %v1850, 72
    %v2058 = vpop.permute.xlu0 %2057
    %v2059 = vsel %vm273, %v2056, 0
    %v2061 = vsel %vm273, %v2058, 0
    %2063 = vmatpush.xpose.msra.mxu0 0.0
    %2064 = vmatpush.xpose.msra.mxu0 0.0
    %2065 = vmatpush.xpose.msra.mxu0 0.0
    %2066 = vmatpush.xpose.msra.mxu0 0.0
    %2067 = vmatpush.xpose.msra.mxu0 0.0
    %2068 = vmatpush.xpose.msra.mxu0 0.0
    %2069 = vmatpush.xpose.msra.mxu0 0.0
    %2070 = vmatpush.xpose.msra.mxu0 0.0
    %2071 = vmatpush.xpose.msra.mxu0 0.0
    %2072 = vmatpush.xpose.msra.mxu0 0.0
    %2073 = vmatpush.xpose.msra.mxu0 0.0
    %2074 = vmatpush.xpose.msra.mxu0 0.0
    %2075 = vmatpush.xpose.msra.mxu0 0.0
    %2076 = vmatpush.xpose.msra.mxu0 0.0
    %2077 = vmatpush.xpose.msra.mxu0 0.0
    %2078 = vmatpush.xpose.msra.mxu0 %v2061
    %2079 = vmatmul.f32.gmra.mxu0 %v2059
    %v2080 = vpop.f32.mrf.mxu0
    %v2081 = vadd.f32 0.0, %v2080
    %2082 = vdwg.mxu0
    %v2083 = vmul.f32 %v2081, 0.35355338
    %v2084 = vadd.f32 %v2083, %v160
    %v2085 = vsel %vm273, %v2084, -inf
    %2086 = vmax.xlane.f32.xlu0 %v2085
    %v2087 = vpop.xlane.xlu0 %2086
    %v2088 = vsub.f32 %v2084, %v2087
    %v2089 = vmul.f32 %v2088, 1.442695
    %v2090 = vpow.pop %v2089
    %v2091 = vsel %vm273, %v2090, 0.0
    %2092 = vadd.xlane.f32.xlu0 %v2091
    %v2093 = vpop.xlane.xlu0 %2092
    %v2094 = vrcp.pop %v2093
    %v2095 = vmul.f32 %v2090, %v2094
    %2096 = vrot.lane.b32.xlu0 %v1850, 40
    %v2097 = vpop.permute.xlu0 %2096
    %v2100 = vsel %vm273, %v2095, 0
    %2102 = vmatpush.msra.mxu0 0.0
    %2103 = vmatpush.msra.mxu0 0.0
    %2104 = vmatpush.msra.mxu0 0.0
    %2105 = vmatpush.msra.mxu0 0.0
    %2106 = vmatpush.msra.mxu0 0.0
    %2107 = vmatpush.msra.mxu0 0.0
    %2108 = vmatpush.msra.mxu0 0.0
    %2109 = vmatpush.msra.mxu0 0.0
    %2110 = vmatpush.msra.mxu0 0.0
    %2111 = vmatpush.msra.mxu0 0.0
    %2112 = vmatpush.msra.mxu0 0.0
    %2113 = vmatpush.msra.mxu0 0.0
    %2114 = vmatpush.msra.mxu0 0.0
    %2115 = vmatpush.msra.mxu0 0.0
    %2116 = vmatpush.msra.mxu0 0.0
    %2117 = vmatpush.msra.mxu0 %v2097
    %2118 = vmatmul.f32.gmra.mxu0 %v2100
    %v2119 = vpop.f32.mrf.mxu0
    %v2120 = vadd.f32 0.0, %v2119
    %2121 = vdwg.mxu0
    %2123 = vrot.lane.b32.xlu0 %v1986, 8
    %v2124 = vpop.permute.xlu0 %2123
    %2127 = vrot.lane.b32.xlu0 %v2053, 16
    %v2128 = vpop.permute.xlu0 %2127
    %2131 = vrot.lane.b32.xlu0 %v2120, 24
    %v2132 = vpop.permute.xlu0 %2131
    %v2134 = vsel %vm273, %v1919, %v2124
    %v2135 = vsel %vm551, %v2134, %v2128
    %v2136 = vsel %vm553, %v2135, %v2132
    %2138 = vrot.lane.b32.xlu0 %v1853, 96
    %v2139 = vpop.permute.xlu0 %2138
    %v2140 = vsel %vm273, %v1853, 0
    %v2142 = vsel %vm273, %v2139, 0
    %2144 = vmatpush.xpose.msra.mxu0 0.0
    %2145 = vmatpush.xpose.msra.mxu0 0.0
    %2146 = vmatpush.xpose.msra.mxu0 0.0
    %2147 = vmatpush.xpose.msra.mxu0 0.0
    %2148 = vmatpush.xpose.msra.mxu0 0.0
    %2149 = vmatpush.xpose.msra.mxu0 0.0
    %2150 = vmatpush.xpose.msra.mxu0 0.0
    %2151 = vmatpush.xpose.msra.mxu0 0.0
    %2152 = vmatpush.xpose.msra.mxu0 0.0
    %2153 = vmatpush.xpose.msra.mxu0 0.0
    %2154 = vmatpush.xpose.msra.mxu0 0.0
    %2155 = vmatpush.xpose.msra.mxu0 0.0
    %2156 = vmatpush.xpose.msra.mxu0 0.0
    %2157 = vmatpush.xpose.msra.mxu0 0.0
    %2158 = vmatpush.xpose.msra.mxu0 0.0
    %2159 = vmatpush.xpose.msra.mxu0 %v2142
    %2160 = vmatmul.f32.gmra.mxu0 %v2140
    %v2161 = vpop.f32.mrf.mxu0
    %v2162 = vadd.f32 0.0, %v2161
    %2163 = vdwg.mxu0
    %v2164 = vmul.f32 %v2162, 0.35355338
    %v2165 = vadd.f32 %v2164, %v161
    %v2166 = vsel %vm273, %v2165, -inf
    %2167 = vmax.xlane.f32.xlu0 %v2166
    %v2168 = vpop.xlane.xlu0 %2167
    %v2169 = vsub.f32 %v2165, %v2168
    %v2170 = vmul.f32 %v2169, 1.442695
    %v2171 = vpow.pop %v2170
    %v2172 = vsel %vm273, %v2171, 0.0
    %2173 = vadd.xlane.f32.xlu0 %v2172
    %v2174 = vpop.xlane.xlu0 %2173
    %v2175 = vrcp.pop %v2174
    %v2176 = vmul.f32 %v2171, %v2175
    %2177 = vrot.lane.b32.xlu0 %v1853, 64
    %v2178 = vpop.permute.xlu0 %2177
    %v2181 = vsel %vm273, %v2176, 0
    %2183 = vmatpush.msra.mxu0 0.0
    %2184 = vmatpush.msra.mxu0 0.0
    %2185 = vmatpush.msra.mxu0 0.0
    %2186 = vmatpush.msra.mxu0 0.0
    %2187 = vmatpush.msra.mxu0 0.0
    %2188 = vmatpush.msra.mxu0 0.0
    %2189 = vmatpush.msra.mxu0 0.0
    %2190 = vmatpush.msra.mxu0 0.0
    %2191 = vmatpush.msra.mxu0 0.0
    %2192 = vmatpush.msra.mxu0 0.0
    %2193 = vmatpush.msra.mxu0 0.0
    %2194 = vmatpush.msra.mxu0 0.0
    %2195 = vmatpush.msra.mxu0 0.0
    %2196 = vmatpush.msra.mxu0 0.0
    %2197 = vmatpush.msra.mxu0 0.0
    %2198 = vmatpush.msra.mxu0 %v2178
    %2199 = vmatmul.f32.gmra.mxu0 %v2181
    %v2200 = vpop.f32.mrf.mxu0
    %v2201 = vadd.f32 0.0, %v2200
    %2202 = vdwg.mxu0
    %2203 = vrot.lane.b32.xlu0 %v1853, 120
    %v2204 = vpop.permute.xlu0 %2203
    %2205 = vrot.lane.b32.xlu0 %v1853, 88
    %v2206 = vpop.permute.xlu0 %2205
    %v2207 = vsel %vm273, %v2204, 0
    %v2209 = vsel %vm273, %v2206, 0
    %2211 = vmatpush.xpose.msra.mxu0 0.0
    %2212 = vmatpush.xpose.msra.mxu0 0.0
    %2213 = vmatpush.xpose.msra.mxu0 0.0
    %2214 = vmatpush.xpose.msra.mxu0 0.0
    %2215 = vmatpush.xpose.msra.mxu0 0.0
    %2216 = vmatpush.xpose.msra.mxu0 0.0
    %2217 = vmatpush.xpose.msra.mxu0 0.0
    %2218 = vmatpush.xpose.msra.mxu0 0.0
    %2219 = vmatpush.xpose.msra.mxu0 0.0
    %2220 = vmatpush.xpose.msra.mxu0 0.0
    %2221 = vmatpush.xpose.msra.mxu0 0.0
    %2222 = vmatpush.xpose.msra.mxu0 0.0
    %2223 = vmatpush.xpose.msra.mxu0 0.0
    %2224 = vmatpush.xpose.msra.mxu0 0.0
    %2225 = vmatpush.xpose.msra.mxu0 0.0
    %2226 = vmatpush.xpose.msra.mxu0 %v2209
    %2227 = vmatmul.f32.gmra.mxu0 %v2207
    %v2228 = vpop.f32.mrf.mxu0
    %v2229 = vadd.f32 0.0, %v2228
    %2230 = vdwg.mxu0
    %v2231 = vmul.f32 %v2229, 0.35355338
    %v2232 = vadd.f32 %v2231, %v161
    %v2233 = vsel %vm273, %v2232, -inf
    %2234 = vmax.xlane.f32.xlu0 %v2233
    %v2235 = vpop.xlane.xlu0 %2234
    %v2236 = vsub.f32 %v2232, %v2235
    %v2237 = vmul.f32 %v2236, 1.442695
    %v2238 = vpow.pop %v2237
    %v2239 = vsel %vm273, %v2238, 0.0
    %2240 = vadd.xlane.f32.xlu0 %v2239
    %v2241 = vpop.xlane.xlu0 %2240
    %v2242 = vrcp.pop %v2241
    %v2243 = vmul.f32 %v2238, %v2242
    %2244 = vrot.lane.b32.xlu0 %v1853, 56
    %v2245 = vpop.permute.xlu0 %2244
    %v2248 = vsel %vm273, %v2243, 0
    %2250 = vmatpush.msra.mxu0 0.0
    %2251 = vmatpush.msra.mxu0 0.0
    %2252 = vmatpush.msra.mxu0 0.0
    %2253 = vmatpush.msra.mxu0 0.0
    %2254 = vmatpush.msra.mxu0 0.0
    %2255 = vmatpush.msra.mxu0 0.0
    %2256 = vmatpush.msra.mxu0 0.0
    %2257 = vmatpush.msra.mxu0 0.0
    %2258 = vmatpush.msra.mxu0 0.0
    %2259 = vmatpush.msra.mxu0 0.0
    %2260 = vmatpush.msra.mxu0 0.0
    %2261 = vmatpush.msra.mxu0 0.0
    %2262 = vmatpush.msra.mxu0 0.0
    %2263 = vmatpush.msra.mxu0 0.0
    %2264 = vmatpush.msra.mxu0 0.0
    %2265 = vmatpush.msra.mxu0 %v2245
    %2266 = vmatmul.f32.gmra.mxu0 %v2248
    %v2267 = vpop.f32.mrf.mxu0
    %v2268 = vadd.f32 0.0, %v2267
    %2269 = vdwg.mxu0
    %2270 = vrot.lane.b32.xlu0 %v1853, 112
    %v2271 = vpop.permute.xlu0 %2270
    %2272 = vrot.lane.b32.xlu0 %v1853, 80
    %v2273 = vpop.permute.xlu0 %2272
    %v2274 = vsel %vm273, %v2271, 0
    %v2276 = vsel %vm273, %v2273, 0
    %2278 = vmatpush.xpose.msra.mxu0 0.0
    %2279 = vmatpush.xpose.msra.mxu0 0.0
    %2280 = vmatpush.xpose.msra.mxu0 0.0
    %2281 = vmatpush.xpose.msra.mxu0 0.0
    %2282 = vmatpush.xpose.msra.mxu0 0.0
    %2283 = vmatpush.xpose.msra.mxu0 0.0
    %2284 = vmatpush.xpose.msra.mxu0 0.0
    %2285 = vmatpush.xpose.msra.mxu0 0.0
    %2286 = vmatpush.xpose.msra.mxu0 0.0
    %2287 = vmatpush.xpose.msra.mxu0 0.0
    %2288 = vmatpush.xpose.msra.mxu0 0.0
    %2289 = vmatpush.xpose.msra.mxu0 0.0
    %2290 = vmatpush.xpose.msra.mxu0 0.0
    %2291 = vmatpush.xpose.msra.mxu0 0.0
    %2292 = vmatpush.xpose.msra.mxu0 0.0
    %2293 = vmatpush.xpose.msra.mxu0 %v2276
    %2294 = vmatmul.f32.gmra.mxu0 %v2274
    %v2295 = vpop.f32.mrf.mxu0
    %v2296 = vadd.f32 0.0, %v2295
    %2297 = vdwg.mxu0
    %v2298 = vmul.f32 %v2296, 0.35355338
    %v2299 = vadd.f32 %v2298, %v161
    %v2300 = vsel %vm273, %v2299, -inf
    %2301 = vmax.xlane.f32.xlu0 %v2300
    %v2302 = vpop.xlane.xlu0 %2301
    %v2303 = vsub.f32 %v2299, %v2302
    %v2304 = vmul.f32 %v2303, 1.442695
    %v2305 = vpow.pop %v2304
    %v2306 = vsel %vm273, %v2305, 0.0
    %2307 = vadd.xlane.f32.xlu0 %v2306
    %v2308 = vpop.xlane.xlu0 %2307
    %v2309 = vrcp.pop %v2308
    %v2310 = vmul.f32 %v2305, %v2309
    %2311 = vrot.lane.b32.xlu0 %v1853, 48
    %v2312 = vpop.permute.xlu0 %2311
    %v2315 = vsel %vm273, %v2310, 0
    %2317 = vmatpush.msra.mxu0 0.0
    %2318 = vmatpush.msra.mxu0 0.0
    %2319 = vmatpush.msra.mxu0 0.0
    %2320 = vmatpush.msra.mxu0 0.0
    %2321 = vmatpush.msra.mxu0 0.0
    %2322 = vmatpush.msra.mxu0 0.0
    %2323 = vmatpush.msra.mxu0 0.0
    %2324 = vmatpush.msra.mxu0 0.0
    %2325 = vmatpush.msra.mxu0 0.0
    %2326 = vmatpush.msra.mxu0 0.0
    %2327 = vmatpush.msra.mxu0 0.0
    %2328 = vmatpush.msra.mxu0 0.0
    %2329 = vmatpush.msra.mxu0 0.0
    %2330 = vmatpush.msra.mxu0 0.0
    %2331 = vmatpush.msra.mxu0 0.0
    %2332 = vmatpush.msra.mxu0 %v2312
    %2333 = vmatmul.f32.gmra.mxu0 %v2315
    %v2334 = vpop.f32.mrf.mxu0
    %v2335 = vadd.f32 0.0, %v2334
    %2336 = vdwg.mxu0
    %2337 = vrot.lane.b32.xlu0 %v1853, 104
    %v2338 = vpop.permute.xlu0 %2337
    %2339 = vrot.lane.b32.xlu0 %v1853, 72
    %v2340 = vpop.permute.xlu0 %2339
    %v2341 = vsel %vm273, %v2338, 0
    %v2343 = vsel %vm273, %v2340, 0
    %2345 = vmatpush.xpose.msra.mxu0 0.0
    %2346 = vmatpush.xpose.msra.mxu0 0.0
    %2347 = vmatpush.xpose.msra.mxu0 0.0
    %2348 = vmatpush.xpose.msra.mxu0 0.0
    %2349 = vmatpush.xpose.msra.mxu0 0.0
    %2350 = vmatpush.xpose.msra.mxu0 0.0
    %2351 = vmatpush.xpose.msra.mxu0 0.0
    %2352 = vmatpush.xpose.msra.mxu0 0.0
    %2353 = vmatpush.xpose.msra.mxu0 0.0
    %2354 = vmatpush.xpose.msra.mxu0 0.0
    %2355 = vmatpush.xpose.msra.mxu0 0.0
    %2356 = vmatpush.xpose.msra.mxu0 0.0
    %2357 = vmatpush.xpose.msra.mxu0 0.0
    %2358 = vmatpush.xpose.msra.mxu0 0.0
    %2359 = vmatpush.xpose.msra.mxu0 0.0
    %2360 = vmatpush.xpose.msra.mxu0 %v2343
    %2361 = vmatmul.f32.gmra.mxu0 %v2341
    %v2362 = vpop.f32.mrf.mxu0
    %v2363 = vadd.f32 0.0, %v2362
    %2364 = vdwg.mxu0
    %v2365 = vmul.f32 %v2363, 0.35355338
    %v2366 = vadd.f32 %v2365, %v161
    %v2367 = vsel %vm273, %v2366, -inf
    %2368 = vmax.xlane.f32.xlu0 %v2367
    %v2369 = vpop.xlane.xlu0 %2368
    %v2370 = vsub.f32 %v2366, %v2369
    %v2371 = vmul.f32 %v2370, 1.442695
    %v2372 = vpow.pop %v2371
    %v2373 = vsel %vm273, %v2372, 0.0
    %2374 = vadd.xlane.f32.xlu0 %v2373
    %v2375 = vpop.xlane.xlu0 %2374
    %v2376 = vrcp.pop %v2375
    %v2377 = vmul.f32 %v2372, %v2376
    %2378 = vrot.lane.b32.xlu0 %v1853, 40
    %v2379 = vpop.permute.xlu0 %2378
    %v2382 = vsel %vm273, %v2377, 0
    %2384 = vmatpush.msra.mxu0 0.0
    %2385 = vmatpush.msra.mxu0 0.0
    %2386 = vmatpush.msra.mxu0 0.0
    %2387 = vmatpush.msra.mxu0 0.0
    %2388 = vmatpush.msra.mxu0 0.0
    %2389 = vmatpush.msra.mxu0 0.0
    %2390 = vmatpush.msra.mxu0 0.0
    %2391 = vmatpush.msra.mxu0 0.0
    %2392 = vmatpush.msra.mxu0 0.0
    %2393 = vmatpush.msra.mxu0 0.0
    %2394 = vmatpush.msra.mxu0 0.0
    %2395 = vmatpush.msra.mxu0 0.0
    %2396 = vmatpush.msra.mxu0 0.0
    %2397 = vmatpush.msra.mxu0 0.0
    %2398 = vmatpush.msra.mxu0 0.0
    %2399 = vmatpush.msra.mxu0 %v2379
    %2400 = vmatmul.f32.gmra.mxu0 %v2382
    %v2401 = vpop.f32.mrf.mxu0
    %v2402 = vadd.f32 0.0, %v2401
    %2403 = vdwg.mxu0
    %2405 = vrot.lane.b32.xlu0 %v2268, 8
    %v2406 = vpop.permute.xlu0 %2405
    %2409 = vrot.lane.b32.xlu0 %v2335, 16
    %v2410 = vpop.permute.xlu0 %2409
    %2413 = vrot.lane.b32.xlu0 %v2402, 24
    %v2414 = vpop.permute.xlu0 %2413
    %v2416 = vsel %vm273, %v2201, %v2406
    %v2417 = vsel %vm551, %v2416, %v2410
    %v2418 = vsel %vm553, %v2417, %v2414
    %s2419 = scalar_lea.vmem %s8, 32
    %v2420 = vld [vmem:[%s2419] sm:$0xff]
    %v2421 = vld [vmem:[%s2419 + $0x8] sm:$0xff]
    %v2422 = vld [vmem:[%s2419 + $0x10] sm:$0xff]
    %v2423 = vld [vmem:[%s2419 + $0x18] sm:$0xff]
    %v2425 = vsel %vm169, %v2136, 0
    %v2428 = vsel %vm169, %v2418, 0
    %2430 = vmatpush.msra.mxu0 0.0
    %2431 = vmatpush.msra.mxu0 0.0
    %2432 = vmatpush.msra.mxu0 0.0
    %2433 = vmatpush.msra.mxu0 0.0
    %2434 = vmatpush.msra.mxu0 0.0
    %2435 = vmatpush.msra.mxu0 0.0
    %2436 = vmatpush.msra.mxu0 0.0
    %2437 = vmatpush.msra.mxu0 0.0
    %2438 = vmatpush.msra.mxu0 0.0
    %2439 = vmatpush.msra.mxu0 0.0
    %2440 = vmatpush.msra.mxu0 0.0
    %2441 = vmatpush.msra.mxu0 0.0
    %2442 = vmatpush.msra.mxu0 %v2423
    %2443 = vmatpush.msra.mxu0 %v2422
    %2444 = vmatpush.msra.mxu0 %v2421
    %2445 = vmatpush.msra.mxu0 %v2420
    %2446 = vmatmul.f32.gmra.mxu0 %v2425
    %v2447 = vpop.f32.mrf.mxu0
    %v2448 = vadd.f32 0.0, %v2447
    %2449 = vmatmul.f32.gmra.mxu0 %v2428
    %v2450 = vpop.f32.mrf.mxu0
    %v2451 = vadd.f32 0.0, %v2450
    %2452 = vdwg.mxu0
    %v2453 = vadd.f32 %v1756, %v2448
    %v2454 = vadd.f32 %v1757, %v2451
    %s2455 = scalar_lea.vmem %s9, 1
    %v2456 = vld [vmem:[%s2455] sm:$0x1]
    %v2458 = vperm.slane %v2456, 0
    %v2460 = vadd.f32 %v2453, %v2458
    %v2461 = vadd.f32 %v2454, %v2458
    %v2462 = vsel %vm169, %v2460, 0.0
    %2463 = vadd.xlane.f32.xlu0 %v2462
    %v2464 = vpop.xlane.xlu0 %2463
    %v2465 = vsel %vm169, %v2461, 0.0
    %2466 = vadd.xlane.f32.xlu0 %v2465
    %v2467 = vpop.xlane.xlu0 %2466
    %v2468 = vmul.f32 %v2464, %v182
    %v2469 = vmul.f32 %v2467, %v182
    %v2470 = vsub.f32 %v2460, %v2468
    %v2471 = vsub.f32 %v2461, %v2469
    %v2472 = vmul.f32 %v2470, %v2470
    %v2473 = vmul.f32 %v2471, %v2471
    %v2474 = vsel %vm169, %v2472, 0.0
    %2475 = vadd.xlane.f32.xlu0 %v2474
    %v2476 = vpop.xlane.xlu0 %2475
    %v2477 = vsel %vm169, %v2473, 0.0
    %2478 = vadd.xlane.f32.xlu0 %v2477
    %v2479 = vpop.xlane.xlu0 %2478
    %v2480 = vmul.f32 %v2476, 0.032258064
    %v2481 = vmul.f32 %v2479, 0.032258064
    %v2482 = vrsqrt.pop %v2480
    %v2483 = vmul.f32 %v2482, %v2480
    %v2484 = vmul.f32 %v2483, %v2482
    %v2485 = vmul.f32 0.5, %v2484
    %v2486 = vsub.f32 1.5, %v2485
    %v2487 = vmul.f32 %v2482, %v2486
    %v2488 = vmul.f32 %v2480, %v2487
    %vm2489 = vcmp.eq.f32.partialorder %v2480, inf
    %v2490 = vsel %vm2489, %v2480, %v2488
    %vm2491 = vcmp.eq.f32.partialorder %v2480, 0.0
    %v2492 = vand.u32 %v2480, 2147483648
    %v2493 = vsel %vm2491, %v2492, %v2490
    %v2494 = vrsqrt.pop %v2481
    %v2495 = vmul.f32 %v2494, %v2481
    %v2496 = vmul.f32 %v2495, %v2494
    %v2497 = vmul.f32 0.5, %v2496
    %v2498 = vsub.f32 1.5, %v2497
    %v2499 = vmul.f32 %v2494, %v2498
    %v2500 = vmul.f32 %v2481, %v2499
    %vm2501 = vcmp.eq.f32.partialorder %v2481, inf
    %v2502 = vsel %vm2501, %v2481, %v2500
    %vm2503 = vcmp.eq.f32.partialorder %v2481, 0.0
    %v2504 = vand.u32 %v2481, 2147483648
    %v2505 = vsel %vm2503, %v2504, %v2502
    %v2506 = vadd.f32 %v2493, 1e-06
    %v2507 = vadd.f32 %v2505, 1e-06
    %v2508 = vrcp.pop %v2506
    %v2509 = vrcp.pop %v2507
    %v2510 = vperm.slane %v1759, 2
    %v2511 = vmul.f32 %v2510, %v2470
    %v2512 = vmul.f32 %v2510, %v2471
    %v2513 = vmul.f32 %v2511, %v2508
    %v2514 = vmul.f32 %v2512, %v2509
    %v2515 = vperm.slane %v1759, 3
    %v2516 = vadd.f32 %v2513, %v2515
    %v2517 = vadd.f32 %v2514, %v2515
    %s2518 = scalar_lea.vmem %s10, 32
    %v2519 = vld [vmem:[%s2518] sm:$0xff]
    %v2520 = vld [vmem:[%s2518 + $0x8] sm:$0xff]
    %v2521 = vld [vmem:[%s2518 + $0x10] sm:$0xff]
    %v2522 = vld [vmem:[%s2518 + $0x18] sm:$0xff]
    %s2523 = scalar_lea.vmem %s11, 1
    %v2524 = vld [vmem:[%s2523] sm:$0x1]
    %v2526 = vperm.slane %v2524, 0
    %v2529 = vsel %vm169, %v2516, 0
    %v2532 = vsel %vm169, %v2517, 0
    %2534 = vmatpush.msra.mxu0 0.0
    %2535 = vmatpush.msra.mxu0 0.0
    %2536 = vmatpush.msra.mxu0 0.0
    %2537 = vmatpush.msra.mxu0 0.0
    %2538 = vmatpush.msra.mxu0 0.0
    %2539 = vmatpush.msra.mxu0 0.0
    %2540 = vmatpush.msra.mxu0 0.0
    %2541 = vmatpush.msra.mxu0 0.0
    %2542 = vmatpush.msra.mxu0 0.0
    %2543 = vmatpush.msra.mxu0 0.0
    %2544 = vmatpush.msra.mxu0 0.0
    %2545 = vmatpush.msra.mxu0 0.0
    %2546 = vmatpush.msra.mxu0 %v2522
    %2547 = vmatpush.msra.mxu0 %v2521
    %2548 = vmatpush.msra.mxu0 %v2520
    %2549 = vmatpush.msra.mxu0 %v2519
    %2550 = vmatmul.f32.gmra.mxu0 %v2529
    %v2551 = vpop.f32.mrf.mxu0
    %v2552 = vadd.f32 %v2526, %v2551
    %2553 = vmatmul.f32.gmra.mxu0 %v2532
    %v2554 = vpop.f32.mrf.mxu0
    %v2555 = vadd.f32 %v2526, %v2554
    %2556 = vdwg.mxu0
    %s2557 = scalar_lea.vmem [#allocation7], 32
    %v2558 = vld [vmem:[%s2557] sm:$0xff]
    %v2559 = vld [vmem:[%s2557 + $0x8] sm:$0xff]
    %v2560 = vld [vmem:[%s2557 + $0x10] sm:$0xff]
    %v2561 = vld [vmem:[%s2557 + $0x18] sm:$0xff]
    %s2562 = scalar_lea.vmem %s13, 1
    %v2563 = vld [vmem:[%s2562] sm:$0x1]
    %v2565 = vperm.slane %v2563, 0
    %2567 = vmatpush.msra.mxu0 0.0
    %2568 = vmatpush.msra.mxu0 0.0
    %2569 = vmatpush.msra.mxu0 0.0
    %2570 = vmatpush.msra.mxu0 0.0
    %2571 = vmatpush.msra.mxu0 0.0
    %2572 = vmatpush.msra.mxu0 0.0
    %2573 = vmatpush.msra.mxu0 0.0
    %2574 = vmatpush.msra.mxu0 0.0
    %2575 = vmatpush.msra.mxu0 0.0
    %2576 = vmatpush.msra.mxu0 0.0
    %2577 = vmatpush.msra.mxu0 0.0
    %2578 = vmatpush.msra.mxu0 0.0
    %2579 = vmatpush.msra.mxu0 %v2561
    %2580 = vmatpush.msra.mxu0 %v2560
    %2581 = vmatpush.msra.mxu0 %v2559
    %2582 = vmatpush.msra.mxu0 %v2558
    %2583 = vmatmul.f32.gmra.mxu0 %v980
    %v2584 = vpop.f32.mrf.mxu0
    %v2585 = vadd.f32 %v2565, %v2584
    %2586 = vmatmul.f32.gmra.mxu0 %v983
    %v2587 = vpop.f32.mrf.mxu0
    %v2588 = vadd.f32 %v2565, %v2587
    %2589 = vdwg.mxu0
    %v2591 = vsel %vm273, %v2552, 0
    %v2594 = vsel %vm273, %v2585, 0
    %2596 = vmatpush.xpose.msra.mxu0 0.0
    %2597 = vmatpush.xpose.msra.mxu0 0.0
    %2598 = vmatpush.xpose.msra.mxu0 0.0
    %2599 = vmatpush.xpose.msra.mxu0 0.0
    %2600 = vmatpush.xpose.msra.mxu0 0.0
    %2601 = vmatpush.xpose.msra.mxu0 0.0
    %2602 = vmatpush.xpose.msra.mxu0 0.0
    %2603 = vmatpush.xpose.msra.mxu0 0.0
    %2604 = vmatpush.xpose.msra.mxu0 0.0
    %2605 = vmatpush.xpose.msra.mxu0 0.0
    %2606 = vmatpush.xpose.msra.mxu0 0.0
    %2607 = vmatpush.xpose.msra.mxu0 0.0
    %2608 = vmatpush.xpose.msra.mxu0 0.0
    %2609 = vmatpush.xpose.msra.mxu0 0.0
    %2610 = vmatpush.xpose.msra.mxu0 0.0
    %2611 = vmatpush.xpose.msra.mxu0 %v2594
    %2612 = vmatmul.f32.gmra.mxu0 %v2591
    %v2613 = vpop.f32.mrf.mxu0
    %v2614 = vadd.f32 0.0, %v2613
    %2615 = vdwg.mxu0
    %v2616 = vmul.f32 %v2614, 0.35355338
    %v2617 = vadd.f32 %v2616, %v1036
    %v2618 = vsel %vm273, %v2617, -inf
    %2619 = vmax.xlane.f32.xlu0 %v2618
    %v2620 = vpop.xlane.xlu0 %2619
    %v2621 = vsub.f32 %v2617, %v2620
    %v2622 = vmul.f32 %v2621, 1.442695
    %v2623 = vpow.pop %v2622
    %v2624 = vsel %vm273, %v2623, 0.0
    %2625 = vadd.xlane.f32.xlu0 %v2624
    %v2626 = vpop.xlane.xlu0 %2625
    %v2627 = vrcp.pop %v2626
    %v2628 = vmul.f32 %v2623, %v2627
    %2629 = vrot.lane.b32.xlu0 %v2585, 96
    %v2630 = vpop.permute.xlu0 %2629
    %v2633 = vsel %vm273, %v2628, 0
    %2635 = vmatpush.msra.mxu0 0.0
    %2636 = vmatpush.msra.mxu0 0.0
    %2637 = vmatpush.msra.mxu0 0.0
    %2638 = vmatpush.msra.mxu0 0.0
    %2639 = vmatpush.msra.mxu0 0.0
    %2640 = vmatpush.msra.mxu0 0.0
    %2641 = vmatpush.msra.mxu0 0.0
    %2642 = vmatpush.msra.mxu0 0.0
    %2643 = vmatpush.msra.mxu0 0.0
    %2644 = vmatpush.msra.mxu0 0.0
    %2645 = vmatpush.msra.mxu0 0.0
    %2646 = vmatpush.msra.mxu0 0.0
    %2647 = vmatpush.msra.mxu0 0.0
    %2648 = vmatpush.msra.mxu0 0.0
    %2649 = vmatpush.msra.mxu0 0.0
    %2650 = vmatpush.msra.mxu0 %v2630
    %2651 = vmatmul.f32.gmra.mxu0 %v2633
    %v2652 = vpop.f32.mrf.mxu0
    %v2653 = vadd.f32 0.0, %v2652
    %2654 = vdwg.mxu0
    %2655 = vrot.lane.b32.xlu0 %v2552, 120
    %v2656 = vpop.permute.xlu0 %2655
    %2657 = vrot.lane.b32.xlu0 %v2585, 120
    %v2658 = vpop.permute.xlu0 %2657
    %v2659 = vsel %vm273, %v2656, 0
    %v2661 = vsel %vm273, %v2658, 0
    %2663 = vmatpush.xpose.msra.mxu0 0.0
    %2664 = vmatpush.xpose.msra.mxu0 0.0
    %2665 = vmatpush.xpose.msra.mxu0 0.0
    %2666 = vmatpush.xpose.msra.mxu0 0.0
    %2667 = vmatpush.xpose.msra.mxu0 0.0
    %2668 = vmatpush.xpose.msra.mxu0 0.0
    %2669 = vmatpush.xpose.msra.mxu0 0.0
    %2670 = vmatpush.xpose.msra.mxu0 0.0
    %2671 = vmatpush.xpose.msra.mxu0 0.0
    %2672 = vmatpush.xpose.msra.mxu0 0.0
    %2673 = vmatpush.xpose.msra.mxu0 0.0
    %2674 = vmatpush.xpose.msra.mxu0 0.0
    %2675 = vmatpush.xpose.msra.mxu0 0.0
    %2676 = vmatpush.xpose.msra.mxu0 0.0
    %2677 = vmatpush.xpose.msra.mxu0 0.0
    %2678 = vmatpush.xpose.msra.mxu0 %v2661
    %2679 = vmatmul.f32.gmra.mxu0 %v2659
    %v2680 = vpop.f32.mrf.mxu0
    %v2681 = vadd.f32 0.0, %v2680
    %2682 = vdwg.mxu0
    %v2683 = vmul.f32 %v2681, 0.35355338
    %v2684 = vadd.f32 %v2683, %v1036
    %v2685 = vsel %vm273, %v2684, -inf
    %2686 = vmax.xlane.f32.xlu0 %v2685
    %v2687 = vpop.xlane.xlu0 %2686
    %v2688 = vsub.f32 %v2684, %v2687
    %v2689 = vmul.f32 %v2688, 1.442695
    %v2690 = vpow.pop %v2689
    %v2691 = vsel %vm273, %v2690, 0.0
    %2692 = vadd.xlane.f32.xlu0 %v2691
    %v2693 = vpop.xlane.xlu0 %2692
    %v2694 = vrcp.pop %v2693
    %v2695 = vmul.f32 %v2690, %v2694
    %2696 = vrot.lane.b32.xlu0 %v2585, 88
    %v2697 = vpop.permute.xlu0 %2696
    %v2700 = vsel %vm273, %v2695, 0
    %2702 = vmatpush.msra.mxu0 0.0
    %2703 = vmatpush.msra.mxu0 0.0
    %2704 = vmatpush.msra.mxu0 0.0
    %2705 = vmatpush.msra.mxu0 0.0
    %2706 = vmatpush.msra.mxu0 0.0
    %2707 = vmatpush.msra.mxu0 0.0
    %2708 = vmatpush.msra.mxu0 0.0
    %2709 = vmatpush.msra.mxu0 0.0
    %2710 = vmatpush.msra.mxu0 0.0
    %2711 = vmatpush.msra.mxu0 0.0
    %2712 = vmatpush.msra.mxu0 0.0
    %2713 = vmatpush.msra.mxu0 0.0
    %2714 = vmatpush.msra.mxu0 0.0
    %2715 = vmatpush.msra.mxu0 0.0
    %2716 = vmatpush.msra.mxu0 0.0
    %2717 = vmatpush.msra.mxu0 %v2697
    %2718 = vmatmul.f32.gmra.mxu0 %v2700
    %v2719 = vpop.f32.mrf.mxu0
    %v2720 = vadd.f32 0.0, %v2719
    %2721 = vdwg.mxu0
    %2722 = vrot.lane.b32.xlu0 %v2552, 112
    %v2723 = vpop.permute.xlu0 %2722
    %2724 = vrot.lane.b32.xlu0 %v2585, 112
    %v2725 = vpop.permute.xlu0 %2724
    %v2726 = vsel %vm273, %v2723, 0
    %v2728 = vsel %vm273, %v2725, 0
    %2730 = vmatpush.xpose.msra.mxu0 0.0
    %2731 = vmatpush.xpose.msra.mxu0 0.0
    %2732 = vmatpush.xpose.msra.mxu0 0.0
    %2733 = vmatpush.xpose.msra.mxu0 0.0
    %2734 = vmatpush.xpose.msra.mxu0 0.0
    %2735 = vmatpush.xpose.msra.mxu0 0.0
    %2736 = vmatpush.xpose.msra.mxu0 0.0
    %2737 = vmatpush.xpose.msra.mxu0 0.0
    %2738 = vmatpush.xpose.msra.mxu0 0.0
    %2739 = vmatpush.xpose.msra.mxu0 0.0
    %2740 = vmatpush.xpose.msra.mxu0 0.0
    %2741 = vmatpush.xpose.msra.mxu0 0.0
    %2742 = vmatpush.xpose.msra.mxu0 0.0
    %2743 = vmatpush.xpose.msra.mxu0 0.0
    %2744 = vmatpush.xpose.msra.mxu0 0.0
    %2745 = vmatpush.xpose.msra.mxu0 %v2728
    %2746 = vmatmul.f32.gmra.mxu0 %v2726
    %v2747 = vpop.f32.mrf.mxu0
    %v2748 = vadd.f32 0.0, %v2747
    %2749 = vdwg.mxu0
    %v2750 = vmul.f32 %v2748, 0.35355338
    %v2751 = vadd.f32 %v2750, %v1036
    %v2752 = vsel %vm273, %v2751, -inf
    %2753 = vmax.xlane.f32.xlu0 %v2752
    %v2754 = vpop.xlane.xlu0 %2753
    %v2755 = vsub.f32 %v2751, %v2754
    %v2756 = vmul.f32 %v2755, 1.442695
    %v2757 = vpow.pop %v2756
    %v2758 = vsel %vm273, %v2757, 0.0
    %2759 = vadd.xlane.f32.xlu0 %v2758
    %v2760 = vpop.xlane.xlu0 %2759
    %v2761 = vrcp.pop %v2760
    %v2762 = vmul.f32 %v2757, %v2761
    %2763 = vrot.lane.b32.xlu0 %v2585, 80
    %v2764 = vpop.permute.xlu0 %2763
    %v2767 = vsel %vm273, %v2762, 0
    %2769 = vmatpush.msra.mxu0 0.0
    %2770 = vmatpush.msra.mxu0 0.0
    %2771 = vmatpush.msra.mxu0 0.0
    %2772 = vmatpush.msra.mxu0 0.0
    %2773 = vmatpush.msra.mxu0 0.0
    %2774 = vmatpush.msra.mxu0 0.0
    %2775 = vmatpush.msra.mxu0 0.0
    %2776 = vmatpush.msra.mxu0 0.0
    %2777 = vmatpush.msra.mxu0 0.0
    %2778 = vmatpush.msra.mxu0 0.0
    %2779 = vmatpush.msra.mxu0 0.0
    %2780 = vmatpush.msra.mxu0 0.0
    %2781 = vmatpush.msra.mxu0 0.0
    %2782 = vmatpush.msra.mxu0 0.0
    %2783 = vmatpush.msra.mxu0 0.0
    %2784 = vmatpush.msra.mxu0 %v2764
    %2785 = vmatmul.f32.gmra.mxu0 %v2767
    %v2786 = vpop.f32.mrf.mxu0
    %v2787 = vadd.f32 0.0, %v2786
    %2788 = vdwg.mxu0
    %2789 = vrot.lane.b32.xlu0 %v2552, 104
    %v2790 = vpop.permute.xlu0 %2789
    %2791 = vrot.lane.b32.xlu0 %v2585, 104
    %v2792 = vpop.permute.xlu0 %2791
    %v2793 = vsel %vm273, %v2790, 0
    %v2795 = vsel %vm273, %v2792, 0
    %2797 = vmatpush.xpose.msra.mxu0 0.0
    %2798 = vmatpush.xpose.msra.mxu0 0.0
    %2799 = vmatpush.xpose.msra.mxu0 0.0
    %2800 = vmatpush.xpose.msra.mxu0 0.0
    %2801 = vmatpush.xpose.msra.mxu0 0.0
    %2802 = vmatpush.xpose.msra.mxu0 0.0
    %2803 = vmatpush.xpose.msra.mxu0 0.0
    %2804 = vmatpush.xpose.msra.mxu0 0.0
    %2805 = vmatpush.xpose.msra.mxu0 0.0
    %2806 = vmatpush.xpose.msra.mxu0 0.0
    %2807 = vmatpush.xpose.msra.mxu0 0.0
    %2808 = vmatpush.xpose.msra.mxu0 0.0
    %2809 = vmatpush.xpose.msra.mxu0 0.0
    %2810 = vmatpush.xpose.msra.mxu0 0.0
    %2811 = vmatpush.xpose.msra.mxu0 0.0
    %2812 = vmatpush.xpose.msra.mxu0 %v2795
    %2813 = vmatmul.f32.gmra.mxu0 %v2793
    %v2814 = vpop.f32.mrf.mxu0
    %v2815 = vadd.f32 0.0, %v2814
    %2816 = vdwg.mxu0
    %v2817 = vmul.f32 %v2815, 0.35355338
    %v2818 = vadd.f32 %v2817, %v1036
    %v2819 = vsel %vm273, %v2818, -inf
    %2820 = vmax.xlane.f32.xlu0 %v2819
    %v2821 = vpop.xlane.xlu0 %2820
    %v2822 = vsub.f32 %v2818, %v2821
    %v2823 = vmul.f32 %v2822, 1.442695
    %v2824 = vpow.pop %v2823
    %v2825 = vsel %vm273, %v2824, 0.0
    %2826 = vadd.xlane.f32.xlu0 %v2825
    %v2827 = vpop.xlane.xlu0 %2826
    %v2828 = vrcp.pop %v2827
    %v2829 = vmul.f32 %v2824, %v2828
    %2830 = vrot.lane.b32.xlu0 %v2585, 72
    %v2831 = vpop.permute.xlu0 %2830
    %v2834 = vsel %vm273, %v2829, 0
    %2836 = vmatpush.msra.mxu0 0.0
    %2837 = vmatpush.msra.mxu0 0.0
    %2838 = vmatpush.msra.mxu0 0.0
    %2839 = vmatpush.msra.mxu0 0.0
    %2840 = vmatpush.msra.mxu0 0.0
    %2841 = vmatpush.msra.mxu0 0.0
    %2842 = vmatpush.msra.mxu0 0.0
    %2843 = vmatpush.msra.mxu0 0.0
    %2844 = vmatpush.msra.mxu0 0.0
    %2845 = vmatpush.msra.mxu0 0.0
    %2846 = vmatpush.msra.mxu0 0.0
    %2847 = vmatpush.msra.mxu0 0.0
    %2848 = vmatpush.msra.mxu0 0.0
    %2849 = vmatpush.msra.mxu0 0.0
    %2850 = vmatpush.msra.mxu0 0.0
    %2851 = vmatpush.msra.mxu0 %v2831
    %2852 = vmatmul.f32.gmra.mxu0 %v2834
    %v2853 = vpop.f32.mrf.mxu0
    %v2854 = vadd.f32 0.0, %v2853
    %2855 = vdwg.mxu0
    %2857 = vrot.lane.b32.xlu0 %v2720, 8
    %v2858 = vpop.permute.xlu0 %2857
    %2861 = vrot.lane.b32.xlu0 %v2787, 16
    %v2862 = vpop.permute.xlu0 %2861
    %2865 = vrot.lane.b32.xlu0 %v2854, 24
    %v2866 = vpop.permute.xlu0 %2865
    %v2868 = vsel %vm273, %v2653, %v2858
    %v2869 = vsel %vm551, %v2868, %v2862
    %v2870 = vsel %vm553, %v2869, %v2866
    %v2872 = vsel %vm273, %v2555, 0
    %v2875 = vsel %vm273, %v2588, 0
    %2877 = vmatpush.xpose.msra.mxu0 0.0
    %2878 = vmatpush.xpose.msra.mxu0 0.0
    %2879 = vmatpush.xpose.msra.mxu0 0.0
    %2880 = vmatpush.xpose.msra.mxu0 0.0
    %2881 = vmatpush.xpose.msra.mxu0 0.0
    %2882 = vmatpush.xpose.msra.mxu0 0.0
    %2883 = vmatpush.xpose.msra.mxu0 0.0
    %2884 = vmatpush.xpose.msra.mxu0 0.0
    %2885 = vmatpush.xpose.msra.mxu0 0.0
    %2886 = vmatpush.xpose.msra.mxu0 0.0
    %2887 = vmatpush.xpose.msra.mxu0 0.0
    %2888 = vmatpush.xpose.msra.mxu0 0.0
    %2889 = vmatpush.xpose.msra.mxu0 0.0
    %2890 = vmatpush.xpose.msra.mxu0 0.0
    %2891 = vmatpush.xpose.msra.mxu0 0.0
    %2892 = vmatpush.xpose.msra.mxu0 %v2875
    %2893 = vmatmul.f32.gmra.mxu0 %v2872
    %v2894 = vpop.f32.mrf.mxu0
    %v2895 = vadd.f32 0.0, %v2894
    %2896 = vdwg.mxu0
    %v2897 = vmul.f32 %v2895, 0.35355338
    %v2898 = vadd.f32 %v2897, %v1320
    %v2899 = vsel %vm273, %v2898, -inf
    %2900 = vmax.xlane.f32.xlu0 %v2899
    %v2901 = vpop.xlane.xlu0 %2900
    %v2902 = vsub.f32 %v2898, %v2901
    %v2903 = vmul.f32 %v2902, 1.442695
    %v2904 = vpow.pop %v2903
    %v2905 = vsel %vm273, %v2904, 0.0
    %2906 = vadd.xlane.f32.xlu0 %v2905
    %v2907 = vpop.xlane.xlu0 %2906
    %v2908 = vrcp.pop %v2907
    %v2909 = vmul.f32 %v2904, %v2908
    %2910 = vrot.lane.b32.xlu0 %v2588, 96
    %v2911 = vpop.permute.xlu0 %2910
    %v2914 = vsel %vm273, %v2909, 0
    %2916 = vmatpush.msra.mxu0 0.0
    %2917 = vmatpush.msra.mxu0 0.0
    %2918 = vmatpush.msra.mxu0 0.0
    %2919 = vmatpush.msra.mxu0 0.0
    %2920 = vmatpush.msra.mxu0 0.0
    %2921 = vmatpush.msra.mxu0 0.0
    %2922 = vmatpush.msra.mxu0 0.0
    %2923 = vmatpush.msra.mxu0 0.0
    %2924 = vmatpush.msra.mxu0 0.0
    %2925 = vmatpush.msra.mxu0 0.0
    %2926 = vmatpush.msra.mxu0 0.0
    %2927 = vmatpush.msra.mxu0 0.0
    %2928 = vmatpush.msra.mxu0 0.0
    %2929 = vmatpush.msra.mxu0 0.0
    %2930 = vmatpush.msra.mxu0 0.0
    %2931 = vmatpush.msra.mxu0 %v2911
    %2932 = vmatmul.f32.gmra.mxu0 %v2914
    %v2933 = vpop.f32.mrf.mxu0
    %v2934 = vadd.f32 0.0, %v2933
    %2935 = vdwg.mxu0
    %2936 = vrot.lane.b32.xlu0 %v2555, 120
    %v2937 = vpop.permute.xlu0 %2936
    %2938 = vrot.lane.b32.xlu0 %v2588, 120
    %v2939 = vpop.permute.xlu0 %2938
    %v2940 = vsel %vm273, %v2937, 0
    %v2942 = vsel %vm273, %v2939, 0
    %2944 = vmatpush.xpose.msra.mxu0 0.0
    %2945 = vmatpush.xpose.msra.mxu0 0.0
    %2946 = vmatpush.xpose.msra.mxu0 0.0
    %2947 = vmatpush.xpose.msra.mxu0 0.0
    %2948 = vmatpush.xpose.msra.mxu0 0.0
    %2949 = vmatpush.xpose.msra.mxu0 0.0
    %2950 = vmatpush.xpose.msra.mxu0 0.0
    %2951 = vmatpush.xpose.msra.mxu0 0.0
    %2952 = vmatpush.xpose.msra.mxu0 0.0
    %2953 = vmatpush.xpose.msra.mxu0 0.0
    %2954 = vmatpush.xpose.msra.mxu0 0.0
    %2955 = vmatpush.xpose.msra.mxu0 0.0
    %2956 = vmatpush.xpose.msra.mxu0 0.0
    %2957 = vmatpush.xpose.msra.mxu0 0.0
    %2958 = vmatpush.xpose.msra.mxu0 0.0
    %2959 = vmatpush.xpose.msra.mxu0 %v2942
    %2960 = vmatmul.f32.gmra.mxu0 %v2940
    %v2961 = vpop.f32.mrf.mxu0
    %v2962 = vadd.f32 0.0, %v2961
    %2963 = vdwg.mxu0
    %v2964 = vmul.f32 %v2962, 0.35355338
    %v2965 = vadd.f32 %v2964, %v1320
    %v2966 = vsel %vm273, %v2965, -inf
    %2967 = vmax.xlane.f32.xlu0 %v2966
    %v2968 = vpop.xlane.xlu0 %2967
    %v2969 = vsub.f32 %v2965, %v2968
    %v2970 = vmul.f32 %v2969, 1.442695
    %v2971 = vpow.pop %v2970
    %v2972 = vsel %vm273, %v2971, 0.0
    %2973 = vadd.xlane.f32.xlu0 %v2972
    %v2974 = vpop.xlane.xlu0 %2973
    %v2975 = vrcp.pop %v2974
    %v2976 = vmul.f32 %v2971, %v2975
    %2977 = vrot.lane.b32.xlu0 %v2588, 88
    %v2978 = vpop.permute.xlu0 %2977
    %v2981 = vsel %vm273, %v2976, 0
    %2983 = vmatpush.msra.mxu0 0.0
    %2984 = vmatpush.msra.mxu0 0.0
    %2985 = vmatpush.msra.mxu0 0.0
    %2986 = vmatpush.msra.mxu0 0.0
    %2987 = vmatpush.msra.mxu0 0.0
    %2988 = vmatpush.msra.mxu0 0.0
    %2989 = vmatpush.msra.mxu0 0.0
    %2990 = vmatpush.msra.mxu0 0.0
    %2991 = vmatpush.msra.mxu0 0.0
    %2992 = vmatpush.msra.mxu0 0.0
    %2993 = vmatpush.msra.mxu0 0.0
    %2994 = vmatpush.msra.mxu0 0.0
    %2995 = vmatpush.msra.mxu0 0.0
    %2996 = vmatpush.msra.mxu0 0.0
    %2997 = vmatpush.msra.mxu0 0.0
    %2998 = vmatpush.msra.mxu0 %v2978
    %2999 = vmatmul.f32.gmra.mxu0 %v2981
    %v3000 = vpop.f32.mrf.mxu0
    %v3001 = vadd.f32 0.0, %v3000
    %3002 = vdwg.mxu0
    %3003 = vrot.lane.b32.xlu0 %v2555, 112
    %v3004 = vpop.permute.xlu0 %3003
    %3005 = vrot.lane.b32.xlu0 %v2588, 112
    %v3006 = vpop.permute.xlu0 %3005
    %v3007 = vsel %vm273, %v3004, 0
    %v3009 = vsel %vm273, %v3006, 0
    %3011 = vmatpush.xpose.msra.mxu0 0.0
    %3012 = vmatpush.xpose.msra.mxu0 0.0
    %3013 = vmatpush.xpose.msra.mxu0 0.0
    %3014 = vmatpush.xpose.msra.mxu0 0.0
    %3015 = vmatpush.xpose.msra.mxu0 0.0
    %3016 = vmatpush.xpose.msra.mxu0 0.0
    %3017 = vmatpush.xpose.msra.mxu0 0.0
    %3018 = vmatpush.xpose.msra.mxu0 0.0
    %3019 = vmatpush.xpose.msra.mxu0 0.0
    %3020 = vmatpush.xpose.msra.mxu0 0.0
    %3021 = vmatpush.xpose.msra.mxu0 0.0
    %3022 = vmatpush.xpose.msra.mxu0 0.0
    %3023 = vmatpush.xpose.msra.mxu0 0.0
    %3024 = vmatpush.xpose.msra.mxu0 0.0
    %3025 = vmatpush.xpose.msra.mxu0 0.0
    %3026 = vmatpush.xpose.msra.mxu0 %v3009
    %3027 = vmatmul.f32.gmra.mxu0 %v3007
    %v3028 = vpop.f32.mrf.mxu0
    %v3029 = vadd.f32 0.0, %v3028
    %3030 = vdwg.mxu0
    %v3031 = vmul.f32 %v3029, 0.35355338
    %v3032 = vadd.f32 %v3031, %v1320
    %v3033 = vsel %vm273, %v3032, -inf
    %3034 = vmax.xlane.f32.xlu0 %v3033
    %v3035 = vpop.xlane.xlu0 %3034
    %v3036 = vsub.f32 %v3032, %v3035
    %v3037 = vmul.f32 %v3036, 1.442695
    %v3038 = vpow.pop %v3037
    %v3039 = vsel %vm273, %v3038, 0.0
    %3040 = vadd.xlane.f32.xlu0 %v3039
    %v3041 = vpop.xlane.xlu0 %3040
    %v3042 = vrcp.pop %v3041
    %v3043 = vmul.f32 %v3038, %v3042
    %3044 = vrot.lane.b32.xlu0 %v2588, 80
    %v3045 = vpop.permute.xlu0 %3044
    %v3048 = vsel %vm273, %v3043, 0
    %3050 = vmatpush.msra.mxu0 0.0
    %3051 = vmatpush.msra.mxu0 0.0
    %3052 = vmatpush.msra.mxu0 0.0
    %3053 = vmatpush.msra.mxu0 0.0
    %3054 = vmatpush.msra.mxu0 0.0
    %3055 = vmatpush.msra.mxu0 0.0
    %3056 = vmatpush.msra.mxu0 0.0
    %3057 = vmatpush.msra.mxu0 0.0
    %3058 = vmatpush.msra.mxu0 0.0
    %3059 = vmatpush.msra.mxu0 0.0
    %3060 = vmatpush.msra.mxu0 0.0
    %3061 = vmatpush.msra.mxu0 0.0
    %3062 = vmatpush.msra.mxu0 0.0
    %3063 = vmatpush.msra.mxu0 0.0
    %3064 = vmatpush.msra.mxu0 0.0
    %3065 = vmatpush.msra.mxu0 %v3045
    %3066 = vmatmul.f32.gmra.mxu0 %v3048
    %v3067 = vpop.f32.mrf.mxu0
    %v3068 = vadd.f32 0.0, %v3067
    %3069 = vdwg.mxu0
    %3070 = vrot.lane.b32.xlu0 %v2555, 104
    %v3071 = vpop.permute.xlu0 %3070
    %3072 = vrot.lane.b32.xlu0 %v2588, 104
    %v3073 = vpop.permute.xlu0 %3072
    %v3074 = vsel %vm273, %v3071, 0
    %v3076 = vsel %vm273, %v3073, 0
    %3078 = vmatpush.xpose.msra.mxu0 0.0
    %3079 = vmatpush.xpose.msra.mxu0 0.0
    %3080 = vmatpush.xpose.msra.mxu0 0.0
    %3081 = vmatpush.xpose.msra.mxu0 0.0
    %3082 = vmatpush.xpose.msra.mxu0 0.0
    %3083 = vmatpush.xpose.msra.mxu0 0.0
    %3084 = vmatpush.xpose.msra.mxu0 0.0
    %3085 = vmatpush.xpose.msra.mxu0 0.0
    %3086 = vmatpush.xpose.msra.mxu0 0.0
    %3087 = vmatpush.xpose.msra.mxu0 0.0
    %3088 = vmatpush.xpose.msra.mxu0 0.0
    %3089 = vmatpush.xpose.msra.mxu0 0.0
    %3090 = vmatpush.xpose.msra.mxu0 0.0
    %3091 = vmatpush.xpose.msra.mxu0 0.0
    %3092 = vmatpush.xpose.msra.mxu0 0.0
    %3093 = vmatpush.xpose.msra.mxu0 %v3076
    %3094 = vmatmul.f32.gmra.mxu0 %v3074
    %v3095 = vpop.f32.mrf.mxu0
    %v3096 = vadd.f32 0.0, %v3095
    %3097 = vdwg.mxu0
    %v3098 = vmul.f32 %v3096, 0.35355338
    %v3099 = vadd.f32 %v3098, %v1320
    %v3100 = vsel %vm273, %v3099, -inf
    %3101 = vmax.xlane.f32.xlu0 %v3100
    %v3102 = vpop.xlane.xlu0 %3101
    %v3103 = vsub.f32 %v3099, %v3102
    %v3104 = vmul.f32 %v3103, 1.442695
    %v3105 = vpow.pop %v3104
    %v3106 = vsel %vm273, %v3105, 0.0
    %3107 = vadd.xlane.f32.xlu0 %v3106
    %v3108 = vpop.xlane.xlu0 %3107
    %v3109 = vrcp.pop %v3108
    %v3110 = vmul.f32 %v3105, %v3109
    %3111 = vrot.lane.b32.xlu0 %v2588, 72
    %v3112 = vpop.permute.xlu0 %3111
    %v3115 = vsel %vm273, %v3110, 0
    %3117 = vmatpush.msra.mxu0 0.0
    %3118 = vmatpush.msra.mxu0 0.0
    %3119 = vmatpush.msra.mxu0 0.0
    %3120 = vmatpush.msra.mxu0 0.0
    %3121 = vmatpush.msra.mxu0 0.0
    %3122 = vmatpush.msra.mxu0 0.0
    %3123 = vmatpush.msra.mxu0 0.0
    %3124 = vmatpush.msra.mxu0 0.0
    %3125 = vmatpush.msra.mxu0 0.0
    %3126 = vmatpush.msra.mxu0 0.0
    %3127 = vmatpush.msra.mxu0 0.0
    %3128 = vmatpush.msra.mxu0 0.0
    %3129 = vmatpush.msra.mxu0 0.0
    %3130 = vmatpush.msra.mxu0 0.0
    %3131 = vmatpush.msra.mxu0 0.0
    %3132 = vmatpush.msra.mxu0 %v3112
    %3133 = vmatmul.f32.gmra.mxu0 %v3115
    %v3134 = vpop.f32.mrf.mxu0
    %v3135 = vadd.f32 0.0, %v3134
    %3136 = vdwg.mxu0
    %3138 = vrot.lane.b32.xlu0 %v3001, 8
    %v3139 = vpop.permute.xlu0 %3138
    %3142 = vrot.lane.b32.xlu0 %v3068, 16
    %v3143 = vpop.permute.xlu0 %3142
    %3146 = vrot.lane.b32.xlu0 %v3135, 24
    %v3147 = vpop.permute.xlu0 %3146
    %v3149 = vsel %vm273, %v2934, %v3139
    %v3150 = vsel %vm551, %v3149, %v3143
    %v3151 = vsel %vm553, %v3150, %v3147
    %s3152 = scalar_lea.vmem [#allocation8], 32
    %v3153 = vld [vmem:[%s3152] sm:$0xff]
    %v3154 = vld [vmem:[%s3152 + $0x8] sm:$0xff]
    %v3155 = vld [vmem:[%s3152 + $0x10] sm:$0xff]
    %v3156 = vld [vmem:[%s3152 + $0x18] sm:$0xff]
    %v3158 = vsel %vm169, %v2870, 0
    %v3161 = vsel %vm169, %v3151, 0
    %3163 = vmatpush.msra.mxu0 0.0
    %3164 = vmatpush.msra.mxu0 0.0
    %3165 = vmatpush.msra.mxu0 0.0
    %3166 = vmatpush.msra.mxu0 0.0
    %3167 = vmatpush.msra.mxu0 0.0
    %3168 = vmatpush.msra.mxu0 0.0
    %3169 = vmatpush.msra.mxu0 0.0
    %3170 = vmatpush.msra.mxu0 0.0
    %3171 = vmatpush.msra.mxu0 0.0
    %3172 = vmatpush.msra.mxu0 0.0
    %3173 = vmatpush.msra.mxu0 0.0
    %3174 = vmatpush.msra.mxu0 0.0
    %3175 = vmatpush.msra.mxu0 %v3156
    %3176 = vmatpush.msra.mxu0 %v3155
    %3177 = vmatpush.msra.mxu0 %v3154
    %3178 = vmatpush.msra.mxu0 %v3153
    %3179 = vmatmul.f32.gmra.mxu0 %v3158
    %v3180 = vpop.f32.mrf.mxu0
    %v3181 = vadd.f32 0.0, %v3180
    %3182 = vmatmul.f32.gmra.mxu0 %v3161
    %v3183 = vpop.f32.mrf.mxu0
    %v3184 = vadd.f32 0.0, %v3183
    %3185 = vdwg.mxu0
    %v3186 = vadd.f32 %v2460, %v3181
    %v3187 = vadd.f32 %v2461, %v3184
    %s3188 = scalar_lea.vmem %s15, 1
    %v3189 = vld [vmem:[%s3188] sm:$0x1]
    %v3191 = vperm.slane %v3189, 0
    %v3193 = vadd.f32 %v3186, %v3191
    %v3194 = vadd.f32 %v3187, %v3191
    %v3195 = vsel %vm169, %v3193, 0.0
    %3196 = vadd.xlane.f32.xlu0 %v3195
    %v3197 = vpop.xlane.xlu0 %3196
    %v3198 = vsel %vm169, %v3194, 0.0
    %3199 = vadd.xlane.f32.xlu0 %v3198
    %v3200 = vpop.xlane.xlu0 %3199
    %v3201 = vmul.f32 %v3197, %v182
    %v3202 = vmul.f32 %v3200, %v182
    %v3203 = vsub.f32 %v3193, %v3201
    %v3204 = vsub.f32 %v3194, %v3202
    %v3205 = vmul.f32 %v3203, %v3203
    %v3206 = vmul.f32 %v3204, %v3204
    %v3207 = vsel %vm169, %v3205, 0.0
    %3208 = vadd.xlane.f32.xlu0 %v3207
    %v3209 = vpop.xlane.xlu0 %3208
    %v3210 = vsel %vm169, %v3206, 0.0
    %3211 = vadd.xlane.f32.xlu0 %v3210
    %v3212 = vpop.xlane.xlu0 %3211
    %v3213 = vmul.f32 %v3209, 0.032258064
    %v3214 = vmul.f32 %v3212, 0.032258064
    %v3215 = vrsqrt.pop %v3213
    %v3216 = vmul.f32 %v3215, %v3213
    %v3217 = vmul.f32 %v3216, %v3215
    %v3218 = vmul.f32 0.5, %v3217
    %v3219 = vsub.f32 1.5, %v3218
    %v3220 = vmul.f32 %v3215, %v3219
    %v3221 = vmul.f32 %v3213, %v3220
    %vm3222 = vcmp.eq.f32.partialorder %v3213, inf
    %v3223 = vsel %vm3222, %v3213, %v3221
    %vm3224 = vcmp.eq.f32.partialorder %v3213, 0.0
    %v3225 = vand.u32 %v3213, 2147483648
    %v3226 = vsel %vm3224, %v3225, %v3223
    %v3227 = vrsqrt.pop %v3214
    %v3228 = vmul.f32 %v3227, %v3214
    %v3229 = vmul.f32 %v3228, %v3227
    %v3230 = vmul.f32 0.5, %v3229
    %v3231 = vsub.f32 1.5, %v3230
    %v3232 = vmul.f32 %v3227, %v3231
    %v3233 = vmul.f32 %v3214, %v3232
    %vm3234 = vcmp.eq.f32.partialorder %v3214, inf
    %v3235 = vsel %vm3234, %v3214, %v3233
    %vm3236 = vcmp.eq.f32.partialorder %v3214, 0.0
    %v3237 = vand.u32 %v3214, 2147483648
    %v3238 = vsel %vm3236, %v3237, %v3235
    %v3239 = vadd.f32 %v3226, 1e-06
    %v3240 = vadd.f32 %v3238, 1e-06
    %v3241 = vrcp.pop %v3239
    %v3242 = vrcp.pop %v3240
    %v3243 = vperm.slane %v1759, 4
    %v3244 = vmul.f32 %v3243, %v3203
    %v3245 = vmul.f32 %v3243, %v3204
    %v3246 = vmul.f32 %v3244, %v3241
    %v3247 = vmul.f32 %v3245, %v3242
    %v3248 = vperm.slane %v1759, 5
    %v3249 = vadd.f32 %v3246, %v3248
    %v3250 = vadd.f32 %v3247, %v3248
    %s3251 = scalar_lea.vmem [#allocation10], 32
    %v3252 = vld [vmem:[%s3251] sm:$0xff]
    %v3253 = vld [vmem:[%s3251 + $0x8] sm:$0xff]
    %v3254 = vld [vmem:[%s3251 + $0x10] sm:$0xff]
    %v3255 = vld [vmem:[%s3251 + $0x18] sm:$0xff]
    %s3256 = scalar_lea.vmem %s17, 1
    %v3257 = vld [vmem:[%s3256] sm:$0x1]
    %v3259 = vperm.slane %v3257, 0
    %v3262 = vsel %vm169, %v3249, 0
    %v3265 = vsel %vm169, %v3250, 0
    %3267 = vmatpush.msra.mxu0 0.0
    %3268 = vmatpush.msra.mxu0 0.0
    %3269 = vmatpush.msra.mxu0 0.0
    %3270 = vmatpush.msra.mxu0 0.0
    %3271 = vmatpush.msra.mxu0 0.0
    %3272 = vmatpush.msra.mxu0 0.0
    %3273 = vmatpush.msra.mxu0 0.0
    %3274 = vmatpush.msra.mxu0 0.0
    %3275 = vmatpush.msra.mxu0 0.0
    %3276 = vmatpush.msra.mxu0 0.0
    %3277 = vmatpush.msra.mxu0 0.0
    %3278 = vmatpush.msra.mxu0 0.0
    %3279 = vmatpush.msra.mxu0 %v3255
    %3280 = vmatpush.msra.mxu0 %v3254
    %3281 = vmatpush.msra.mxu0 %v3253
    %3282 = vmatpush.msra.mxu0 %v3252
    %3283 = vmatmul.f32.gmra.mxu0 %v3262
    %v3284 = vpop.f32.mrf.mxu0
    %v3285 = vadd.f32 %v3259, %v3284
    %3286 = vmatmul.f32.gmra.mxu0 %v3265
    %v3287 = vpop.f32.mrf.mxu0
    %v3288 = vadd.f32 %v3259, %v3287
    %3289 = vdwg.mxu0
    %v3290 = vmax.f32 %v3285, 0.0
    %v3291 = vmax.f32 %v3288, 0.0
    %s3292 = scalar_lea.vmem %s18, 64
    %v3293 = vld [vmem:[%s3292] sm:$0xff]
    %v3294 = vld [vmem:[%s3292 + $0x8] sm:$0xff]
    %v3295 = vld [vmem:[%s3292 + $0x10] sm:$0xff]
    %v3296 = vld [vmem:[%s3292 + $0x18] sm:$0xff]
    %v3297 = vld [vmem:[%s3292 + $0x20] sm:$0xff]
    %v3298 = vld [vmem:[%s3292 + $0x28] sm:$0xff]
    %v3299 = vld [vmem:[%s3292 + $0x30] sm:$0xff]
    %v3300 = vld [vmem:[%s3292 + $0x38] sm:$0xff]
    %v3302 = vsel %vm1720, %v3290, 0
    %v3305 = vsel %vm1720, %v3291, 0
    %3307 = vmatpush.msra.mxu0 0.0
    %3308 = vmatpush.msra.mxu0 0.0
    %3309 = vmatpush.msra.mxu0 0.0
    %3310 = vmatpush.msra.mxu0 0.0
    %3311 = vmatpush.msra.mxu0 0.0
    %3312 = vmatpush.msra.mxu0 0.0
    %3313 = vmatpush.msra.mxu0 0.0
    %3314 = vmatpush.msra.mxu0 0.0
    %3315 = vmatpush.msra.mxu0 %v3300
    %3316 = vmatpush.msra.mxu0 %v3299
    %3317 = vmatpush.msra.mxu0 %v3298
    %3318 = vmatpush.msra.mxu0 %v3297
    %3319 = vmatpush.msra.mxu0 %v3296
    %3320 = vmatpush.msra.mxu0 %v3295
    %3321 = vmatpush.msra.mxu0 %v3294
    %3322 = vmatpush.msra.mxu0 %v3293
    %3323 = vmatmul.f32.gmra.mxu0 %v3302
    %v3324 = vpop.f32.mrf.mxu0
    %v3325 = vadd.f32 0.0, %v3324
    %3326 = vmatmul.f32.gmra.mxu0 %v3305
    %v3327 = vpop.f32.mrf.mxu0
    %v3328 = vadd.f32 0.0, %v3327
    %3329 = vdwg.mxu0
    %v3330 = vadd.f32 %v3193, %v3325
    %v3331 = vadd.f32 %v3194, %v3328
    %s3332 = scalar_lea.vmem %s19, 1
    %v3333 = vld [vmem:[%s3332] sm:$0x1]
    %v3335 = vperm.slane %v3333, 0
    %v3337 = vadd.f32 %v3330, %v3335
    %v3338 = vadd.f32 %v3331, %v3335
    %v3339 = vld [vmem:[%s20] sm:$0x3]
    %v3340 = vsel %vm169, %v3337, 0.0
    %3341 = vadd.xlane.f32.xlu0 %v3340
    %v3342 = vpop.xlane.xlu0 %3341
    %v3343 = vsel %vm169, %v3338, 0.0
    %3344 = vadd.xlane.f32.xlu0 %v3343
    %v3345 = vpop.xlane.xlu0 %3344
    %v3346 = vmul.f32 %v3342, %v182
    %v3347 = vmul.f32 %v3345, %v182
    %v3348 = vsub.f32 %v3337, %v3346
    %v3349 = vsub.f32 %v3338, %v3347
    %v3350 = vmul.f32 %v3348, %v3348
    %v3351 = vmul.f32 %v3349, %v3349
    %v3352 = vsel %vm169, %v3350, 0.0
    %3353 = vadd.xlane.f32.xlu0 %v3352
    %v3354 = vpop.xlane.xlu0 %3353
    %v3355 = vsel %vm169, %v3351, 0.0
    %3356 = vadd.xlane.f32.xlu0 %v3355
    %v3357 = vpop.xlane.xlu0 %3356
    %v3358 = vmul.f32 %v3354, 0.032258064
    %v3359 = vmul.f32 %v3357, 0.032258064
    %v3360 = vrsqrt.pop %v3358
    %v3361 = vmul.f32 %v3360, %v3358
    %v3362 = vmul.f32 %v3361, %v3360
    %v3363 = vmul.f32 0.5, %v3362
    %v3364 = vsub.f32 1.5, %v3363
    %v3365 = vmul.f32 %v3360, %v3364
    %v3366 = vmul.f32 %v3358, %v3365
    %vm3367 = vcmp.eq.f32.partialorder %v3358, inf
    %v3368 = vsel %vm3367, %v3358, %v3366
    %vm3369 = vcmp.eq.f32.partialorder %v3358, 0.0
    %v3370 = vand.u32 %v3358, 2147483648
    %v3371 = vsel %vm3369, %v3370, %v3368
    %v3372 = vrsqrt.pop %v3359
    %v3373 = vmul.f32 %v3372, %v3359
    %v3374 = vmul.f32 %v3373, %v3372
    %v3375 = vmul.f32 0.5, %v3374
    %v3376 = vsub.f32 1.5, %v3375
    %v3377 = vmul.f32 %v3372, %v3376
    %v3378 = vmul.f32 %v3359, %v3377
    %vm3379 = vcmp.eq.f32.partialorder %v3359, inf
    %v3380 = vsel %vm3379, %v3359, %v3378
    %vm3381 = vcmp.eq.f32.partialorder %v3359, 0.0
    %v3382 = vand.u32 %v3359, 2147483648
    %v3383 = vsel %vm3381, %v3382, %v3380
    %v3384 = vadd.f32 %v3371, 1e-06
    %v3385 = vadd.f32 %v3383, 1e-06
    %v3386 = vrcp.pop %v3384
    %v3387 = vrcp.pop %v3385
    %v3388 = vperm.slane %v3339, 0
    %v3389 = vmul.f32 %v3388, %v3348
    %v3390 = vmul.f32 %v3388, %v3349
    %v3391 = vmul.f32 %v3389, %v3386
    %v3392 = vmul.f32 %v3390, %v3387
    %v3393 = vperm.slane %v3339, 1
    %v3394 = vadd.f32 %v3391, %v3393
    %v3395 = vadd.f32 %v3392, %v3393
    %3396 = vst.msk [vmem:[#allocation11] sm:$0xff] %vm169, %v3394
    %3397 = vst.msk [vmem:[#allocation11 + $0x8] sm:$0xff] %vm169, %v3395
    // Predicated region
    $region106: #{tpu_custom_call.1} parent=1 // pred_check
      _
    $region107: #{tpu_custom_call.1} parent=1 // pred_check_branch
      %3399 = sbr.rel (0) target = $region109
    $region108: #{tpu_custom_call.1} parent=1 // pred_region
      %3401 = vsyncadd [#allocation4], 0
      %s3402 = sshll.u32 [#allocation11], 4
      %s3403 = int_to_ptr.vmem [resolvable:$true] %s3402
      %s3404 = sshll.u32 %s21, 4
      %s3405 = int_to_ptr.hbm [resolvable:$true] %s3404
      %3410 = dma.vmem_to_hbm [thread:$0]  %s3403, 256, %s3405, [#allocation4], 128, 128, 8
    $region109: #{tpu_custom_call.1} parent=1 // pred_fallthru
      _
    // Predicated region
    $region110: #{tpu_custom_call.1} parent=1 // pred_check
      _
    $region111: #{tpu_custom_call.1} parent=1 // pred_check_branch
      %3412 = sbr.rel (0) target = $region113
    $region112: #{tpu_custom_call.1} parent=1 // pred_region
      %3414 = dma.done [#allocation4], 256
    $region113: #{tpu_custom_call.1} parent=1 // pred_fallthru
      _
    %3415 = vsyncpa [#allocation3], 1
    %3416 = vsyncpa [#allocation6], 1
    %3417 = vsyncpa [#allocation9], 1
    %3418 = vsyncpa [#allocation4], 1

</llo_original>
